<compile_context>
chip_gen: v6e
topology: v6e:2x2x1
jax: 0.10.0
libtpu: 0.0.40
codegen_flags: <defaults>
</compile_context>

<pallas_src>
import jax
import jax.numpy as jnp
from jax import lax
from jax.experimental import pallas as pl
from jax.experimental.pallas import tpu as pltpu

EPS = 1.0  # rfa() default: clamp_min(1.0)


def _round_up(x, m):
    return (x + m - 1) // m * m


def _pick_chunk(L, requested=None):
    """Chunk length along L (multiple of 8); L is padded up to a multiple of it."""
    if requested is not None:
        lc = int(requested)
        assert lc % 8 == 0, f"chunk={lc} must be a multiple of 8"
    else:
        # Keep chunks large and pad L instead of shrinking Lc; 256 fills the MXU
        # on v5e/v6e/v7x (pass chunk=512 on v6e if desired).
        lc = 256
    return lc, _round_up(L, lc)


def _pick_head_group(B, H, Dv, requested=None):
    """Heads per program: smallest divisor of H reaching >=128 output lanes,
    capped at 16, and reduced if needed so B*Hg >= 2 (keep both v7x cores busy)."""
    if requested is not None:
        assert H % requested == 0, f"head_block={requested} must divide H={H}"
        return requested
    divisors = [d for d in range(1, H + 1) if H % d == 0 and d <= 16]
    g = next((d for d in divisors if d * Dv >= 128), divisors[-1])
    if B == 1 and H // g < 2:
        smaller = [d for d in divisors if H // d >= 2]
        if smaller:
            g = max(smaller)
    return g


def rmfa_forward(Q, K, V, mask, W, *, chunk=None, head_block=None,
                 compute_dtype=jnp.bfloat16):
    """RMFA.forward: Q,K [B,H,L,D], V [B,H,L,Dv], mask [B,L], W [D,P] -> [B,H,L,Dv]."""
    B, H, L, D = Q.shape
    Dv = V.shape[-1]
    P = W.shape[-1]
    out_dtype = V.dtype

    Lc, Lp = _pick_chunk(L, chunk)
    G = _pick_head_group(B, H, Dv, head_block)
    Hg = H // G
    C = Lp // Lc
    Pp = _round_up(P, 128)         # zero-padded feature width (lane aligned)
    Dve = _round_up(Dv + 1, 128)   # value width + ones column, lane aligned

    cd = compute_dtype
    approx_recip = cd != jnp.float32

    # Fold d**-0.25 into W; zero-pad features to Pp (zero columns contribute
    # nothing to scores, denominators, or the prefix state -> exact).
    Wp = (W * (D ** -0.25)).astype(Q.dtype)
    Wp = jnp.pad(Wp, ((0, 0), (0, Pp - P)))

    # Fold the {0,1} key mask into K (valid: ((m*k)@W)**2 == m*((k@W)**2)).
    # TODO(synk): only valid for feature maps without a constant/bias term.
    if mask is not None:
        K = K * (mask != 0).astype(K.dtype)[:, None, :, None]

    # Pad L up to a multiple of Lc.  Zero keys project to zero features, so
    # the tail contributes nothing; padded query rows are sliced off below.
    if Lp != L:
        pad = ((0, 0), (0, 0), (0, Lp - L), (0, 0))
        Q = jnp.pad(Q, pad)
        K = jnp.pad(K, pad)
        V = jnp.pad(V, pad)

    # Value block with a ones column (denominator comes off the MXU with the
    # numerator) zero-padded to a 128-aligned lane width.
    ones = jnp.ones((B, H, Lp, 1), V.dtype)
    zpad = jnp.zeros((B, H, Lp, Dve - Dv - 1), V.dtype)
    V_ext = jnp.concatenate([V, ones, zpad], axis=-1)

    def kernel(q_ref, k_ref, v_ref, w_ref, o_ref, s_ref):
        # q_ref/k_ref: [G, Lc, D]   v_ref: [G, Lc, Dve]   w_ref: [D, Pp]
        # o_ref:       [G, Lc, Dv]  s_ref: [G, Pp, Dve] f32 running prefix state
        @pl.when(pl.program_id(2) == 0)
        def _init():
            s_ref[...] = jnp.zeros_like(s_ref)

        w = w_ref[...]
        # Random-feature projection for all G heads with one plain [.,D]@[D,Pp]
        # matmul (heads stacked along rows -> no block-diagonal weight).
        # TODO(synk): exact Maclaurin_projector internals were not provided; a
        # deterministic squared-linear positive feature map (x @ W)**2 stands in.
        qp = jnp.dot(q_ref[...].reshape(G * Lc, D), w,
                     preferred_element_type=jnp.float32)
        kp = jnp.dot(k_ref[...].reshape(G * Lc, D), w,
                     preferred_element_type=jnp.float32)
        qp = (qp * qp).reshape(G, Lc, Pp).astype(cd)   # square in f32, then cast
        kp = (kp * kp).reshape(G, Lc, Pp).astype(cd)
        v_ext = v_ref[...].astype(cd)
        s_prev = s_ref[...]

        # Intra-chunk causal scores, batched over heads: [G, Lc, Lc].
        scores = lax.dot_general(qp, kp, (((2,), (2,)), ((0,), (0,))),
                                 preferred_element_type=jnp.float32)
        row = lax.broadcasted_iota(jnp.int32, (Lc, Lc), 0)
        col = lax.broadcasted_iota(jnp.int32, (Lc, Lc), 1)
        scores = jnp.where((row >= col)[None], scores, 0.0).astype(cd)

        # Fused intra-chunk + prefix term: [A | qp] @ [[V,1,0pad], [S]].
        lhs = jnp.concatenate([scores, qp], axis=2)                # [G, Lc, Lc+Pp]
        rhs = jnp.concatenate([v_ext, s_prev.astype(cd)], axis=1)  # [G, Lc+Pp, Dve]
        acc = lax.dot_general(lhs, rhs, (((2,), (1,)), ((0,), (0,))),
                              preferred_element_type=jnp.float32)  # [G, Lc, Dve]

        numer = acc[..., :Dv]
        denom = jnp.maximum(acc[..., Dv:Dv + 1], EPS)              # clamp_min(eps)
        res = (numer * pl.reciprocal(denom, approx=approx_recip)
               ).astype(o_ref.dtype)
        o_ref[...] = res                                           # one block store

        # Carry the prefix state: S += kp^T @ [V,1,0pad]  (mask already in K).
        s_ref[...] = s_prev + lax.dot_general(
            kp, v_ext, (((1,), (1,)), ((0,), (0,))),
            preferred_element_type=jnp.float32)

    out = pl.pallas_call(
        kernel,
        out_shape=jax.ShapeDtypeStruct((B, H, Lp, Dv), out_dtype),
        grid_spec=pltpu.PrefetchScalarGridSpec(
            num_scalar_prefetch=0,
            grid=(B, Hg, C),
            in_specs=[
                pl.BlockSpec((None, G, Lc, D), lambda b, g, c: (b, g, c, 0)),
                pl.BlockSpec((None, G, Lc, D), lambda b, g, c: (b, g, c, 0)),
                pl.BlockSpec((None, G, Lc, Dve), lambda b, g, c: (b, g, c, 0)),
                pl.BlockSpec((D, Pp), lambda b, g, c: (0, 0)),  # W stays resident
            ],
            out_specs=pl.BlockSpec((None, G, Lc, Dv),
                                   lambda b, g, c: (b, g, c, 0)),
            scratch_shapes=[pltpu.VMEM((G, Pp, Dve), jnp.float32)],
        ),
        compiler_params=pltpu.CompilerParams(
            dimension_semantics=("parallel", "parallel", "arbitrary"),
            vmem_limit_bytes=32 * 1024 * 1024,
        ),
    )(Q, K, V_ext, Wp)

    return out[:, :, :L, :]


# ---------- pure-JAX reference (mirrors the PyTorch code path) ----------
def _rfa_ref(q, k, v, eps=1.0):
    ZTkv = jnp.einsum('bhlp,bhld->bhlpd', k, v)
    ZTkv = jnp.cumsum(ZTkv, axis=2)
    ZQk = jnp.einsum('bhlpd,bhlp->bhld', ZTkv, q)
    ZTk = jnp.cumsum(k, axis=2)
    ZQZTk = jnp.maximum(jnp.einsum('bhlp,bhlp->bhl', q, ZTk), eps)
    return ZQk / ZQZTk[..., None]


def rmfa_ref(Q, K, V, mask, W):
    d = Q.shape[-1]
    dn = d ** (-0.25)
    qp = jnp.einsum('bhld,dp->bhlp', Q * dn, W) ** 2
    kp = jnp.einsum('bhld,dp->bhlp', K * dn, W) ** 2
    if mask is not None:
        kp = jnp.where(mask[:, None, :, None] == 0, 0.0, kp)
    return _rfa_ref(qp, kp, V)


if __name__ == "__main__":
    key = jax.random.PRNGKey(0)
    B, H, L, D, P = 2, 2, 240, 16, 32   # head_dim=16, nb_features=32
    kq, kk, kv, kw, km = jax.random.split(key, 5)

    Q = jax.random.normal(kq, (B, H, L, D), dtype=jnp.float32)
    K = jax.random.normal(kk, (B, H, L, D), dtype=jnp.float32)
    V = jax.random.normal(kv, (B, H, L, D), dtype=jnp.float32)
    # deterministic stand-in for Maclaurin_projector.resample()
    W = jax.random.normal(kw, (D, P), dtype=jnp.float32) / jnp.sqrt(D)
    mask = (jax.random.uniform(km, (B, L)) > 0.2).astype(jnp.int32)
    mask = mask.at[:, 0].set(1)  # keep at least the first token valid

    Dv = V.shape[-1]
    ref = rmfa_ref(Q, K, V, mask, W)

    # (1) f32 MXU operands, two chunks -> exercises the carried prefix state
    #     and the L-padding path (240 -> 256).  Tight tolerance.
    out_f32 = jax.block_until_ready(
        rmfa_forward(Q, K, V, mask, W, chunk=128, compute_dtype=jnp.float32))
    assert out_f32.shape == (B, H, L, Dv), out_f32.shape
    err = float(jnp.max(jnp.abs(out_f32 - ref)))
    assert jnp.allclose(out_f32, ref, rtol=1e-3, atol=1e-3), f"f32 max abs err {err}"

    # (2) default path: bf16 MXU operands, default Lc=256 (single chunk).
    out_bf = jax.block_until_ready(rmfa_forward(Q, K, V, mask, W))
    assert out_bf.shape == (B, H, L, Dv), out_bf.shape
    err_bf = float(jnp.max(jnp.abs(out_bf - ref)))
    assert jnp.allclose(out_bf, ref, rtol=3e-2, atol=3e-2), f"bf16 max abs err {err_bf}"

    # (3) bf16 MXU operands + two chunks (prefix-state carry with bf16 operands).
    out_bf2 = jax.block_until_ready(rmfa_forward(Q, K, V, mask, W, chunk=128))
    err_bf2 = float(jnp.max(jnp.abs(out_bf2 - ref)))
    assert jnp.allclose(out_bf2, ref, rtol=3e-2, atol=3e-2), f"bf16 max abs err {err_bf2}"

    print("KERNEL_OK")
</pallas_src>

<mosaic_0001>
module attributes {stable_mosaic.version = 11 : i64} {
  func.func @kernel(%arg0: i32, %arg1: i32, %arg2: i32, %arg3: memref<1x2x128x16xf32, #tpu.memory_space<vmem>>, %arg4: memref<1x2x128x16xf32, #tpu.memory_space<vmem>>, %arg5: memref<1x2x128x128xf32, #tpu.memory_space<vmem>>, %arg6: memref<16x128xf32, #tpu.memory_space<vmem>>, %arg7: memref<1x2x128x16xf32, #tpu.memory_space<vmem>>, %arg8: memref<2x128x128xf32, #tpu.memory_space<vmem>>) attributes {dimension_semantics = [#tpu.dimension_semantics<parallel>, #tpu.dimension_semantics<parallel>, #tpu.dimension_semantics<arbitrary>], iteration_bounds = array<i64: 2, 1, 2>, scalar_prefetch = 0 : i64, scratch_operands = 1 : i64, tpu.core_type = #tpu.core_type<tc>, window_params = [{transform_indices = @transform_0, window_bounds = array<i64: 1, 2, 128, 16>}, {transform_indices = @transform_1, window_bounds = array<i64: 1, 2, 128, 16>}, {transform_indices = @transform_2, window_bounds = array<i64: 1, 2, 128, 128>}, {pipeline_mode = #tpu.pipeline_mode<synchronous>, transform_indices = @transform_3, window_bounds = array<i64: 16, 128>}, {transform_indices = @transform_4, window_bounds = array<i64: 1, 2, 128, 16>}]} {
    %c0_i32 = arith.constant 0 : i32
    %0 = arith.cmpi eq, %arg2, %c0_i32 : i32
    %1 = arith.extui %0 : i1 to i32
    %c0_i32_0 = arith.constant 0 : i32
    %2 = arith.cmpi ne, %1, %c0_i32_0 : i32
    scf.if %2 {
      %cst_30 = arith.constant 0.000000e+00 : f32
      %44 = vector.broadcast %cst_30 : f32 to vector<2x128x128xf32>
      %c0_31 = arith.constant 0 : index
      %c0_32 = arith.constant 0 : index
      %c0_33 = arith.constant 0 : index
      %45 = vector.load %arg8[%c0_31, %c0_32, %c0_33] : memref<2x128x128xf32, #tpu.memory_space<vmem>>, vector<2x128x128xf32>
      tpu.vector_store %arg8[%c0_31, %c0_32, %c0_33], %44 {strides = array<i32>} : memref<2x128x128xf32, #tpu.memory_space<vmem>>, vector<2x128x128xf32>,
    } else {
    }
    %c0 = arith.constant 0 : index
    %c0_1 = arith.constant 0 : index
    %3 = vector.load %arg6[%c0, %c0_1] : memref<16x128xf32, #tpu.memory_space<vmem>>, vector<16x128xf32>
    %c0_2 = arith.constant 0 : index
    %c0_3 = arith.constant 0 : index
    %c0_4 = arith.constant 0 : index
    %c0_5 = arith.constant 0 : index
    %4 = vector.load %arg3[%c0_2, %c0_3, %c0_4, %c0_5] : memref<1x2x128x16xf32, #tpu.memory_space<vmem>>, vector<1x2x128x16xf32>
    %5 = vector.shape_cast %4 : vector<1x2x128x16xf32> to vector<2x128x16xf32>
    %6 = vector.shape_cast %5 : vector<2x128x16xf32> to vector<256x16xf32>
    %cst = arith.constant dense<0.000000e+00> : vector<256x128xf32>
    %7 = tpu.matmul %6, %3, %cst {dimension_numbers = #tpu.dot_dimension_numbers<[1], [0], [0], [1], [0, 0, 1, 1], [], []>} : vector<256x16xf32>, vector<16x128xf32>, vector<256x128xf32> -> vector<256x128xf32>
    %c0_6 = arith.constant 0 : index
    %c0_7 = arith.constant 0 : index
    %c0_8 = arith.constant 0 : index
    %c0_9 = arith.constant 0 : index
    %8 = vector.load %arg4[%c0_6, %c0_7, %c0_8, %c0_9] : memref<1x2x128x16xf32, #tpu.memory_space<vmem>>, vector<1x2x128x16xf32>
    %9 = vector.shape_cast %8 : vector<1x2x128x16xf32> to vector<2x128x16xf32>
    %10 = vector.shape_cast %9 : vector<2x128x16xf32> to vector<256x16xf32>
    %cst_10 = arith.constant dense<0.000000e+00> : vector<256x128xf32>
    %11 = tpu.matmul %10, %3, %cst_10 {dimension_numbers = #tpu.dot_dimension_numbers<[1], [0], [0], [1], [0, 0, 1, 1], [], []>} : vector<256x16xf32>, vector<16x128xf32>, vector<256x128xf32> -> vector<256x128xf32>
    %12 = arith.mulf %7, %7 : vector<256x128xf32>
    %13 = vector.shape_cast %12 : vector<256x128xf32> to vector<2x128x128xf32>
    %14 = arith.mulf %11, %11 : vector<256x128xf32>
    %15 = vector.shape_cast %14 : vector<256x128xf32> to vector<2x128x128xf32>
    %c0_11 = arith.constant 0 : index
    %c0_12 = arith.constant 0 : index
    %c0_13 = arith.constant 0 : index
    %c0_14 = arith.constant 0 : index
    %16 = vector.load %arg5[%c0_11, %c0_12, %c0_13, %c0_14] : memref<1x2x128x128xf32, #tpu.memory_space<vmem>>, vector<1x2x128x128xf32>
    %17 = vector.shape_cast %16 : vector<1x2x128x128xf32> to vector<2x128x128xf32>
    %c0_15 = arith.constant 0 : index
    %c0_16 = arith.constant 0 : index
    %c0_17 = arith.constant 0 : index
    %18 = vector.load %arg8[%c0_15, %c0_16, %c0_17] : memref<2x128x128xf32, #tpu.memory_space<vmem>>, vector<2x128x128xf32>
    %cst_18 = arith.constant dense<0.000000e+00> : vector<2x128x128xf32>
    %19 = tpu.matmul %13, %15, %cst_18 {dimension_numbers = #tpu.dot_dimension_numbers<[2], [2], [1], [1], [0, 0, 0, 1, 1, 1], [0], [0]>} : vector<2x128x128xf32>, vector<2x128x128xf32>, vector<2x128x128xf32> -> vector<2x128x128xf32>
    %20 = tpu.iota {dimensions = array<i32: 0>} : vector<128x128xi32>
    %21 = tpu.iota {dimensions = array<i32: 1>} : vector<128x128xi32>
    %22 = arith.cmpi sge, %20, %21 : vector<128x128xi32>
    %23 = vector.shape_cast %22 : vector<128x128xi1> to vector<1x128x128xi1>
    %cst_19 = arith.constant 0.000000e+00 : f32
    %24 = vector.shape_cast %23 : vector<1x128x128xi1> to vector<1x128x128xi1>
    %25 = vector.broadcast %24 : vector<1x128x128xi1> to vector<2x128x128xi1>
    %26 = vector.broadcast %cst_19 : f32 to vector<2x128x128xf32>
    %27 = arith.select %25, %19, %26 : vector<2x128x128xi1>, vector<2x128x128xf32>
    %28 = tpu.concatenate %27, %13 in 2 : vector<2x128x128xf32>, vector<2x128x128xf32> -> vector<2x128x256xf32>
    %29 = tpu.concatenate %17, %18 in 1 : vector<2x128x128xf32>, vector<2x128x128xf32> -> vector<2x256x128xf32>
    %cst_20 = arith.constant dense<0.000000e+00> : vector<2x128x128xf32>
    %30 = tpu.matmul %28, %29, %cst_20 {dimension_numbers = #tpu.dot_dimension_numbers<[2], [1], [1], [2], [0, 0, 0, 1, 1, 2], [0], [0]>} : vector<2x128x256xf32>, vector<2x256x128xf32>, vector<2x128x128xf32> -> vector<2x128x128xf32>
    %31 = vector.extract_strided_slice %30 {offsets = [0, 0, 0], sizes = [2, 128, 16], strides = [1, 1, 1]} : vector<2x128x128xf32> to vector<2x128x16xf32>
    %32 = vector.extract_strided_slice %30 {offsets = [0, 0, 16], sizes = [2, 128, 1], strides = [1, 1, 1]} : vector<2x128x128xf32> to vector<2x128x1xf32>
    %cst_21 = arith.constant 1.000000e+00 : f32
    %33 = vector.broadcast %cst_21 : f32 to vector<2x128x1xf32>
    %34 = arith.maximumf %32, %33 : vector<2x128x1xf32>
    %35 = tpu.reciprocal %34 : vector<2x128x1xf32> -> vector<2x128x1xf32>
    %36 = vector.broadcast %35 : vector<2x128x1xf32> to vector<2x128x16xf32>
    %37 = arith.mulf %31, %36 : vector<2x128x16xf32>
    %c0_22 = arith.constant 0 : index
    %c0_23 = arith.constant 0 : index
    %c0_24 = arith.constant 0 : index
    %c0_25 = arith.constant 0 : index
    %38 = vector.load %arg7[%c0_22, %c0_23, %c0_24, %c0_25] : memref<1x2x128x16xf32, #tpu.memory_space<vmem>>, vector<1x2x128x16xf32>
    %39 = vector.shape_cast %38 : vector<1x2x128x16xf32> to vector<2x128x16xf32>
    %40 = vector.shape_cast %37 : vector<2x128x16xf32> to vector<1x2x128x16xf32>
    tpu.vector_store %arg7[%c0_22, %c0_23, %c0_24, %c0_25], %40 {strides = array<i32>} : memref<1x2x128x16xf32, #tpu.memory_space<vmem>>, vector<1x2x128x16xf32>,
    %cst_26 = arith.constant dense<0.000000e+00> : vector<2x128x128xf32>
    %41 = tpu.matmul %15, %17, %cst_26 {dimension_numbers = #tpu.dot_dimension_numbers<[1], [1], [2], [2], [0, 0, 0, 2, 1, 2], [0], [0]>} : vector<2x128x128xf32>, vector<2x128x128xf32>, vector<2x128x128xf32> -> vector<2x128x128xf32>
    %42 = arith.addf %18, %41 : vector<2x128x128xf32>
    %c0_27 = arith.constant 0 : index
    %c0_28 = arith.constant 0 : index
    %c0_29 = arith.constant 0 : index
    %43 = vector.load %arg8[%c0_27, %c0_28, %c0_29] : memref<2x128x128xf32, #tpu.memory_space<vmem>>, vector<2x128x128xf32>
    tpu.vector_store %arg8[%c0_27, %c0_28, %c0_29], %42 {strides = array<i32>} : memref<2x128x128xf32, #tpu.memory_space<vmem>>, vector<2x128x128xf32>,
    return
  }
  func.func @transform_0(%arg0: i32, %arg1: i32, %arg2: i32) -> (i32, i32, i32, i32) {
    %c0_i32 = arith.constant 0 : i32
    %c0_i32_0 = arith.constant 0 : i32
    return %arg0, %arg1, %arg2, %c0_i32 : i32, i32, i32, i32
  }
  func.func @transform_1(%arg0: i32, %arg1: i32, %arg2: i32) -> (i32, i32, i32, i32) {
    %c0_i32 = arith.constant 0 : i32
    %c0_i32_0 = arith.constant 0 : i32
    return %arg0, %arg1, %arg2, %c0_i32 : i32, i32, i32, i32
  }
  func.func @transform_2(%arg0: i32, %arg1: i32, %arg2: i32) -> (i32, i32, i32, i32) {
    %c0_i32 = arith.constant 0 : i32
    %c0_i32_0 = arith.constant 0 : i32
    return %arg0, %arg1, %arg2, %c0_i32 : i32, i32, i32, i32
  }
  func.func @transform_3(%arg0: i32, %arg1: i32, %arg2: i32) -> (i32, i32) {
    %c0_i32 = arith.constant 0 : i32
    %c0_i32_0 = arith.constant 0 : i32
    %c0_i32_1 = arith.constant 0 : i32
    return %c0_i32, %c0_i32_0 : i32, i32
  }
  func.func @transform_4(%arg0: i32, %arg1: i32, %arg2: i32) -> (i32, i32, i32, i32) {
    %c0_i32 = arith.constant 0 : i32
    %c0_i32_0 = arith.constant 0 : i32
    return %arg0, %arg1, %arg2, %c0_i32 : i32, i32, i32, i32
  }
}

</mosaic_0001>

<llo_original>
// kernel: tpu_custom_call.1
$region0: #{tpu_custom_call.1}
  #allocation0 [shape = 'u32[]', space=smem, size = 0x4, offset = 0x4, fixed_abs, tag = 'smem constant byte address 0x4 - core index']
  #allocation1 [shape = 'u32[144,128]{1,0:T(1,128)}', space=vmem, size = 0x12000, scoped, tag = 'internal scratch']
  #allocation2 [shape = 'f32[2,128,128]{2,1,0:T(8,128)}', space=vmem, size = 0x20000, scoped, tag = 'scratch operand']
  %s0 = inlined_call_operand.vmem [shape: f32[2,2,256,16], index: 0, kind: input, shape index: {}]
  %s1 = inlined_call_operand.vmem [shape: f32[2,2,256,16], index: 1, kind: input, shape index: {}]
  %s2 = inlined_call_operand.vmem [shape: f32[2,2,256,128], index: 2, kind: input, shape index: {}]
  %s3 = inlined_call_operand.vmem [shape: f32[16,128], index: 3, kind: input, shape index: {}]
  %s4 = inlined_call_operand.vmem [shape: f32[2,2,256,16], index: 4, kind: output, shape index: {}]
  %s5 = sld [smem:[#allocation0]]
  $region201: #{tpu_custom_call.1} parent=0
    _
  %s7 = ssub.s32 1, %s5
  %s8 = scalar_select 0, %s7, %s5
  $region1: #{tpu_custom_call.1} parent=0
    #allocation3 [shape = 'u8[262144]{0}', space=vmem, size = 0x40000, scoped, tag = 'input window, operand 0']
    #allocation4 [shape = 'u8[262144]{0}', space=vmem, size = 0x40000, scoped, tag = 'input window, operand 1']
    #allocation5 [shape = 'u8[262144]{0}', space=vmem, size = 0x40000, scoped, tag = 'input window, operand 2']
    #allocation6 [shape = 'u8[262144]{0}', space=vmem, size = 0x40000, scoped, tag = 'output window, operand 0']
    loop: start=0, step=1, limit=6
    $region2: #{tpu_custom_call.1} parent=1 // loop_pre_header
      _
    $region3: #{tpu_custom_call.1} parent=1 // loop_header
      %s10 = sphi 0, %s14
      %p11 = scmp.ge.s32.totalorder %s10, 6
      %s17 = sphi 0, %s36
      %s18 = sphi 0, %s32
      %s19 = sphi 0, %s28
      %s20 = sphi 0, %s17
      %s21 = sphi 0, %s18
      %s22 = sphi 0, %s19
      %s23 = sphi 0, %s20
      %s24 = sphi 0, %s21
      %s25 = sphi 0, %s22
      %s43 = sphi 0, %s45
      %s46 = sphi 0, %s43
      %s47 = sphi 0, %s46
      %s63 = sphi 0, %s47
      %s73 = sphi 0, %s75
      %s76 = sphi 0, %s73
      %s77 = sphi 0, %s76
      %s93 = sphi 0, %s77
      %s103 = sphi 0, %s105
      %s106 = sphi 0, %s103
      %s107 = sphi 0, %s106
      %s123 = sphi 0, %s107
      %s127 = sphi 0, %s127
      %s129 = sphi 0, %s127
      %s130 = sphi 0, %s129
      %s144 = sphi 0, %s130
      %s154 = sphi 0, %s156
      %s157 = sphi 0, %s154
      %s158 = sphi 0, %s157
      %s174 = sphi 0, %s158
    $region4: #{tpu_custom_call.1} parent=1 // loop_header_branch
      %13 = sbr.rel (%p11) target = $region8
    $region5: #{tpu_custom_call.1} parent=1 // loop_body
      %s15 = ssub.s32 %s10, 1
      %s16 = ssub.s32 %s10, 2
      %s26 = sadd.s32 1, %s19
      %p27 = scmp.ge.s32.totalorder %s26, 2
      %s28 = scalar_select %p27, 0, %s26
      %s29 = sadd.s32 1, %s18
      %s30 = scalar_select %p27, %s29, %s18
      %p31 = scmp.ge.s32.totalorder %s30, 1
      %s32 = scalar_select %p31, 0, %s30
      %s33 = sadd.s32 1, %s17
      %s34 = scalar_select %p31, %s33, %s17
      %p35 = scmp.ge.s32.totalorder %s34, 2
      %s36 = scalar_select %p35, 0, %s34
      %s37 = ssub.s32 %s17, %s36
      %s38 = ssub.s32 %s18, %s32
      %s39 = sor.u32 %s37, %s38
      %s40 = ssub.s32 %s19, %s28
      %s41 = sor.u32 %s39, %s40
      %p42 = scmp.eq.s32.totalorder %s41, 0
      %s44 = sadd.s32 %s43, 1
      %s45 = scalar_select %p42, %s43, %s44
      %p48 = pneg %p42
      %p49 = scmp.eq.s32.totalorder %s10, 3
      %p50 = por %p48, %p49
      %p51 = scmp.ne.s32.totalorder %s43, %s46
      %p52 = scmp.eq.s32.totalorder %s10, 0
      %p53 = por %p51, %p52
      %p54 = scmp.ne.s32.totalorder %s43, %s46
      %p55 = scmp.eq.s32.totalorder %s15, 3
      %p56 = por %p54, %p55
      %p57 = scmp.ne.s32.totalorder %s46, %s47
      %p58 = scmp.eq.s32.totalorder %s15, 0
      %p59 = por %p57, %p58
      %p60 = scmp.ne.s32.totalorder %s46, %s47
      %p61 = scmp.eq.s32.totalorder %s16, 3
      %p62 = por %p60, %p61
      %p64 = scmp.ne.s32.totalorder %s47, %s63
      %p65 = scmp.eq.s32.totalorder %s16, 0
      %p66 = por %p64, %p65
      %s67 = ssub.s32 %s17, %s36
      %s68 = ssub.s32 %s18, %s32
      %s69 = sor.u32 %s67, %s68
      %s70 = ssub.s32 %s19, %s28
      %s71 = sor.u32 %s69, %s70
      %p72 = scmp.eq.s32.totalorder %s71, 0
      %s74 = sadd.s32 %s73, 1
      %s75 = scalar_select %p72, %s73, %s74
      %p78 = pneg %p72
      %p79 = scmp.eq.s32.totalorder %s10, 3
      %p80 = por %p78, %p79
      %p81 = scmp.ne.s32.totalorder %s73, %s76
      %p82 = scmp.eq.s32.totalorder %s10, 0
      %p83 = por %p81, %p82
      %p84 = scmp.ne.s32.totalorder %s73, %s76
      %p85 = scmp.eq.s32.totalorder %s15, 3
      %p86 = por %p84, %p85
      %p87 = scmp.ne.s32.totalorder %s76, %s77
      %p88 = scmp.eq.s32.totalorder %s15, 0
      %p89 = por %p87, %p88
      %p90 = scmp.ne.s32.totalorder %s76, %s77
      %p91 = scmp.eq.s32.totalorder %s16, 3
      %p92 = por %p90, %p91
      %p94 = scmp.ne.s32.totalorder %s77, %s93
      %p95 = scmp.eq.s32.totalorder %s16, 0
      %p96 = por %p94, %p95
      %s97 = ssub.s32 %s17, %s36
      %s98 = ssub.s32 %s18, %s32
      %s99 = sor.u32 %s97, %s98
      %s100 = ssub.s32 %s19, %s28
      %s101 = sor.u32 %s99, %s100
      %p102 = scmp.eq.s32.totalorder %s101, 0
      %s104 = sadd.s32 %s103, 1
      %s105 = scalar_select %p102, %s103, %s104
      %p108 = pneg %p102
      %p109 = scmp.eq.s32.totalorder %s10, 3
      %p110 = por %p108, %p109
      %p111 = scmp.ne.s32.totalorder %s103, %s106
      %p112 = scmp.eq.s32.totalorder %s10, 0
      %p113 = por %p111, %p112
      %p114 = scmp.ne.s32.totalorder %s103, %s106
      %p115 = scmp.eq.s32.totalorder %s15, 3
      %p116 = por %p114, %p115
      %p117 = scmp.ne.s32.totalorder %s106, %s107
      %p118 = scmp.eq.s32.totalorder %s15, 0
      %p119 = por %p117, %p118
      %p120 = scmp.ne.s32.totalorder %s106, %s107
      %p121 = scmp.eq.s32.totalorder %s16, 3
      %p122 = por %p120, %p121
      %p124 = scmp.ne.s32.totalorder %s107, %s123
      %p125 = scmp.eq.s32.totalorder %s16, 0
      %p126 = por %p124, %p125
      %s128 = sadd.s32 %s127, 1
      %p131 = scmp.eq.s32.totalorder %s10, 3
      %p132 = scmp.ne.s32.totalorder %s127, %s129
      %p133 = scmp.eq.s32.totalorder %s10, 0
      %p134 = por %p132, %p133
      %p135 = scmp.ne.s32.totalorder %s127, %s129
      %p136 = scmp.eq.s32.totalorder %s15, 3
      %p137 = por %p135, %p136
      %p138 = scmp.ne.s32.totalorder %s129, %s130
      %p139 = scmp.eq.s32.totalorder %s15, 0
      %p140 = por %p138, %p139
      %p141 = scmp.ne.s32.totalorder %s129, %s130
      %p142 = scmp.eq.s32.totalorder %s16, 3
      %p143 = por %p141, %p142
      %p145 = scmp.ne.s32.totalorder %s130, %s144
      %p146 = scmp.eq.s32.totalorder %s16, 0
      %p147 = por %p145, %p146
      %s148 = ssub.s32 %s17, %s36
      %s149 = ssub.s32 %s18, %s32
      %s150 = sor.u32 %s148, %s149
      %s151 = ssub.s32 %s19, %s28
      %s152 = sor.u32 %s150, %s151
      %p153 = scmp.eq.s32.totalorder %s152, 0
      %s155 = sadd.s32 %s154, 1
      %s156 = scalar_select %p153, %s154, %s155
      %p159 = pneg %p153
      %p160 = scmp.eq.s32.totalorder %s10, 3
      %p161 = por %p159, %p160
      %p162 = scmp.ne.s32.totalorder %s154, %s157
      %p163 = scmp.eq.s32.totalorder %s10, 0
      %p164 = por %p162, %p163
      %p165 = scmp.ne.s32.totalorder %s154, %s157
      %p166 = scmp.eq.s32.totalorder %s15, 3
      %p167 = por %p165, %p166
      %p168 = scmp.ne.s32.totalorder %s157, %s158
      %p169 = scmp.eq.s32.totalorder %s15, 0
      %p170 = por %p168, %p169
      %p171 = scmp.ne.s32.totalorder %s157, %s158
      %p172 = scmp.eq.s32.totalorder %s16, 3
      %p173 = por %p171, %p172
      %p175 = scmp.ne.s32.totalorder %s158, %s174
      %p176 = scmp.eq.s32.totalorder %s16, 0
      %p177 = por %p175, %p176
      %p178 = scmp.le.s32.totalorder 1, %s10
      %p179 = scmp.lt.s32.totalorder %s10, 5
      %p180 = pnand %p178, %p179
      %p181 = pneg %p180
      // Predicated region
      $region9: #{tpu_custom_call.1} parent=5 // pred_check
        _
      $region10: #{tpu_custom_call.1} parent=5 // pred_check_branch
        %183 = sbr.rel (%p180) target = $region12
      $region11: #{tpu_custom_call.1} parent=5 // pred_region
        %s184 = ssub.s32 %s10, 1
        // Predicated region
        $region13: #{tpu_custom_call.1} parent=11 // pred_check
          %p185 = pneg %p140
        $region14: #{tpu_custom_call.1} parent=11 // pred_check_branch
          %187 = sbr.rel (%p185) target = $region16
        $region15: #{tpu_custom_call.1} parent=11 // pred_region
          _
        $region16: #{tpu_custom_call.1} parent=11 // pred_fallthru
          _
      $region12: #{tpu_custom_call.1} parent=5 // pred_fallthru
        _
      %p188 = scmp.lt.s32.totalorder %s10, 4
      // Predicated region
      $region17: #{tpu_custom_call.1} parent=5 // pred_check
        %p189 = pneg %p188
      $region18: #{tpu_custom_call.1} parent=5 // pred_check_branch
        %191 = sbr.rel (%p189) target = $region20
      $region19: #{tpu_custom_call.1} parent=5 // pred_region
        // Predicated region
        $region21: #{tpu_custom_call.1} parent=19 // pred_check
          %p192 = pneg %p53
        $region22: #{tpu_custom_call.1} parent=19 // pred_check_branch
          %194 = sbr.rel (%p192) target = $region24
        $region23: #{tpu_custom_call.1} parent=19 // pred_region
          %s195 = sand.u32 %s43, 1
          %s196 = sand.u32 %s43, 1
          %s197 = smul.addr %s196, 256
          %s198 = scalar_lea.vmem [#allocation3], %s197
          %s199 = smul.u32 2, %s18
          %s200 = smul.u32 16, %s19
          %s201 = smul.addr %s199, 32
          %s202 = sadd.s32 %s200, %s201
          %s203 = smul.addr %s17, 64
          %s204 = sadd.s32 %s202, %s203
          %s205 = smul.addr %s204, 8
          %s206 = scalar_lea.vmem %s0, %s205
          // Predicated region
          $region25: #{tpu_custom_call.1} parent=23 // pred_check
            _
          $region26: #{tpu_custom_call.1} parent=23 // pred_check_branch
            %208 = sbr.rel (0) target = $region28
          $region27: #{tpu_custom_call.1} parent=23 // pred_region
            // Predicated region
            $region29: #{tpu_custom_call.1} parent=27 // pred_check
              _
            $region30: #{tpu_custom_call.1} parent=27 // pred_check_branch
              %210 = sbr.rel (0) target = $region32
            $region31: #{tpu_custom_call.1} parent=27 // pred_region
              // Predicated region
              $region44: #{tpu_custom_call.1} parent=31 // pred_check
                _
              $region45: #{tpu_custom_call.1} parent=31 // pred_check_branch
                %288 = sbr.rel (0) target = $region47
              $region46: #{tpu_custom_call.1} parent=31 // pred_region
                loop: start=0, step=1, limit=1
                $region48: #{tpu_custom_call.1} parent=46 // loop_pre_header
                  _
                $region49: #{tpu_custom_call.1} parent=46 // loop_header
                  %s290 = sphi 0, %s294
                  %p291 = scmp.ge.s32.totalorder %s290, 1
                  %s295 = sphi %s206, %s206
                  %s296 = sphi %s198, %s198
                $region50: #{tpu_custom_call.1} parent=46 // loop_header_branch
                  %293 = sbr.rel (%p291) target = $region54
                $region51: #{tpu_custom_call.1} parent=46 // loop_body
                  %v297 = vld [vmem:[%s295] sm:$0xff]
                  %298 = vst [vmem:[%s296] sm:$0xff] %v297
                  %v299 = vld [vmem:[%s295 + $0x8] sm:$0xff]
                  %300 = vst [vmem:[%s296 + $0x8] sm:$0xff] %v299
                  %v301 = vld [vmem:[%s295 + $0x10] sm:$0xff]
                  %302 = vst [vmem:[%s296 + $0x10] sm:$0xff] %v301
                  %v303 = vld [vmem:[%s295 + $0x18] sm:$0xff]
                  %304 = vst [vmem:[%s296 + $0x18] sm:$0xff] %v303
                  %v305 = vld [vmem:[%s295 + $0x20] sm:$0xff]
                  %306 = vst [vmem:[%s296 + $0x20] sm:$0xff] %v305
                  %v307 = vld [vmem:[%s295 + $0x28] sm:$0xff]
                  %308 = vst [vmem:[%s296 + $0x28] sm:$0xff] %v307
                  %v309 = vld [vmem:[%s295 + $0x30] sm:$0xff]
                  %310 = vst [vmem:[%s296 + $0x30] sm:$0xff] %v309
                  %v311 = vld [vmem:[%s295 + $0x38] sm:$0xff]
                  %312 = vst [vmem:[%s296 + $0x38] sm:$0xff] %v311
                  %v313 = vld [vmem:[%s295 + $0x40] sm:$0xff]
                  %314 = vst [vmem:[%s296 + $0x40] sm:$0xff] %v313
                  %v315 = vld [vmem:[%s295 + $0x48] sm:$0xff]
                  %316 = vst [vmem:[%s296 + $0x48] sm:$0xff] %v315
                  %v317 = vld [vmem:[%s295 + $0x50] sm:$0xff]
                  %318 = vst [vmem:[%s296 + $0x50] sm:$0xff] %v317
                  %v319 = vld [vmem:[%s295 + $0x58] sm:$0xff]
                  %320 = vst [vmem:[%s296 + $0x58] sm:$0xff] %v319
                  %v321 = vld [vmem:[%s295 + $0x60] sm:$0xff]
                  %322 = vst [vmem:[%s296 + $0x60] sm:$0xff] %v321
                  %v323 = vld [vmem:[%s295 + $0x68] sm:$0xff]
                  %324 = vst [vmem:[%s296 + $0x68] sm:$0xff] %v323
                  %v325 = vld [vmem:[%s295 + $0x70] sm:$0xff]
                  %326 = vst [vmem:[%s296 + $0x70] sm:$0xff] %v325
                  %v327 = vld [vmem:[%s295 + $0x78] sm:$0xff]
                  %328 = vst [vmem:[%s296 + $0x78] sm:$0xff] %v327
                  %v329 = vld [vmem:[%s295 + $0x100] sm:$0xff]
                  %330 = vst [vmem:[%s296 + $0x80] sm:$0xff] %v329
                  %v331 = vld [vmem:[%s295 + $0x108] sm:$0xff]
                  %332 = vst [vmem:[%s296 + $0x88] sm:$0xff] %v331
                  %v333 = vld [vmem:[%s295 + $0x110] sm:$0xff]
                  %334 = vst [vmem:[%s296 + $0x90] sm:$0xff] %v333
                  %v335 = vld [vmem:[%s295 + $0x118] sm:$0xff]
                  %336 = vst [vmem:[%s296 + $0x98] sm:$0xff] %v335
                  %v337 = vld [vmem:[%s295 + $0x120] sm:$0xff]
                  %338 = vst [vmem:[%s296 + $0xa0] sm:$0xff] %v337
                  %v339 = vld [vmem:[%s295 + $0x128] sm:$0xff]
                  %340 = vst [vmem:[%s296 + $0xa8] sm:$0xff] %v339
                  %v341 = vld [vmem:[%s295 + $0x130] sm:$0xff]
                  %342 = vst [vmem:[%s296 + $0xb0] sm:$0xff] %v341
                  %v343 = vld [vmem:[%s295 + $0x138] sm:$0xff]
                  %344 = vst [vmem:[%s296 + $0xb8] sm:$0xff] %v343
                  %v345 = vld [vmem:[%s295 + $0x140] sm:$0xff]
                  %346 = vst [vmem:[%s296 + $0xc0] sm:$0xff] %v345
                  %v347 = vld [vmem:[%s295 + $0x148] sm:$0xff]
                  %348 = vst [vmem:[%s296 + $0xc8] sm:$0xff] %v347
                  %v349 = vld [vmem:[%s295 + $0x150] sm:$0xff]
                  %350 = vst [vmem:[%s296 + $0xd0] sm:$0xff] %v349
                  %v351 = vld [vmem:[%s295 + $0x158] sm:$0xff]
                  %352 = vst [vmem:[%s296 + $0xd8] sm:$0xff] %v351
                  %v353 = vld [vmem:[%s295 + $0x160] sm:$0xff]
                  %354 = vst [vmem:[%s296 + $0xe0] sm:$0xff] %v353
                  %v355 = vld [vmem:[%s295 + $0x168] sm:$0xff]
                  %356 = vst [vmem:[%s296 + $0xe8] sm:$0xff] %v355
                  %v357 = vld [vmem:[%s295 + $0x170] sm:$0xff]
                  %358 = vst [vmem:[%s296 + $0xf0] sm:$0xff] %v357
                  %v359 = vld [vmem:[%s295 + $0x178] sm:$0xff]
                  %360 = vst [vmem:[%s296 + $0xf8] sm:$0xff] %v359
                $region52: #{tpu_custom_call.1} parent=46 // loop_footer
                  %s294 = sadd.s32 1, %s290
                $region53: #{tpu_custom_call.1} parent=46 // loop_footer_branch
                  %289 = sbr.rel target = $region49
                $region54: #{tpu_custom_call.1} parent=46 // loop_exit
                  _
              $region47: #{tpu_custom_call.1} parent=31 // pred_fallthru
                _
              // Predicated region
              $region55: #{tpu_custom_call.1} parent=31 // pred_check
                _
              $region56: #{tpu_custom_call.1} parent=31 // pred_check_branch
                %362 = sbr.rel target = $region58
              $region57: #{tpu_custom_call.1} parent=31 // pred_region
                _
              $region58: #{tpu_custom_call.1} parent=31 // pred_fallthru
                _
            $region32: #{tpu_custom_call.1} parent=27 // pred_fallthru
              _
            // Predicated region
            $region33: #{tpu_custom_call.1} parent=27 // pred_check
              _
            $region34: #{tpu_custom_call.1} parent=27 // pred_check_branch
              %212 = sbr.rel target = $region36
            $region35: #{tpu_custom_call.1} parent=27 // pred_region
              %s214 = ssub.s32 256, 1
              loop: start=0, step=1, limit=1
              $region37: #{tpu_custom_call.1} parent=35 // loop_pre_header
                _
              $region38: #{tpu_custom_call.1} parent=35 // loop_header
                %s216 = sphi 0, %s220
                %p217 = scmp.ge.s32.totalorder %s216, 1
                %s221 = sphi %s206, %s206
                %s222 = sphi %s198, %s198
              $region39: #{tpu_custom_call.1} parent=35 // loop_header_branch
                %219 = sbr.rel (%p217) target = $region43
              $region40: #{tpu_custom_call.1} parent=35 // loop_body
                %v223 = vld [vmem:[%s221] sm:%s214]
                %224 = vst [vmem:[%s222] sm:%s214] %v223
                %v225 = vld [vmem:[%s221 + $0x8] sm:%s214]
                %226 = vst [vmem:[%s222 + $0x8] sm:%s214] %v225
                %v227 = vld [vmem:[%s221 + $0x10] sm:%s214]
                %228 = vst [vmem:[%s222 + $0x10] sm:%s214] %v227
                %v229 = vld [vmem:[%s221 + $0x18] sm:%s214]
                %230 = vst [vmem:[%s222 + $0x18] sm:%s214] %v229
                %v231 = vld [vmem:[%s221 + $0x20] sm:%s214]
                %232 = vst [vmem:[%s222 + $0x20] sm:%s214] %v231
                %v233 = vld [vmem:[%s221 + $0x28] sm:%s214]
                %234 = vst [vmem:[%s222 + $0x28] sm:%s214] %v233
                %v235 = vld [vmem:[%s221 + $0x30] sm:%s214]
                %236 = vst [vmem:[%s222 + $0x30] sm:%s214] %v235
                %v237 = vld [vmem:[%s221 + $0x38] sm:%s214]
                %238 = vst [vmem:[%s222 + $0x38] sm:%s214] %v237
                %v239 = vld [vmem:[%s221 + $0x40] sm:%s214]
                %240 = vst [vmem:[%s222 + $0x40] sm:%s214] %v239
                %v241 = vld [vmem:[%s221 + $0x48] sm:%s214]
                %242 = vst [vmem:[%s222 + $0x48] sm:%s214] %v241
                %v243 = vld [vmem:[%s221 + $0x50] sm:%s214]
                %244 = vst [vmem:[%s222 + $0x50] sm:%s214] %v243
                %v245 = vld [vmem:[%s221 + $0x58] sm:%s214]
                %246 = vst [vmem:[%s222 + $0x58] sm:%s214] %v245
                %v247 = vld [vmem:[%s221 + $0x60] sm:%s214]
                %248 = vst [vmem:[%s222 + $0x60] sm:%s214] %v247
                %v249 = vld [vmem:[%s221 + $0x68] sm:%s214]
                %250 = vst [vmem:[%s222 + $0x68] sm:%s214] %v249
                %v251 = vld [vmem:[%s221 + $0x70] sm:%s214]
                %252 = vst [vmem:[%s222 + $0x70] sm:%s214] %v251
                %v253 = vld [vmem:[%s221 + $0x78] sm:%s214]
                %254 = vst [vmem:[%s222 + $0x78] sm:%s214] %v253
                %v255 = vld [vmem:[%s221 + $0x100] sm:%s214]
                %256 = vst [vmem:[%s222 + $0x80] sm:%s214] %v255
                %v257 = vld [vmem:[%s221 + $0x108] sm:%s214]
                %258 = vst [vmem:[%s222 + $0x88] sm:%s214] %v257
                %v259 = vld [vmem:[%s221 + $0x110] sm:%s214]
                %260 = vst [vmem:[%s222 + $0x90] sm:%s214] %v259
                %v261 = vld [vmem:[%s221 + $0x118] sm:%s214]
                %262 = vst [vmem:[%s222 + $0x98] sm:%s214] %v261
                %v263 = vld [vmem:[%s221 + $0x120] sm:%s214]
                %264 = vst [vmem:[%s222 + $0xa0] sm:%s214] %v263
                %v265 = vld [vmem:[%s221 + $0x128] sm:%s214]
                %266 = vst [vmem:[%s222 + $0xa8] sm:%s214] %v265
                %v267 = vld [vmem:[%s221 + $0x130] sm:%s214]
                %268 = vst [vmem:[%s222 + $0xb0] sm:%s214] %v267
                %v269 = vld [vmem:[%s221 + $0x138] sm:%s214]
                %270 = vst [vmem:[%s222 + $0xb8] sm:%s214] %v269
                %v271 = vld [vmem:[%s221 + $0x140] sm:%s214]
                %272 = vst [vmem:[%s222 + $0xc0] sm:%s214] %v271
                %v273 = vld [vmem:[%s221 + $0x148] sm:%s214]
                %274 = vst [vmem:[%s222 + $0xc8] sm:%s214] %v273
                %v275 = vld [vmem:[%s221 + $0x150] sm:%s214]
                %276 = vst [vmem:[%s222 + $0xd0] sm:%s214] %v275
                %v277 = vld [vmem:[%s221 + $0x158] sm:%s214]
                %278 = vst [vmem:[%s222 + $0xd8] sm:%s214] %v277
                %v279 = vld [vmem:[%s221 + $0x160] sm:%s214]
                %280 = vst [vmem:[%s222 + $0xe0] sm:%s214] %v279
                %v281 = vld [vmem:[%s221 + $0x168] sm:%s214]
                %282 = vst [vmem:[%s222 + $0xe8] sm:%s214] %v281
                %v283 = vld [vmem:[%s221 + $0x170] sm:%s214]
                %284 = vst [vmem:[%s222 + $0xf0] sm:%s214] %v283
                %v285 = vld [vmem:[%s221 + $0x178] sm:%s214]
                %286 = vst [vmem:[%s222 + $0xf8] sm:%s214] %v285
              $region41: #{tpu_custom_call.1} parent=35 // loop_footer
                %s220 = sadd.s32 1, %s216
              $region42: #{tpu_custom_call.1} parent=35 // loop_footer_branch
                %215 = sbr.rel target = $region38
              $region43: #{tpu_custom_call.1} parent=35 // loop_exit
                _
            $region36: #{tpu_custom_call.1} parent=27 // pred_fallthru
              _
          $region28: #{tpu_custom_call.1} parent=23 // pred_fallthru
            _
          %363 = vnop
        $region24: #{tpu_custom_call.1} parent=19 // pred_fallthru
          _
        // Predicated region
        $region59: #{tpu_custom_call.1} parent=19 // pred_check
          %p364 = pneg %p83
        $region60: #{tpu_custom_call.1} parent=19 // pred_check_branch
          %366 = sbr.rel (%p364) target = $region62
        $region61: #{tpu_custom_call.1} parent=19 // pred_region
          %s367 = sand.u32 %s73, 1
          %s368 = sand.u32 %s73, 1
          %s369 = smul.addr %s368, 256
          %s370 = scalar_lea.vmem [#allocation4], %s369
          %s371 = smul.u32 2, %s18
          %s372 = smul.u32 16, %s19
          %s373 = smul.addr %s371, 32
          %s374 = sadd.s32 %s372, %s373
          %s375 = smul.addr %s17, 64
          %s376 = sadd.s32 %s374, %s375
          %s377 = smul.addr %s376, 8
          %s378 = scalar_lea.vmem %s1, %s377
          // Predicated region
          $region63: #{tpu_custom_call.1} parent=61 // pred_check
            _
          $region64: #{tpu_custom_call.1} parent=61 // pred_check_branch
            %380 = sbr.rel (0) target = $region66
          $region65: #{tpu_custom_call.1} parent=61 // pred_region
            // Predicated region
            $region67: #{tpu_custom_call.1} parent=65 // pred_check
              _
            $region68: #{tpu_custom_call.1} parent=65 // pred_check_branch
              %382 = sbr.rel (0) target = $region70
            $region69: #{tpu_custom_call.1} parent=65 // pred_region
              // Predicated region
              $region82: #{tpu_custom_call.1} parent=69 // pred_check
                _
              $region83: #{tpu_custom_call.1} parent=69 // pred_check_branch
                %460 = sbr.rel (0) target = $region85
              $region84: #{tpu_custom_call.1} parent=69 // pred_region
                loop: start=0, step=1, limit=1
                $region86: #{tpu_custom_call.1} parent=84 // loop_pre_header
                  _
                $region87: #{tpu_custom_call.1} parent=84 // loop_header
                  %s462 = sphi 0, %s466
                  %p463 = scmp.ge.s32.totalorder %s462, 1
                  %s467 = sphi %s378, %s378
                  %s468 = sphi %s370, %s370
                $region88: #{tpu_custom_call.1} parent=84 // loop_header_branch
                  %465 = sbr.rel (%p463) target = $region92
                $region89: #{tpu_custom_call.1} parent=84 // loop_body
                  %v469 = vld [vmem:[%s467] sm:$0xff]
                  %470 = vst [vmem:[%s468] sm:$0xff] %v469
                  %v471 = vld [vmem:[%s467 + $0x8] sm:$0xff]
                  %472 = vst [vmem:[%s468 + $0x8] sm:$0xff] %v471
                  %v473 = vld [vmem:[%s467 + $0x10] sm:$0xff]
                  %474 = vst [vmem:[%s468 + $0x10] sm:$0xff] %v473
                  %v475 = vld [vmem:[%s467 + $0x18] sm:$0xff]
                  %476 = vst [vmem:[%s468 + $0x18] sm:$0xff] %v475
                  %v477 = vld [vmem:[%s467 + $0x20] sm:$0xff]
                  %478 = vst [vmem:[%s468 + $0x20] sm:$0xff] %v477
                  %v479 = vld [vmem:[%s467 + $0x28] sm:$0xff]
                  %480 = vst [vmem:[%s468 + $0x28] sm:$0xff] %v479
                  %v481 = vld [vmem:[%s467 + $0x30] sm:$0xff]
                  %482 = vst [vmem:[%s468 + $0x30] sm:$0xff] %v481
                  %v483 = vld [vmem:[%s467 + $0x38] sm:$0xff]
                  %484 = vst [vmem:[%s468 + $0x38] sm:$0xff] %v483
                  %v485 = vld [vmem:[%s467 + $0x40] sm:$0xff]
                  %486 = vst [vmem:[%s468 + $0x40] sm:$0xff] %v485
                  %v487 = vld [vmem:[%s467 + $0x48] sm:$0xff]
                  %488 = vst [vmem:[%s468 + $0x48] sm:$0xff] %v487
                  %v489 = vld [vmem:[%s467 + $0x50] sm:$0xff]
                  %490 = vst [vmem:[%s468 + $0x50] sm:$0xff] %v489
                  %v491 = vld [vmem:[%s467 + $0x58] sm:$0xff]
                  %492 = vst [vmem:[%s468 + $0x58] sm:$0xff] %v491
                  %v493 = vld [vmem:[%s467 + $0x60] sm:$0xff]
                  %494 = vst [vmem:[%s468 + $0x60] sm:$0xff] %v493
                  %v495 = vld [vmem:[%s467 + $0x68] sm:$0xff]
                  %496 = vst [vmem:[%s468 + $0x68] sm:$0xff] %v495
                  %v497 = vld [vmem:[%s467 + $0x70] sm:$0xff]
                  %498 = vst [vmem:[%s468 + $0x70] sm:$0xff] %v497
                  %v499 = vld [vmem:[%s467 + $0x78] sm:$0xff]
                  %500 = vst [vmem:[%s468 + $0x78] sm:$0xff] %v499
                  %v501 = vld [vmem:[%s467 + $0x100] sm:$0xff]
                  %502 = vst [vmem:[%s468 + $0x80] sm:$0xff] %v501
                  %v503 = vld [vmem:[%s467 + $0x108] sm:$0xff]
                  %504 = vst [vmem:[%s468 + $0x88] sm:$0xff] %v503
                  %v505 = vld [vmem:[%s467 + $0x110] sm:$0xff]
                  %506 = vst [vmem:[%s468 + $0x90] sm:$0xff] %v505
                  %v507 = vld [vmem:[%s467 + $0x118] sm:$0xff]
                  %508 = vst [vmem:[%s468 + $0x98] sm:$0xff] %v507
                  %v509 = vld [vmem:[%s467 + $0x120] sm:$0xff]
                  %510 = vst [vmem:[%s468 + $0xa0] sm:$0xff] %v509
                  %v511 = vld [vmem:[%s467 + $0x128] sm:$0xff]
                  %512 = vst [vmem:[%s468 + $0xa8] sm:$0xff] %v511
                  %v513 = vld [vmem:[%s467 + $0x130] sm:$0xff]
                  %514 = vst [vmem:[%s468 + $0xb0] sm:$0xff] %v513
                  %v515 = vld [vmem:[%s467 + $0x138] sm:$0xff]
                  %516 = vst [vmem:[%s468 + $0xb8] sm:$0xff] %v515
                  %v517 = vld [vmem:[%s467 + $0x140] sm:$0xff]
                  %518 = vst [vmem:[%s468 + $0xc0] sm:$0xff] %v517
                  %v519 = vld [vmem:[%s467 + $0x148] sm:$0xff]
                  %520 = vst [vmem:[%s468 + $0xc8] sm:$0xff] %v519
                  %v521 = vld [vmem:[%s467 + $0x150] sm:$0xff]
                  %522 = vst [vmem:[%s468 + $0xd0] sm:$0xff] %v521
                  %v523 = vld [vmem:[%s467 + $0x158] sm:$0xff]
                  %524 = vst [vmem:[%s468 + $0xd8] sm:$0xff] %v523
                  %v525 = vld [vmem:[%s467 + $0x160] sm:$0xff]
                  %526 = vst [vmem:[%s468 + $0xe0] sm:$0xff] %v525
                  %v527 = vld [vmem:[%s467 + $0x168] sm:$0xff]
                  %528 = vst [vmem:[%s468 + $0xe8] sm:$0xff] %v527
                  %v529 = vld [vmem:[%s467 + $0x170] sm:$0xff]
                  %530 = vst [vmem:[%s468 + $0xf0] sm:$0xff] %v529
                  %v531 = vld [vmem:[%s467 + $0x178] sm:$0xff]
                  %532 = vst [vmem:[%s468 + $0xf8] sm:$0xff] %v531
                $region90: #{tpu_custom_call.1} parent=84 // loop_footer
                  %s466 = sadd.s32 1, %s462
                $region91: #{tpu_custom_call.1} parent=84 // loop_footer_branch
                  %461 = sbr.rel target = $region87
                $region92: #{tpu_custom_call.1} parent=84 // loop_exit
                  _
              $region85: #{tpu_custom_call.1} parent=69 // pred_fallthru
                _
              // Predicated region
              $region93: #{tpu_custom_call.1} parent=69 // pred_check
                _
              $region94: #{tpu_custom_call.1} parent=69 // pred_check_branch
                %534 = sbr.rel target = $region96
              $region95: #{tpu_custom_call.1} parent=69 // pred_region
                _
              $region96: #{tpu_custom_call.1} parent=69 // pred_fallthru
                _
            $region70: #{tpu_custom_call.1} parent=65 // pred_fallthru
              _
            // Predicated region
            $region71: #{tpu_custom_call.1} parent=65 // pred_check
              _
            $region72: #{tpu_custom_call.1} parent=65 // pred_check_branch
              %384 = sbr.rel target = $region74
            $region73: #{tpu_custom_call.1} parent=65 // pred_region
              %s386 = ssub.s32 256, 1
              loop: start=0, step=1, limit=1
              $region75: #{tpu_custom_call.1} parent=73 // loop_pre_header
                _
              $region76: #{tpu_custom_call.1} parent=73 // loop_header
                %s388 = sphi 0, %s392
                %p389 = scmp.ge.s32.totalorder %s388, 1
                %s393 = sphi %s378, %s378
                %s394 = sphi %s370, %s370
              $region77: #{tpu_custom_call.1} parent=73 // loop_header_branch
                %391 = sbr.rel (%p389) target = $region81
              $region78: #{tpu_custom_call.1} parent=73 // loop_body
                %v395 = vld [vmem:[%s393] sm:%s386]
                %396 = vst [vmem:[%s394] sm:%s386] %v395
                %v397 = vld [vmem:[%s393 + $0x8] sm:%s386]
                %398 = vst [vmem:[%s394 + $0x8] sm:%s386] %v397
                %v399 = vld [vmem:[%s393 + $0x10] sm:%s386]
                %400 = vst [vmem:[%s394 + $0x10] sm:%s386] %v399
                %v401 = vld [vmem:[%s393 + $0x18] sm:%s386]
                %402 = vst [vmem:[%s394 + $0x18] sm:%s386] %v401
                %v403 = vld [vmem:[%s393 + $0x20] sm:%s386]
                %404 = vst [vmem:[%s394 + $0x20] sm:%s386] %v403
                %v405 = vld [vmem:[%s393 + $0x28] sm:%s386]
                %406 = vst [vmem:[%s394 + $0x28] sm:%s386] %v405
                %v407 = vld [vmem:[%s393 + $0x30] sm:%s386]
                %408 = vst [vmem:[%s394 + $0x30] sm:%s386] %v407
                %v409 = vld [vmem:[%s393 + $0x38] sm:%s386]
                %410 = vst [vmem:[%s394 + $0x38] sm:%s386] %v409
                %v411 = vld [vmem:[%s393 + $0x40] sm:%s386]
                %412 = vst [vmem:[%s394 + $0x40] sm:%s386] %v411
                %v413 = vld [vmem:[%s393 + $0x48] sm:%s386]
                %414 = vst [vmem:[%s394 + $0x48] sm:%s386] %v413
                %v415 = vld [vmem:[%s393 + $0x50] sm:%s386]
                %416 = vst [vmem:[%s394 + $0x50] sm:%s386] %v415
                %v417 = vld [vmem:[%s393 + $0x58] sm:%s386]
                %418 = vst [vmem:[%s394 + $0x58] sm:%s386] %v417
                %v419 = vld [vmem:[%s393 + $0x60] sm:%s386]
                %420 = vst [vmem:[%s394 + $0x60] sm:%s386] %v419
                %v421 = vld [vmem:[%s393 + $0x68] sm:%s386]
                %422 = vst [vmem:[%s394 + $0x68] sm:%s386] %v421
                %v423 = vld [vmem:[%s393 + $0x70] sm:%s386]
                %424 = vst [vmem:[%s394 + $0x70] sm:%s386] %v423
                %v425 = vld [vmem:[%s393 + $0x78] sm:%s386]
                %426 = vst [vmem:[%s394 + $0x78] sm:%s386] %v425
                %v427 = vld [vmem:[%s393 + $0x100] sm:%s386]
                %428 = vst [vmem:[%s394 + $0x80] sm:%s386] %v427
                %v429 = vld [vmem:[%s393 + $0x108] sm:%s386]
                %430 = vst [vmem:[%s394 + $0x88] sm:%s386] %v429
                %v431 = vld [vmem:[%s393 + $0x110] sm:%s386]
                %432 = vst [vmem:[%s394 + $0x90] sm:%s386] %v431
                %v433 = vld [vmem:[%s393 + $0x118] sm:%s386]
                %434 = vst [vmem:[%s394 + $0x98] sm:%s386] %v433
                %v435 = vld [vmem:[%s393 + $0x120] sm:%s386]
                %436 = vst [vmem:[%s394 + $0xa0] sm:%s386] %v435
                %v437 = vld [vmem:[%s393 + $0x128] sm:%s386]
                %438 = vst [vmem:[%s394 + $0xa8] sm:%s386] %v437
                %v439 = vld [vmem:[%s393 + $0x130] sm:%s386]
                %440 = vst [vmem:[%s394 + $0xb0] sm:%s386] %v439
                %v441 = vld [vmem:[%s393 + $0x138] sm:%s386]
                %442 = vst [vmem:[%s394 + $0xb8] sm:%s386] %v441
                %v443 = vld [vmem:[%s393 + $0x140] sm:%s386]
                %444 = vst [vmem:[%s394 + $0xc0] sm:%s386] %v443
                %v445 = vld [vmem:[%s393 + $0x148] sm:%s386]
                %446 = vst [vmem:[%s394 + $0xc8] sm:%s386] %v445
                %v447 = vld [vmem:[%s393 + $0x150] sm:%s386]
                %448 = vst [vmem:[%s394 + $0xd0] sm:%s386] %v447
                %v449 = vld [vmem:[%s393 + $0x158] sm:%s386]
                %450 = vst [vmem:[%s394 + $0xd8] sm:%s386] %v449
                %v451 = vld [vmem:[%s393 + $0x160] sm:%s386]
                %452 = vst [vmem:[%s394 + $0xe0] sm:%s386] %v451
                %v453 = vld [vmem:[%s393 + $0x168] sm:%s386]
                %454 = vst [vmem:[%s394 + $0xe8] sm:%s386] %v453
                %v455 = vld [vmem:[%s393 + $0x170] sm:%s386]
                %456 = vst [vmem:[%s394 + $0xf0] sm:%s386] %v455
                %v457 = vld [vmem:[%s393 + $0x178] sm:%s386]
                %458 = vst [vmem:[%s394 + $0xf8] sm:%s386] %v457
              $region79: #{tpu_custom_call.1} parent=73 // loop_footer
                %s392 = sadd.s32 1, %s388
              $region80: #{tpu_custom_call.1} parent=73 // loop_footer_branch
                %387 = sbr.rel target = $region76
              $region81: #{tpu_custom_call.1} parent=73 // loop_exit
                _
            $region74: #{tpu_custom_call.1} parent=65 // pred_fallthru
              _
          $region66: #{tpu_custom_call.1} parent=61 // pred_fallthru
            _
          %535 = vnop
        $region62: #{tpu_custom_call.1} parent=19 // pred_fallthru
          _
        // Predicated region
        $region97: #{tpu_custom_call.1} parent=19 // pred_check
          %p536 = pneg %p113
        $region98: #{tpu_custom_call.1} parent=19 // pred_check_branch
          %538 = sbr.rel (%p536) target = $region100
        $region99: #{tpu_custom_call.1} parent=19 // pred_region
          %s539 = sand.u32 %s103, 1
          %s540 = sand.u32 %s103, 1
          %s541 = smul.addr %s540, 256
          %s542 = scalar_lea.vmem [#allocation5], %s541
          %s543 = smul.u32 2, %s18
          %s544 = smul.u32 16, %s19
          %s545 = smul.addr %s543, 32
          %s546 = sadd.s32 %s544, %s545
          %s547 = smul.addr %s17, 64
          %s548 = sadd.s32 %s546, %s547
          %s549 = smul.addr %s548, 8
          %s550 = scalar_lea.vmem %s2, %s549
          // Predicated region
          $region101: #{tpu_custom_call.1} parent=99 // pred_check
            _
          $region102: #{tpu_custom_call.1} parent=99 // pred_check_branch
            %552 = sbr.rel (0) target = $region104
          $region103: #{tpu_custom_call.1} parent=99 // pred_region
            // Predicated region
            $region105: #{tpu_custom_call.1} parent=103 // pred_check
              _
            $region106: #{tpu_custom_call.1} parent=103 // pred_check_branch
              %554 = sbr.rel (0) target = $region108
            $region107: #{tpu_custom_call.1} parent=103 // pred_region
              // Predicated region
              $region120: #{tpu_custom_call.1} parent=107 // pred_check
                _
              $region121: #{tpu_custom_call.1} parent=107 // pred_check_branch
                %632 = sbr.rel (0) target = $region123
              $region122: #{tpu_custom_call.1} parent=107 // pred_region
                loop: start=0, step=1, limit=1
                $region124: #{tpu_custom_call.1} parent=122 // loop_pre_header
                  _
                $region125: #{tpu_custom_call.1} parent=122 // loop_header
                  %s634 = sphi 0, %s638
                  %p635 = scmp.ge.s32.totalorder %s634, 1
                  %s639 = sphi %s550, %s550
                  %s640 = sphi %s542, %s542
                $region126: #{tpu_custom_call.1} parent=122 // loop_header_branch
                  %637 = sbr.rel (%p635) target = $region130
                $region127: #{tpu_custom_call.1} parent=122 // loop_body
                  %v641 = vld [vmem:[%s639] sm:$0xff]
                  %642 = vst [vmem:[%s640] sm:$0xff] %v641
                  %v643 = vld [vmem:[%s639 + $0x8] sm:$0xff]
                  %644 = vst [vmem:[%s640 + $0x8] sm:$0xff] %v643
                  %v645 = vld [vmem:[%s639 + $0x10] sm:$0xff]
                  %646 = vst [vmem:[%s640 + $0x10] sm:$0xff] %v645
                  %v647 = vld [vmem:[%s639 + $0x18] sm:$0xff]
                  %648 = vst [vmem:[%s640 + $0x18] sm:$0xff] %v647
                  %v649 = vld [vmem:[%s639 + $0x20] sm:$0xff]
                  %650 = vst [vmem:[%s640 + $0x20] sm:$0xff] %v649
                  %v651 = vld [vmem:[%s639 + $0x28] sm:$0xff]
                  %652 = vst [vmem:[%s640 + $0x28] sm:$0xff] %v651
                  %v653 = vld [vmem:[%s639 + $0x30] sm:$0xff]
                  %654 = vst [vmem:[%s640 + $0x30] sm:$0xff] %v653
                  %v655 = vld [vmem:[%s639 + $0x38] sm:$0xff]
                  %656 = vst [vmem:[%s640 + $0x38] sm:$0xff] %v655
                  %v657 = vld [vmem:[%s639 + $0x40] sm:$0xff]
                  %658 = vst [vmem:[%s640 + $0x40] sm:$0xff] %v657
                  %v659 = vld [vmem:[%s639 + $0x48] sm:$0xff]
                  %660 = vst [vmem:[%s640 + $0x48] sm:$0xff] %v659
                  %v661 = vld [vmem:[%s639 + $0x50] sm:$0xff]
                  %662 = vst [vmem:[%s640 + $0x50] sm:$0xff] %v661
                  %v663 = vld [vmem:[%s639 + $0x58] sm:$0xff]
                  %664 = vst [vmem:[%s640 + $0x58] sm:$0xff] %v663
                  %v665 = vld [vmem:[%s639 + $0x60] sm:$0xff]
                  %666 = vst [vmem:[%s640 + $0x60] sm:$0xff] %v665
                  %v667 = vld [vmem:[%s639 + $0x68] sm:$0xff]
                  %668 = vst [vmem:[%s640 + $0x68] sm:$0xff] %v667
                  %v669 = vld [vmem:[%s639 + $0x70] sm:$0xff]
                  %670 = vst [vmem:[%s640 + $0x70] sm:$0xff] %v669
                  %v671 = vld [vmem:[%s639 + $0x78] sm:$0xff]
                  %672 = vst [vmem:[%s640 + $0x78] sm:$0xff] %v671
                  %v673 = vld [vmem:[%s639 + $0x100] sm:$0xff]
                  %674 = vst [vmem:[%s640 + $0x80] sm:$0xff] %v673
                  %v675 = vld [vmem:[%s639 + $0x108] sm:$0xff]
                  %676 = vst [vmem:[%s640 + $0x88] sm:$0xff] %v675
                  %v677 = vld [vmem:[%s639 + $0x110] sm:$0xff]
                  %678 = vst [vmem:[%s640 + $0x90] sm:$0xff] %v677
                  %v679 = vld [vmem:[%s639 + $0x118] sm:$0xff]
                  %680 = vst [vmem:[%s640 + $0x98] sm:$0xff] %v679
                  %v681 = vld [vmem:[%s639 + $0x120] sm:$0xff]
                  %682 = vst [vmem:[%s640 + $0xa0] sm:$0xff] %v681
                  %v683 = vld [vmem:[%s639 + $0x128] sm:$0xff]
                  %684 = vst [vmem:[%s640 + $0xa8] sm:$0xff] %v683
                  %v685 = vld [vmem:[%s639 + $0x130] sm:$0xff]
                  %686 = vst [vmem:[%s640 + $0xb0] sm:$0xff] %v685
                  %v687 = vld [vmem:[%s639 + $0x138] sm:$0xff]
                  %688 = vst [vmem:[%s640 + $0xb8] sm:$0xff] %v687
                  %v689 = vld [vmem:[%s639 + $0x140] sm:$0xff]
                  %690 = vst [vmem:[%s640 + $0xc0] sm:$0xff] %v689
                  %v691 = vld [vmem:[%s639 + $0x148] sm:$0xff]
                  %692 = vst [vmem:[%s640 + $0xc8] sm:$0xff] %v691
                  %v693 = vld [vmem:[%s639 + $0x150] sm:$0xff]
                  %694 = vst [vmem:[%s640 + $0xd0] sm:$0xff] %v693
                  %v695 = vld [vmem:[%s639 + $0x158] sm:$0xff]
                  %696 = vst [vmem:[%s640 + $0xd8] sm:$0xff] %v695
                  %v697 = vld [vmem:[%s639 + $0x160] sm:$0xff]
                  %698 = vst [vmem:[%s640 + $0xe0] sm:$0xff] %v697
                  %v699 = vld [vmem:[%s639 + $0x168] sm:$0xff]
                  %700 = vst [vmem:[%s640 + $0xe8] sm:$0xff] %v699
                  %v701 = vld [vmem:[%s639 + $0x170] sm:$0xff]
                  %702 = vst [vmem:[%s640 + $0xf0] sm:$0xff] %v701
                  %v703 = vld [vmem:[%s639 + $0x178] sm:$0xff]
                  %704 = vst [vmem:[%s640 + $0xf8] sm:$0xff] %v703
                $region128: #{tpu_custom_call.1} parent=122 // loop_footer
                  %s638 = sadd.s32 1, %s634
                $region129: #{tpu_custom_call.1} parent=122 // loop_footer_branch
                  %633 = sbr.rel target = $region125
                $region130: #{tpu_custom_call.1} parent=122 // loop_exit
                  _
              $region123: #{tpu_custom_call.1} parent=107 // pred_fallthru
                _
              // Predicated region
              $region131: #{tpu_custom_call.1} parent=107 // pred_check
                _
              $region132: #{tpu_custom_call.1} parent=107 // pred_check_branch
                %706 = sbr.rel target = $region134
              $region133: #{tpu_custom_call.1} parent=107 // pred_region
                _
              $region134: #{tpu_custom_call.1} parent=107 // pred_fallthru
                _
            $region108: #{tpu_custom_call.1} parent=103 // pred_fallthru
              _
            // Predicated region
            $region109: #{tpu_custom_call.1} parent=103 // pred_check
              _
            $region110: #{tpu_custom_call.1} parent=103 // pred_check_branch
              %556 = sbr.rel target = $region112
            $region111: #{tpu_custom_call.1} parent=103 // pred_region
              %s558 = ssub.s32 256, 1
              loop: start=0, step=1, limit=1
              $region113: #{tpu_custom_call.1} parent=111 // loop_pre_header
                _
              $region114: #{tpu_custom_call.1} parent=111 // loop_header
                %s560 = sphi 0, %s564
                %p561 = scmp.ge.s32.totalorder %s560, 1
                %s565 = sphi %s550, %s550
                %s566 = sphi %s542, %s542
              $region115: #{tpu_custom_call.1} parent=111 // loop_header_branch
                %563 = sbr.rel (%p561) target = $region119
              $region116: #{tpu_custom_call.1} parent=111 // loop_body
                %v567 = vld [vmem:[%s565] sm:%s558]
                %568 = vst [vmem:[%s566] sm:%s558] %v567
                %v569 = vld [vmem:[%s565 + $0x8] sm:%s558]
                %570 = vst [vmem:[%s566 + $0x8] sm:%s558] %v569
                %v571 = vld [vmem:[%s565 + $0x10] sm:%s558]
                %572 = vst [vmem:[%s566 + $0x10] sm:%s558] %v571
                %v573 = vld [vmem:[%s565 + $0x18] sm:%s558]
                %574 = vst [vmem:[%s566 + $0x18] sm:%s558] %v573
                %v575 = vld [vmem:[%s565 + $0x20] sm:%s558]
                %576 = vst [vmem:[%s566 + $0x20] sm:%s558] %v575
                %v577 = vld [vmem:[%s565 + $0x28] sm:%s558]
                %578 = vst [vmem:[%s566 + $0x28] sm:%s558] %v577
                %v579 = vld [vmem:[%s565 + $0x30] sm:%s558]
                %580 = vst [vmem:[%s566 + $0x30] sm:%s558] %v579
                %v581 = vld [vmem:[%s565 + $0x38] sm:%s558]
                %582 = vst [vmem:[%s566 + $0x38] sm:%s558] %v581
                %v583 = vld [vmem:[%s565 + $0x40] sm:%s558]
                %584 = vst [vmem:[%s566 + $0x40] sm:%s558] %v583
                %v585 = vld [vmem:[%s565 + $0x48] sm:%s558]
                %586 = vst [vmem:[%s566 + $0x48] sm:%s558] %v585
                %v587 = vld [vmem:[%s565 + $0x50] sm:%s558]
                %588 = vst [vmem:[%s566 + $0x50] sm:%s558] %v587
                %v589 = vld [vmem:[%s565 + $0x58] sm:%s558]
                %590 = vst [vmem:[%s566 + $0x58] sm:%s558] %v589
                %v591 = vld [vmem:[%s565 + $0x60] sm:%s558]
                %592 = vst [vmem:[%s566 + $0x60] sm:%s558] %v591
                %v593 = vld [vmem:[%s565 + $0x68] sm:%s558]
                %594 = vst [vmem:[%s566 + $0x68] sm:%s558] %v593
                %v595 = vld [vmem:[%s565 + $0x70] sm:%s558]
                %596 = vst [vmem:[%s566 + $0x70] sm:%s558] %v595
                %v597 = vld [vmem:[%s565 + $0x78] sm:%s558]
                %598 = vst [vmem:[%s566 + $0x78] sm:%s558] %v597
                %v599 = vld [vmem:[%s565 + $0x100] sm:%s558]
                %600 = vst [vmem:[%s566 + $0x80] sm:%s558] %v599
                %v601 = vld [vmem:[%s565 + $0x108] sm:%s558]
                %602 = vst [vmem:[%s566 + $0x88] sm:%s558] %v601
                %v603 = vld [vmem:[%s565 + $0x110] sm:%s558]
                %604 = vst [vmem:[%s566 + $0x90] sm:%s558] %v603
                %v605 = vld [vmem:[%s565 + $0x118] sm:%s558]
                %606 = vst [vmem:[%s566 + $0x98] sm:%s558] %v605
                %v607 = vld [vmem:[%s565 + $0x120] sm:%s558]
                %608 = vst [vmem:[%s566 + $0xa0] sm:%s558] %v607
                %v609 = vld [vmem:[%s565 + $0x128] sm:%s558]
                %610 = vst [vmem:[%s566 + $0xa8] sm:%s558] %v609
                %v611 = vld [vmem:[%s565 + $0x130] sm:%s558]
                %612 = vst [vmem:[%s566 + $0xb0] sm:%s558] %v611
                %v613 = vld [vmem:[%s565 + $0x138] sm:%s558]
                %614 = vst [vmem:[%s566 + $0xb8] sm:%s558] %v613
                %v615 = vld [vmem:[%s565 + $0x140] sm:%s558]
                %616 = vst [vmem:[%s566 + $0xc0] sm:%s558] %v615
                %v617 = vld [vmem:[%s565 + $0x148] sm:%s558]
                %618 = vst [vmem:[%s566 + $0xc8] sm:%s558] %v617
                %v619 = vld [vmem:[%s565 + $0x150] sm:%s558]
                %620 = vst [vmem:[%s566 + $0xd0] sm:%s558] %v619
                %v621 = vld [vmem:[%s565 + $0x158] sm:%s558]
                %622 = vst [vmem:[%s566 + $0xd8] sm:%s558] %v621
                %v623 = vld [vmem:[%s565 + $0x160] sm:%s558]
                %624 = vst [vmem:[%s566 + $0xe0] sm:%s558] %v623
                %v625 = vld [vmem:[%s565 + $0x168] sm:%s558]
                %626 = vst [vmem:[%s566 + $0xe8] sm:%s558] %v625
                %v627 = vld [vmem:[%s565 + $0x170] sm:%s558]
                %628 = vst [vmem:[%s566 + $0xf0] sm:%s558] %v627
                %v629 = vld [vmem:[%s565 + $0x178] sm:%s558]
                %630 = vst [vmem:[%s566 + $0xf8] sm:%s558] %v629
              $region117: #{tpu_custom_call.1} parent=111 // loop_footer
                %s564 = sadd.s32 1, %s560
              $region118: #{tpu_custom_call.1} parent=111 // loop_footer_branch
                %559 = sbr.rel target = $region114
              $region119: #{tpu_custom_call.1} parent=111 // loop_exit
                _
            $region112: #{tpu_custom_call.1} parent=103 // pred_fallthru
              _
          $region104: #{tpu_custom_call.1} parent=99 // pred_fallthru
            _
          %707 = vnop
        $region100: #{tpu_custom_call.1} parent=19 // pred_fallthru
          _
      $region20: #{tpu_custom_call.1} parent=5 // pred_fallthru
        _
      %p708 = scmp.le.s32.totalorder 1, %s10
      %p709 = scmp.lt.s32.totalorder %s10, 5
      %p710 = pnand %p708, %p709
      %p711 = pneg %p710
      // Predicated region
      $region135: #{tpu_custom_call.1} parent=5 // pred_check
        _
      $region136: #{tpu_custom_call.1} parent=5 // pred_check_branch
        %713 = sbr.rel (%p710) target = $region138
      $region137: #{tpu_custom_call.1} parent=5 // pred_region
        %s714 = ssub.s32 %s10, 1
        %s715 = sand.u32 %s46, 1
        %s716 = sand.u32 %s46, 1
        %s717 = smul.addr %s716, 256
        %s718 = scalar_lea.vmem [#allocation3], %s717
        // Predicated region
        $region139: #{tpu_custom_call.1} parent=137 // pred_check
          %p719 = pneg %p59
        $region140: #{tpu_custom_call.1} parent=137 // pred_check_branch
          %721 = sbr.rel (%p719) target = $region142
        $region141: #{tpu_custom_call.1} parent=137 // pred_region
          _
        $region142: #{tpu_custom_call.1} parent=137 // pred_fallthru
          _
        %s722 = sand.u32 %s76, 1
        %s723 = sand.u32 %s76, 1
        %s724 = smul.addr %s723, 256
        %s725 = scalar_lea.vmem [#allocation4], %s724
        // Predicated region
        $region143: #{tpu_custom_call.1} parent=137 // pred_check
          %p726 = pneg %p89
        $region144: #{tpu_custom_call.1} parent=137 // pred_check_branch
          %728 = sbr.rel (%p726) target = $region146
        $region145: #{tpu_custom_call.1} parent=137 // pred_region
          _
        $region146: #{tpu_custom_call.1} parent=137 // pred_fallthru
          _
        %s729 = sand.u32 %s106, 1
        %s730 = sand.u32 %s106, 1
        %s731 = smul.addr %s730, 256
        %s732 = scalar_lea.vmem [#allocation5], %s731
        // Predicated region
        $region147: #{tpu_custom_call.1} parent=137 // pred_check
          %p733 = pneg %p119
        $region148: #{tpu_custom_call.1} parent=137 // pred_check_branch
          %735 = sbr.rel (%p733) target = $region150
        $region149: #{tpu_custom_call.1} parent=137 // pred_region
          _
        $region150: #{tpu_custom_call.1} parent=137 // pred_fallthru
          _
        %s736 = sand.u32 %s46, 1
        %s737 = sand.u32 %s46, 1
        %s738 = smul.addr %s737, 256
        %s739 = scalar_lea.vmem [#allocation3], %s738
        %p740 = pneg %p59
        %p741 = pneg %p56
        %s742 = sand.u32 %s76, 1
        %s743 = sand.u32 %s76, 1
        %s744 = smul.addr %s743, 256
        %s745 = scalar_lea.vmem [#allocation4], %s744
        %p746 = pneg %p89
        %p747 = pneg %p86
        %s748 = sand.u32 %s106, 1
        %s749 = sand.u32 %s106, 1
        %s750 = smul.addr %s749, 256
        %s751 = scalar_lea.vmem [#allocation5], %s750
        %p752 = pneg %p119
        %p753 = pneg %p116
        %p754 = pneg %p140
        %p755 = pneg %p137
        %p756 = pneg %p170
        %p757 = pneg %p167
        %s758 = sand.u32 %s157, 1
        %s759 = sand.u32 %s157, 1
        %s760 = smul.addr %s759, 256
        %s761 = scalar_lea.vmem [#allocation6], %s760
        %s762 = smul.u32 2, %s21
        %s763 = smul.u32 16, %s22
        %s764 = smul.u32 2, %s21
        %s765 = smul.u32 16, %s22
        %s766 = smul.u32 2, %s21
        %s767 = smul.u32 16, %s22
        %s768 = smul.u32 2, %s21
        %s769 = smul.u32 16, %s22
        %p770 = scmp.eq.s32.totalorder %s22, 0
        // Predicated region
        $region151: #{tpu_custom_call.1} parent=137 // pred_check
          %p771 = pneg %p770
        $region152: #{tpu_custom_call.1} parent=137 // pred_check_branch
          %773 = sbr.rel (%p771) target = $region154
        $region153: #{tpu_custom_call.1} parent=137 // pred_region
          %774 = vst [vmem:[#allocation2] sm:$0xff] 0.0
          %775 = vst [vmem:[#allocation2 + $0x8] sm:$0xff] 0.0
          %776 = vst [vmem:[#allocation2 + $0x10] sm:$0xff] 0.0
          %777 = vst [vmem:[#allocation2 + $0x18] sm:$0xff] 0.0
          %778 = vst [vmem:[#allocation2 + $0x20] sm:$0xff] 0.0
          %779 = vst [vmem:[#allocation2 + $0x28] sm:$0xff] 0.0
          %780 = vst [vmem:[#allocation2 + $0x30] sm:$0xff] 0.0
          %781 = vst [vmem:[#allocation2 + $0x38] sm:$0xff] 0.0
          %782 = vst [vmem:[#allocation2 + $0x40] sm:$0xff] 0.0
          %783 = vst [vmem:[#allocation2 + $0x48] sm:$0xff] 0.0
          %784 = vst [vmem:[#allocation2 + $0x50] sm:$0xff] 0.0
          %785 = vst [vmem:[#allocation2 + $0x58] sm:$0xff] 0.0
          %786 = vst [vmem:[#allocation2 + $0x60] sm:$0xff] 0.0
          %787 = vst [vmem:[#allocation2 + $0x68] sm:$0xff] 0.0
          %788 = vst [vmem:[#allocation2 + $0x70] sm:$0xff] 0.0
          %789 = vst [vmem:[#allocation2 + $0x78] sm:$0xff] 0.0
          %790 = vst [vmem:[#allocation2 + $0x80] sm:$0xff] 0.0
          %791 = vst [vmem:[#allocation2 + $0x88] sm:$0xff] 0.0
          %792 = vst [vmem:[#allocation2 + $0x90] sm:$0xff] 0.0
          %793 = vst [vmem:[#allocation2 + $0x98] sm:$0xff] 0.0
          %794 = vst [vmem:[#allocation2 + $0xa0] sm:$0xff] 0.0
          %795 = vst [vmem:[#allocation2 + $0xa8] sm:$0xff] 0.0
          %796 = vst [vmem:[#allocation2 + $0xb0] sm:$0xff] 0.0
          %797 = vst [vmem:[#allocation2 + $0xb8] sm:$0xff] 0.0
          %798 = vst [vmem:[#allocation2 + $0xc0] sm:$0xff] 0.0
          %799 = vst [vmem:[#allocation2 + $0xc8] sm:$0xff] 0.0
          %800 = vst [vmem:[#allocation2 + $0xd0] sm:$0xff] 0.0
          %801 = vst [vmem:[#allocation2 + $0xd8] sm:$0xff] 0.0
          %802 = vst [vmem:[#allocation2 + $0xe0] sm:$0xff] 0.0
          %803 = vst [vmem:[#allocation2 + $0xe8] sm:$0xff] 0.0
          %804 = vst [vmem:[#allocation2 + $0xf0] sm:$0xff] 0.0
          %805 = vst [vmem:[#allocation2 + $0xf8] sm:$0xff] 0.0
        $region154: #{tpu_custom_call.1} parent=137 // pred_fallthru
          _
        %v806 = vld [vmem:[%s3] sm:$0xff]
        %v807 = vld [vmem:[%s3 + $0x8] sm:$0xff]
        %v808 = vld [vmem:[%s718] sm:$0xff]
        %v809 = vld [vmem:[%s718 + $0x8] sm:$0xff]
        %v810 = vld [vmem:[%s718 + $0x10] sm:$0xff]
        %v811 = vld [vmem:[%s718 + $0x18] sm:$0xff]
        %v812 = vld [vmem:[%s718 + $0x20] sm:$0xff]
        %v813 = vld [vmem:[%s718 + $0x28] sm:$0xff]
        %v814 = vld [vmem:[%s718 + $0x30] sm:$0xff]
        %v815 = vld [vmem:[%s718 + $0x38] sm:$0xff]
        %v816 = vld [vmem:[%s718 + $0x40] sm:$0xff]
        %v817 = vld [vmem:[%s718 + $0x48] sm:$0xff]
        %v818 = vld [vmem:[%s718 + $0x50] sm:$0xff]
        %v819 = vld [vmem:[%s718 + $0x58] sm:$0xff]
        %v820 = vld [vmem:[%s718 + $0x60] sm:$0xff]
        %v821 = vld [vmem:[%s718 + $0x68] sm:$0xff]
        %v822 = vld [vmem:[%s718 + $0x70] sm:$0xff]
        %v823 = vld [vmem:[%s718 + $0x78] sm:$0xff]
        %v824 = vld [vmem:[%s718 + $0x80] sm:$0xff]
        %v825 = vld [vmem:[%s718 + $0x88] sm:$0xff]
        %v826 = vld [vmem:[%s718 + $0x90] sm:$0xff]
        %v827 = vld [vmem:[%s718 + $0x98] sm:$0xff]
        %v828 = vld [vmem:[%s718 + $0xa0] sm:$0xff]
        %v829 = vld [vmem:[%s718 + $0xa8] sm:$0xff]
        %v830 = vld [vmem:[%s718 + $0xb0] sm:$0xff]
        %v831 = vld [vmem:[%s718 + $0xb8] sm:$0xff]
        %v832 = vld [vmem:[%s718 + $0xc0] sm:$0xff]
        %v833 = vld [vmem:[%s718 + $0xc8] sm:$0xff]
        %v834 = vld [vmem:[%s718 + $0xd0] sm:$0xff]
        %v835 = vld [vmem:[%s718 + $0xd8] sm:$0xff]
        %v836 = vld [vmem:[%s718 + $0xe0] sm:$0xff]
        %v837 = vld [vmem:[%s718 + $0xe8] sm:$0xff]
        %v838 = vld [vmem:[%s718 + $0xf0] sm:$0xff]
        %v839 = vld [vmem:[%s718 + $0xf8] sm:$0xff]
        %vm840 = vcmask 130048
        %v842 = vsel %vm840, %v808, 0
        %v845 = vsel %vm840, %v809, 0
        %v848 = vsel %vm840, %v810, 0
        %v851 = vsel %vm840, %v811, 0
        %v854 = vsel %vm840, %v812, 0
        %v857 = vsel %vm840, %v813, 0
        %v860 = vsel %vm840, %v814, 0
        %v863 = vsel %vm840, %v815, 0
        %v866 = vsel %vm840, %v816, 0
        %v869 = vsel %vm840, %v817, 0
        %v872 = vsel %vm840, %v818, 0
        %v875 = vsel %vm840, %v819, 0
        %v878 = vsel %vm840, %v820, 0
        %v881 = vsel %vm840, %v821, 0
        %v884 = vsel %vm840, %v822, 0
        %v887 = vsel %vm840, %v823, 0
        %v890 = vsel %vm840, %v824, 0
        %v893 = vsel %vm840, %v825, 0
        %v896 = vsel %vm840, %v826, 0
        %v899 = vsel %vm840, %v827, 0
        %v902 = vsel %vm840, %v828, 0
        %v905 = vsel %vm840, %v829, 0
        %v908 = vsel %vm840, %v830, 0
        %v911 = vsel %vm840, %v831, 0
        %v914 = vsel %vm840, %v832, 0
        %v917 = vsel %vm840, %v833, 0
        %v920 = vsel %vm840, %v834, 0
        %v923 = vsel %vm840, %v835, 0
        %v926 = vsel %vm840, %v836, 0
        %v929 = vsel %vm840, %v837, 0
        %v932 = vsel %vm840, %v838, 0
        %v935 = vsel %vm840, %v839, 0
        %937 = vmatprep.subr.mxu0 0.0
        %938 = vmatpush1.msra.mxu0 0.0
        %939 = vmatprep.subr.mxu0 0.0
        %940 = vmatpush1.msra.mxu0 0.0
        %941 = vmatprep.subr.mxu0 0.0
        %942 = vmatpush1.msra.mxu0 0.0
        %943 = vmatprep.subr.mxu0 0.0
        %944 = vmatpush1.msra.mxu0 0.0
        %945 = vmatprep.subr.mxu0 0.0
        %946 = vmatpush1.msra.mxu0 0.0
        %947 = vmatprep.subr.mxu0 0.0
        %948 = vmatpush1.msra.mxu0 0.0
        %949 = vmatprep.subr.mxu0 0.0
        %950 = vmatpush1.msra.mxu0 0.0
        %951 = vmatprep.subr.mxu0 0.0
        %952 = vmatpush1.msra.mxu0 0.0
        %953 = vmatprep.subr.mxu0 0.0
        %954 = vmatpush1.msra.mxu0 0.0
        %955 = vmatprep.subr.mxu0 0.0
        %956 = vmatpush1.msra.mxu0 0.0
        %957 = vmatprep.subr.mxu0 0.0
        %958 = vmatpush1.msra.mxu0 0.0
        %959 = vmatprep.subr.mxu0 0.0
        %960 = vmatpush1.msra.mxu0 0.0
        %961 = vmatprep.subr.mxu0 0.0
        %962 = vmatpush1.msra.mxu0 0.0
        %963 = vmatprep.subr.mxu0 0.0
        %964 = vmatpush1.msra.mxu0 0.0
        %965 = vmatprep.subr.mxu0 0.0
        %966 = vmatpush1.msra.mxu0 %v807
        %967 = vmatprep.subr.mxu0 0.0
        %968 = vmatpush1.msra.mxu0 %v806
        %969 = vmatprep.subr.mxu0 0.0
        %970 = vmatpush2.msra.mxu0 0.0
        %971 = vmatprep.subr.mxu0 0.0
        %972 = vmatpush2.msra.mxu0 0.0
        %973 = vmatprep.subr.mxu0 0.0
        %974 = vmatpush2.msra.mxu0 0.0
        %975 = vmatprep.subr.mxu0 0.0
        %976 = vmatpush2.msra.mxu0 0.0
        %977 = vmatprep.subr.mxu0 0.0
        %978 = vmatpush2.msra.mxu0 0.0
        %979 = vmatprep.subr.mxu0 0.0
        %980 = vmatpush2.msra.mxu0 0.0
        %981 = vmatprep.subr.mxu0 0.0
        %982 = vmatpush2.msra.mxu0 0.0
        %983 = vmatprep.subr.mxu0 0.0
        %984 = vmatpush2.msra.mxu0 0.0
        %985 = vmatprep.subr.mxu0 0.0
        %986 = vmatpush2.msra.mxu0 0.0
        %987 = vmatprep.subr.mxu0 0.0
        %988 = vmatpush2.msra.mxu0 0.0
        %989 = vmatprep.subr.mxu0 0.0
        %990 = vmatpush2.msra.mxu0 0.0
        %991 = vmatprep.subr.mxu0 0.0
        %992 = vmatpush2.msra.mxu0 0.0
        %993 = vmatprep.subr.mxu0 0.0
        %994 = vmatpush2.msra.mxu0 0.0
        %995 = vmatprep.subr.mxu0 0.0
        %996 = vmatpush2.msra.mxu0 0.0
        %997 = vmatprep.subr.mxu0 0.0
        %998 = vmatpush2.msra.mxu0 0.0
        %999 = vmatprep.subr.mxu0 0.0
        %1000 = vmatpush2.msra.mxu0 0.0
        %1001 = vmatprep.mubr.f32.mxu0 0.0
        %1002 = vmatmul.mubr.f32.gmra.mxu0 %v842
        %v1003 = vpop.f32.mrf.mxu0
        %v1004 = vadd.f32 0.0, %v1003
        %v1005 = vpop.f32.mrf.mxu0
        %1006 = vmatprep.mubr.f32.mxu0 0.0
        %1007 = vmatmul.mubr.f32.gmra.mxu0 %v845
        %v1008 = vpop.f32.mrf.mxu0
        %v1009 = vadd.f32 0.0, %v1008
        %v1010 = vpop.f32.mrf.mxu0
        %1011 = vmatprep.mubr.f32.mxu0 0.0
        %1012 = vmatmul.mubr.f32.gmra.mxu0 %v848
        %v1013 = vpop.f32.mrf.mxu0
        %v1014 = vadd.f32 0.0, %v1013
        %v1015 = vpop.f32.mrf.mxu0
        %1016 = vmatprep.mubr.f32.mxu0 0.0
        %1017 = vmatmul.mubr.f32.gmra.mxu0 %v851
        %v1018 = vpop.f32.mrf.mxu0
        %v1019 = vadd.f32 0.0, %v1018
        %v1020 = vpop.f32.mrf.mxu0
        %1021 = vmatprep.mubr.f32.mxu0 0.0
        %1022 = vmatmul.mubr.f32.gmra.mxu0 %v854
        %v1023 = vpop.f32.mrf.mxu0
        %v1024 = vadd.f32 0.0, %v1023
        %v1025 = vpop.f32.mrf.mxu0
        %1026 = vmatprep.mubr.f32.mxu0 0.0
        %1027 = vmatmul.mubr.f32.gmra.mxu0 %v857
        %v1028 = vpop.f32.mrf.mxu0
        %v1029 = vadd.f32 0.0, %v1028
        %v1030 = vpop.f32.mrf.mxu0
        %1031 = vmatprep.mubr.f32.mxu0 0.0
        %1032 = vmatmul.mubr.f32.gmra.mxu0 %v860
        %v1033 = vpop.f32.mrf.mxu0
        %v1034 = vadd.f32 0.0, %v1033
        %v1035 = vpop.f32.mrf.mxu0
        %1036 = vmatprep.mubr.f32.mxu0 0.0
        %1037 = vmatmul.mubr.f32.gmra.mxu0 %v863
        %v1038 = vpop.f32.mrf.mxu0
        %v1039 = vadd.f32 0.0, %v1038
        %v1040 = vpop.f32.mrf.mxu0
        %1041 = vmatprep.mubr.f32.mxu0 0.0
        %1042 = vmatmul.mubr.f32.gmra.mxu0 %v866
        %v1043 = vpop.f32.mrf.mxu0
        %v1044 = vadd.f32 0.0, %v1043
        %v1045 = vpop.f32.mrf.mxu0
        %1046 = vmatprep.mubr.f32.mxu0 0.0
        %1047 = vmatmul.mubr.f32.gmra.mxu0 %v869
        %v1048 = vpop.f32.mrf.mxu0
        %v1049 = vadd.f32 0.0, %v1048
        %v1050 = vpop.f32.mrf.mxu0
        %1051 = vmatprep.mubr.f32.mxu0 0.0
        %1052 = vmatmul.mubr.f32.gmra.mxu0 %v872
        %v1053 = vpop.f32.mrf.mxu0
        %v1054 = vadd.f32 0.0, %v1053
        %v1055 = vpop.f32.mrf.mxu0
        %1056 = vmatprep.mubr.f32.mxu0 0.0
        %1057 = vmatmul.mubr.f32.gmra.mxu0 %v875
        %v1058 = vpop.f32.mrf.mxu0
        %v1059 = vadd.f32 0.0, %v1058
        %v1060 = vpop.f32.mrf.mxu0
        %1061 = vmatprep.mubr.f32.mxu0 0.0
        %1062 = vmatmul.mubr.f32.gmra.mxu0 %v878
        %v1063 = vpop.f32.mrf.mxu0
        %v1064 = vadd.f32 0.0, %v1063
        %v1065 = vpop.f32.mrf.mxu0
        %1066 = vmatprep.mubr.f32.mxu0 0.0
        %1067 = vmatmul.mubr.f32.gmra.mxu0 %v881
        %v1068 = vpop.f32.mrf.mxu0
        %v1069 = vadd.f32 0.0, %v1068
        %v1070 = vpop.f32.mrf.mxu0
        %1071 = vmatprep.mubr.f32.mxu0 0.0
        %1072 = vmatmul.mubr.f32.gmra.mxu0 %v884
        %v1073 = vpop.f32.mrf.mxu0
        %v1074 = vadd.f32 0.0, %v1073
        %v1075 = vpop.f32.mrf.mxu0
        %1076 = vmatprep.mubr.f32.mxu0 0.0
        %1077 = vmatmul.mubr.f32.gmra.mxu0 %v887
        %v1078 = vpop.f32.mrf.mxu0
        %v1079 = vadd.f32 0.0, %v1078
        %v1080 = vpop.f32.mrf.mxu0
        %1081 = vmatprep.mubr.f32.mxu0 0.0
        %1082 = vmatmul.mubr.f32.gmra.mxu0 %v890
        %v1083 = vpop.f32.mrf.mxu0
        %v1084 = vadd.f32 0.0, %v1083
        %v1085 = vpop.f32.mrf.mxu0
        %1086 = vmatprep.mubr.f32.mxu0 0.0
        %1087 = vmatmul.mubr.f32.gmra.mxu0 %v893
        %v1088 = vpop.f32.mrf.mxu0
        %v1089 = vadd.f32 0.0, %v1088
        %v1090 = vpop.f32.mrf.mxu0
        %1091 = vmatprep.mubr.f32.mxu0 0.0
        %1092 = vmatmul.mubr.f32.gmra.mxu0 %v896
        %v1093 = vpop.f32.mrf.mxu0
        %v1094 = vadd.f32 0.0, %v1093
        %v1095 = vpop.f32.mrf.mxu0
        %1096 = vmatprep.mubr.f32.mxu0 0.0
        %1097 = vmatmul.mubr.f32.gmra.mxu0 %v899
        %v1098 = vpop.f32.mrf.mxu0
        %v1099 = vadd.f32 0.0, %v1098
        %v1100 = vpop.f32.mrf.mxu0
        %1101 = vmatprep.mubr.f32.mxu0 0.0
        %1102 = vmatmul.mubr.f32.gmra.mxu0 %v902
        %v1103 = vpop.f32.mrf.mxu0
        %v1104 = vadd.f32 0.0, %v1103
        %v1105 = vpop.f32.mrf.mxu0
        %1106 = vmatprep.mubr.f32.mxu0 0.0
        %1107 = vmatmul.mubr.f32.gmra.mxu0 %v905
        %v1108 = vpop.f32.mrf.mxu0
        %v1109 = vadd.f32 0.0, %v1108
        %v1110 = vpop.f32.mrf.mxu0
        %1111 = vmatprep.mubr.f32.mxu0 0.0
        %1112 = vmatmul.mubr.f32.gmra.mxu0 %v908
        %v1113 = vpop.f32.mrf.mxu0
        %v1114 = vadd.f32 0.0, %v1113
        %v1115 = vpop.f32.mrf.mxu0
        %1116 = vmatprep.mubr.f32.mxu0 0.0
        %1117 = vmatmul.mubr.f32.gmra.mxu0 %v911
        %v1118 = vpop.f32.mrf.mxu0
        %v1119 = vadd.f32 0.0, %v1118
        %v1120 = vpop.f32.mrf.mxu0
        %1121 = vmatprep.mubr.f32.mxu0 0.0
        %1122 = vmatmul.mubr.f32.gmra.mxu0 %v914
        %v1123 = vpop.f32.mrf.mxu0
        %v1124 = vadd.f32 0.0, %v1123
        %v1125 = vpop.f32.mrf.mxu0
        %1126 = vmatprep.mubr.f32.mxu0 0.0
        %1127 = vmatmul.mubr.f32.gmra.mxu0 %v917
        %v1128 = vpop.f32.mrf.mxu0
        %v1129 = vadd.f32 0.0, %v1128
        %v1130 = vpop.f32.mrf.mxu0
        %1131 = vmatprep.mubr.f32.mxu0 0.0
        %1132 = vmatmul.mubr.f32.gmra.mxu0 %v920
        %v1133 = vpop.f32.mrf.mxu0
        %v1134 = vadd.f32 0.0, %v1133
        %v1135 = vpop.f32.mrf.mxu0
        %1136 = vmatprep.mubr.f32.mxu0 0.0
        %1137 = vmatmul.mubr.f32.gmra.mxu0 %v923
        %v1138 = vpop.f32.mrf.mxu0
        %v1139 = vadd.f32 0.0, %v1138
        %v1140 = vpop.f32.mrf.mxu0
        %1141 = vmatprep.mubr.f32.mxu0 0.0
        %1142 = vmatmul.mubr.f32.gmra.mxu0 %v926
        %v1143 = vpop.f32.mrf.mxu0
        %v1144 = vadd.f32 0.0, %v1143
        %v1145 = vpop.f32.mrf.mxu0
        %1146 = vmatprep.mubr.f32.mxu0 0.0
        %1147 = vmatmul.mubr.f32.gmra.mxu0 %v929
        %v1148 = vpop.f32.mrf.mxu0
        %v1149 = vadd.f32 0.0, %v1148
        %v1150 = vpop.f32.mrf.mxu0
        %1151 = vmatprep.mubr.f32.mxu0 0.0
        %1152 = vmatmul.mubr.f32.gmra.mxu0 %v932
        %v1153 = vpop.f32.mrf.mxu0
        %v1154 = vadd.f32 0.0, %v1153
        %v1155 = vpop.f32.mrf.mxu0
        %1156 = vmatprep.mubr.f32.mxu0 0.0
        %1157 = vmatmul.mubr.f32.gmra.mxu0 %v935
        %v1158 = vpop.f32.mrf.mxu0
        %v1159 = vadd.f32 0.0, %v1158
        %v1160 = vpop.f32.mrf.mxu0
        %1161 = vdwg.mxu0
        %v1162 = vld [vmem:[%s725] sm:$0xff]
        %v1163 = vld [vmem:[%s725 + $0x8] sm:$0xff]
        %v1164 = vld [vmem:[%s725 + $0x10] sm:$0xff]
        %v1165 = vld [vmem:[%s725 + $0x18] sm:$0xff]
        %v1166 = vld [vmem:[%s725 + $0x20] sm:$0xff]
        %v1167 = vld [vmem:[%s725 + $0x28] sm:$0xff]
        %v1168 = vld [vmem:[%s725 + $0x30] sm:$0xff]
        %v1169 = vld [vmem:[%s725 + $0x38] sm:$0xff]
        %v1170 = vld [vmem:[%s725 + $0x40] sm:$0xff]
        %v1171 = vld [vmem:[%s725 + $0x48] sm:$0xff]
        %v1172 = vld [vmem:[%s725 + $0x50] sm:$0xff]
        %v1173 = vld [vmem:[%s725 + $0x58] sm:$0xff]
        %v1174 = vld [vmem:[%s725 + $0x60] sm:$0xff]
        %v1175 = vld [vmem:[%s725 + $0x68] sm:$0xff]
        %v1176 = vld [vmem:[%s725 + $0x70] sm:$0xff]
        %v1177 = vld [vmem:[%s725 + $0x78] sm:$0xff]
        %v1178 = vld [vmem:[%s725 + $0x80] sm:$0xff]
        %v1179 = vld [vmem:[%s725 + $0x88] sm:$0xff]
        %v1180 = vld [vmem:[%s725 + $0x90] sm:$0xff]
        %v1181 = vld [vmem:[%s725 + $0x98] sm:$0xff]
        %v1182 = vld [vmem:[%s725 + $0xa0] sm:$0xff]
        %v1183 = vld [vmem:[%s725 + $0xa8] sm:$0xff]
        %v1184 = vld [vmem:[%s725 + $0xb0] sm:$0xff]
        %v1185 = vld [vmem:[%s725 + $0xb8] sm:$0xff]
        %v1186 = vld [vmem:[%s725 + $0xc0] sm:$0xff]
        %v1187 = vld [vmem:[%s725 + $0xc8] sm:$0xff]
        %v1188 = vld [vmem:[%s725 + $0xd0] sm:$0xff]
        %v1189 = vld [vmem:[%s725 + $0xd8] sm:$0xff]
        %v1190 = vld [vmem:[%s725 + $0xe0] sm:$0xff]
        %v1191 = vld [vmem:[%s725 + $0xe8] sm:$0xff]
        %v1192 = vld [vmem:[%s725 + $0xf0] sm:$0xff]
        %v1193 = vld [vmem:[%s725 + $0xf8] sm:$0xff]
        %v1195 = vsel %vm840, %v1162, 0
        %v1198 = vsel %vm840, %v1163, 0
        %v1201 = vsel %vm840, %v1164, 0
        %v1204 = vsel %vm840, %v1165, 0
        %v1207 = vsel %vm840, %v1166, 0
        %v1210 = vsel %vm840, %v1167, 0
        %v1213 = vsel %vm840, %v1168, 0
        %v1216 = vsel %vm840, %v1169, 0
        %v1219 = vsel %vm840, %v1170, 0
        %v1222 = vsel %vm840, %v1171, 0
        %v1225 = vsel %vm840, %v1172, 0
        %v1228 = vsel %vm840, %v1173, 0
        %v1231 = vsel %vm840, %v1174, 0
        %v1234 = vsel %vm840, %v1175, 0
        %v1237 = vsel %vm840, %v1176, 0
        %v1240 = vsel %vm840, %v1177, 0
        %v1243 = vsel %vm840, %v1178, 0
        %v1246 = vsel %vm840, %v1179, 0
        %v1249 = vsel %vm840, %v1180, 0
        %v1252 = vsel %vm840, %v1181, 0
        %v1255 = vsel %vm840, %v1182, 0
        %v1258 = vsel %vm840, %v1183, 0
        %v1261 = vsel %vm840, %v1184, 0
        %v1264 = vsel %vm840, %v1185, 0
        %v1267 = vsel %vm840, %v1186, 0
        %v1270 = vsel %vm840, %v1187, 0
        %v1273 = vsel %vm840, %v1188, 0
        %v1276 = vsel %vm840, %v1189, 0
        %v1279 = vsel %vm840, %v1190, 0
        %v1282 = vsel %vm840, %v1191, 0
        %v1285 = vsel %vm840, %v1192, 0
        %v1288 = vsel %vm840, %v1193, 0
        %1290 = vmatprep.subr.mxu0 0.0
        %1291 = vmatpush1.msra.mxu0 0.0
        %1292 = vmatprep.subr.mxu0 0.0
        %1293 = vmatpush1.msra.mxu0 0.0
        %1294 = vmatprep.subr.mxu0 0.0
        %1295 = vmatpush1.msra.mxu0 0.0
        %1296 = vmatprep.subr.mxu0 0.0
        %1297 = vmatpush1.msra.mxu0 0.0
        %1298 = vmatprep.subr.mxu0 0.0
        %1299 = vmatpush1.msra.mxu0 0.0
        %1300 = vmatprep.subr.mxu0 0.0
        %1301 = vmatpush1.msra.mxu0 0.0
        %1302 = vmatprep.subr.mxu0 0.0
        %1303 = vmatpush1.msra.mxu0 0.0
        %1304 = vmatprep.subr.mxu0 0.0
        %1305 = vmatpush1.msra.mxu0 0.0
        %1306 = vmatprep.subr.mxu0 0.0
        %1307 = vmatpush1.msra.mxu0 0.0
        %1308 = vmatprep.subr.mxu0 0.0
        %1309 = vmatpush1.msra.mxu0 0.0
        %1310 = vmatprep.subr.mxu0 0.0
        %1311 = vmatpush1.msra.mxu0 0.0
        %1312 = vmatprep.subr.mxu0 0.0
        %1313 = vmatpush1.msra.mxu0 0.0
        %1314 = vmatprep.subr.mxu0 0.0
        %1315 = vmatpush1.msra.mxu0 0.0
        %1316 = vmatprep.subr.mxu0 0.0
        %1317 = vmatpush1.msra.mxu0 0.0
        %1318 = vmatprep.subr.mxu0 0.0
        %1319 = vmatpush1.msra.mxu0 %v807
        %1320 = vmatprep.subr.mxu0 0.0
        %1321 = vmatpush1.msra.mxu0 %v806
        %1322 = vmatprep.subr.mxu0 0.0
        %1323 = vmatpush2.msra.mxu0 0.0
        %1324 = vmatprep.subr.mxu0 0.0
        %1325 = vmatpush2.msra.mxu0 0.0
        %1326 = vmatprep.subr.mxu0 0.0
        %1327 = vmatpush2.msra.mxu0 0.0
        %1328 = vmatprep.subr.mxu0 0.0
        %1329 = vmatpush2.msra.mxu0 0.0
        %1330 = vmatprep.subr.mxu0 0.0
        %1331 = vmatpush2.msra.mxu0 0.0
        %1332 = vmatprep.subr.mxu0 0.0
        %1333 = vmatpush2.msra.mxu0 0.0
        %1334 = vmatprep.subr.mxu0 0.0
        %1335 = vmatpush2.msra.mxu0 0.0
        %1336 = vmatprep.subr.mxu0 0.0
        %1337 = vmatpush2.msra.mxu0 0.0
        %1338 = vmatprep.subr.mxu0 0.0
        %1339 = vmatpush2.msra.mxu0 0.0
        %1340 = vmatprep.subr.mxu0 0.0
        %1341 = vmatpush2.msra.mxu0 0.0
        %1342 = vmatprep.subr.mxu0 0.0
        %1343 = vmatpush2.msra.mxu0 0.0
        %1344 = vmatprep.subr.mxu0 0.0
        %1345 = vmatpush2.msra.mxu0 0.0
        %1346 = vmatprep.subr.mxu0 0.0
        %1347 = vmatpush2.msra.mxu0 0.0
        %1348 = vmatprep.subr.mxu0 0.0
        %1349 = vmatpush2.msra.mxu0 0.0
        %1350 = vmatprep.subr.mxu0 0.0
        %1351 = vmatpush2.msra.mxu0 0.0
        %1352 = vmatprep.subr.mxu0 0.0
        %1353 = vmatpush2.msra.mxu0 0.0
        %1354 = vmatprep.mubr.f32.mxu0 0.0
        %1355 = vmatmul.mubr.f32.gmra.mxu0 %v1195
        %v1356 = vpop.f32.mrf.mxu0
        %v1357 = vadd.f32 0.0, %v1356
        %v1358 = vpop.f32.mrf.mxu0
        %1359 = vmatprep.mubr.f32.mxu0 0.0
        %1360 = vmatmul.mubr.f32.gmra.mxu0 %v1198
        %v1361 = vpop.f32.mrf.mxu0
        %v1362 = vadd.f32 0.0, %v1361
        %v1363 = vpop.f32.mrf.mxu0
        %1364 = vmatprep.mubr.f32.mxu0 0.0
        %1365 = vmatmul.mubr.f32.gmra.mxu0 %v1201
        %v1366 = vpop.f32.mrf.mxu0
        %v1367 = vadd.f32 0.0, %v1366
        %v1368 = vpop.f32.mrf.mxu0
        %1369 = vmatprep.mubr.f32.mxu0 0.0
        %1370 = vmatmul.mubr.f32.gmra.mxu0 %v1204
        %v1371 = vpop.f32.mrf.mxu0
        %v1372 = vadd.f32 0.0, %v1371
        %v1373 = vpop.f32.mrf.mxu0
        %1374 = vmatprep.mubr.f32.mxu0 0.0
        %1375 = vmatmul.mubr.f32.gmra.mxu0 %v1207
        %v1376 = vpop.f32.mrf.mxu0
        %v1377 = vadd.f32 0.0, %v1376
        %v1378 = vpop.f32.mrf.mxu0
        %1379 = vmatprep.mubr.f32.mxu0 0.0
        %1380 = vmatmul.mubr.f32.gmra.mxu0 %v1210
        %v1381 = vpop.f32.mrf.mxu0
        %v1382 = vadd.f32 0.0, %v1381
        %v1383 = vpop.f32.mrf.mxu0
        %1384 = vmatprep.mubr.f32.mxu0 0.0
        %1385 = vmatmul.mubr.f32.gmra.mxu0 %v1213
        %v1386 = vpop.f32.mrf.mxu0
        %v1387 = vadd.f32 0.0, %v1386
        %v1388 = vpop.f32.mrf.mxu0
        %1389 = vmatprep.mubr.f32.mxu0 0.0
        %1390 = vmatmul.mubr.f32.gmra.mxu0 %v1216
        %v1391 = vpop.f32.mrf.mxu0
        %v1392 = vadd.f32 0.0, %v1391
        %v1393 = vpop.f32.mrf.mxu0
        %1394 = vmatprep.mubr.f32.mxu0 0.0
        %1395 = vmatmul.mubr.f32.gmra.mxu0 %v1219
        %v1396 = vpop.f32.mrf.mxu0
        %v1397 = vadd.f32 0.0, %v1396
        %v1398 = vpop.f32.mrf.mxu0
        %1399 = vmatprep.mubr.f32.mxu0 0.0
        %1400 = vmatmul.mubr.f32.gmra.mxu0 %v1222
        %v1401 = vpop.f32.mrf.mxu0
        %v1402 = vadd.f32 0.0, %v1401
        %v1403 = vpop.f32.mrf.mxu0
        %1404 = vmatprep.mubr.f32.mxu0 0.0
        %1405 = vmatmul.mubr.f32.gmra.mxu0 %v1225
        %v1406 = vpop.f32.mrf.mxu0
        %v1407 = vadd.f32 0.0, %v1406
        %v1408 = vpop.f32.mrf.mxu0
        %1409 = vmatprep.mubr.f32.mxu0 0.0
        %1410 = vmatmul.mubr.f32.gmra.mxu0 %v1228
        %v1411 = vpop.f32.mrf.mxu0
        %v1412 = vadd.f32 0.0, %v1411
        %v1413 = vpop.f32.mrf.mxu0
        %1414 = vmatprep.mubr.f32.mxu0 0.0
        %1415 = vmatmul.mubr.f32.gmra.mxu0 %v1231
        %v1416 = vpop.f32.mrf.mxu0
        %v1417 = vadd.f32 0.0, %v1416
        %v1418 = vpop.f32.mrf.mxu0
        %1419 = vmatprep.mubr.f32.mxu0 0.0
        %1420 = vmatmul.mubr.f32.gmra.mxu0 %v1234
        %v1421 = vpop.f32.mrf.mxu0
        %v1422 = vadd.f32 0.0, %v1421
        %v1423 = vpop.f32.mrf.mxu0
        %1424 = vmatprep.mubr.f32.mxu0 0.0
        %1425 = vmatmul.mubr.f32.gmra.mxu0 %v1237
        %v1426 = vpop.f32.mrf.mxu0
        %v1427 = vadd.f32 0.0, %v1426
        %v1428 = vpop.f32.mrf.mxu0
        %1429 = vmatprep.mubr.f32.mxu0 0.0
        %1430 = vmatmul.mubr.f32.gmra.mxu0 %v1240
        %v1431 = vpop.f32.mrf.mxu0
        %v1432 = vadd.f32 0.0, %v1431
        %v1433 = vpop.f32.mrf.mxu0
        %1434 = vmatprep.mubr.f32.mxu0 0.0
        %1435 = vmatmul.mubr.f32.gmra.mxu0 %v1243
        %v1436 = vpop.f32.mrf.mxu0
        %v1437 = vadd.f32 0.0, %v1436
        %v1438 = vpop.f32.mrf.mxu0
        %1439 = vmatprep.mubr.f32.mxu0 0.0
        %1440 = vmatmul.mubr.f32.gmra.mxu0 %v1246
        %v1441 = vpop.f32.mrf.mxu0
        %v1442 = vadd.f32 0.0, %v1441
        %v1443 = vpop.f32.mrf.mxu0
        %1444 = vmatprep.mubr.f32.mxu0 0.0
        %1445 = vmatmul.mubr.f32.gmra.mxu0 %v1249
        %v1446 = vpop.f32.mrf.mxu0
        %v1447 = vadd.f32 0.0, %v1446
        %v1448 = vpop.f32.mrf.mxu0
        %1449 = vmatprep.mubr.f32.mxu0 0.0
        %1450 = vmatmul.mubr.f32.gmra.mxu0 %v1252
        %v1451 = vpop.f32.mrf.mxu0
        %v1452 = vadd.f32 0.0, %v1451
        %v1453 = vpop.f32.mrf.mxu0
        %1454 = vmatprep.mubr.f32.mxu0 0.0
        %1455 = vmatmul.mubr.f32.gmra.mxu0 %v1255
        %v1456 = vpop.f32.mrf.mxu0
        %v1457 = vadd.f32 0.0, %v1456
        %v1458 = vpop.f32.mrf.mxu0
        %1459 = vmatprep.mubr.f32.mxu0 0.0
        %1460 = vmatmul.mubr.f32.gmra.mxu0 %v1258
        %v1461 = vpop.f32.mrf.mxu0
        %v1462 = vadd.f32 0.0, %v1461
        %v1463 = vpop.f32.mrf.mxu0
        %1464 = vmatprep.mubr.f32.mxu0 0.0
        %1465 = vmatmul.mubr.f32.gmra.mxu0 %v1261
        %v1466 = vpop.f32.mrf.mxu0
        %v1467 = vadd.f32 0.0, %v1466
        %v1468 = vpop.f32.mrf.mxu0
        %1469 = vmatprep.mubr.f32.mxu0 0.0
        %1470 = vmatmul.mubr.f32.gmra.mxu0 %v1264
        %v1471 = vpop.f32.mrf.mxu0
        %v1472 = vadd.f32 0.0, %v1471
        %v1473 = vpop.f32.mrf.mxu0
        %1474 = vmatprep.mubr.f32.mxu0 0.0
        %1475 = vmatmul.mubr.f32.gmra.mxu0 %v1267
        %v1476 = vpop.f32.mrf.mxu0
        %v1477 = vadd.f32 0.0, %v1476
        %v1478 = vpop.f32.mrf.mxu0
        %1479 = vmatprep.mubr.f32.mxu0 0.0
        %1480 = vmatmul.mubr.f32.gmra.mxu0 %v1270
        %v1481 = vpop.f32.mrf.mxu0
        %v1482 = vadd.f32 0.0, %v1481
        %v1483 = vpop.f32.mrf.mxu0
        %1484 = vmatprep.mubr.f32.mxu0 0.0
        %1485 = vmatmul.mubr.f32.gmra.mxu0 %v1273
        %v1486 = vpop.f32.mrf.mxu0
        %v1487 = vadd.f32 0.0, %v1486
        %v1488 = vpop.f32.mrf.mxu0
        %1489 = vmatprep.mubr.f32.mxu0 0.0
        %1490 = vmatmul.mubr.f32.gmra.mxu0 %v1276
        %v1491 = vpop.f32.mrf.mxu0
        %v1492 = vadd.f32 0.0, %v1491
        %v1493 = vpop.f32.mrf.mxu0
        %1494 = vmatprep.mubr.f32.mxu0 0.0
        %1495 = vmatmul.mubr.f32.gmra.mxu0 %v1279
        %v1496 = vpop.f32.mrf.mxu0
        %v1497 = vadd.f32 0.0, %v1496
        %v1498 = vpop.f32.mrf.mxu0
        %1499 = vmatprep.mubr.f32.mxu0 0.0
        %1500 = vmatmul.mubr.f32.gmra.mxu0 %v1282
        %v1501 = vpop.f32.mrf.mxu0
        %v1502 = vadd.f32 0.0, %v1501
        %v1503 = vpop.f32.mrf.mxu0
        %1504 = vmatprep.mubr.f32.mxu0 0.0
        %1505 = vmatmul.mubr.f32.gmra.mxu0 %v1285
        %v1506 = vpop.f32.mrf.mxu0
        %v1507 = vadd.f32 0.0, %v1506
        %v1508 = vpop.f32.mrf.mxu0
        %1509 = vmatprep.mubr.f32.mxu0 0.0
        %1510 = vmatmul.mubr.f32.gmra.mxu0 %v1288
        %v1511 = vpop.f32.mrf.mxu0
        %v1512 = vadd.f32 0.0, %v1511
        %v1513 = vpop.f32.mrf.mxu0
        %1514 = vdwg.mxu0
        %v1515 = vmul.f32 %v1004, %v1004
        %v1516 = vmul.f32 %v1009, %v1009
        %v1517 = vmul.f32 %v1014, %v1014
        %v1518 = vmul.f32 %v1019, %v1019
        %v1519 = vmul.f32 %v1024, %v1024
        %v1520 = vmul.f32 %v1029, %v1029
        %v1521 = vmul.f32 %v1034, %v1034
        %v1522 = vmul.f32 %v1039, %v1039
        %v1523 = vmul.f32 %v1044, %v1044
        %v1524 = vmul.f32 %v1049, %v1049
        %v1525 = vmul.f32 %v1054, %v1054
        %v1526 = vmul.f32 %v1059, %v1059
        %v1527 = vmul.f32 %v1064, %v1064
        %v1528 = vmul.f32 %v1069, %v1069
        %v1529 = vmul.f32 %v1074, %v1074
        %v1530 = vmul.f32 %v1079, %v1079
        %v1531 = vmul.f32 %v1084, %v1084
        %v1532 = vmul.f32 %v1089, %v1089
        %v1533 = vmul.f32 %v1094, %v1094
        %v1534 = vmul.f32 %v1099, %v1099
        %v1535 = vmul.f32 %v1104, %v1104
        %v1536 = vmul.f32 %v1109, %v1109
        %v1537 = vmul.f32 %v1114, %v1114
        %v1538 = vmul.f32 %v1119, %v1119
        %v1539 = vmul.f32 %v1124, %v1124
        %v1540 = vmul.f32 %v1129, %v1129
        %v1541 = vmul.f32 %v1134, %v1134
        %v1542 = vmul.f32 %v1139, %v1139
        %v1543 = vmul.f32 %v1144, %v1144
        %v1544 = vmul.f32 %v1149, %v1149
        %v1545 = vmul.f32 %v1154, %v1154
        %v1546 = vmul.f32 %v1159, %v1159
        %v1547 = vmul.f32 %v1357, %v1357
        %v1548 = vmul.f32 %v1362, %v1362
        %v1549 = vmul.f32 %v1367, %v1367
        %v1550 = vmul.f32 %v1372, %v1372
        %v1551 = vmul.f32 %v1377, %v1377
        %v1552 = vmul.f32 %v1382, %v1382
        %v1553 = vmul.f32 %v1387, %v1387
        %v1554 = vmul.f32 %v1392, %v1392
        %v1555 = vmul.f32 %v1397, %v1397
        %v1556 = vmul.f32 %v1402, %v1402
        %v1557 = vmul.f32 %v1407, %v1407
        %v1558 = vmul.f32 %v1412, %v1412
        %v1559 = vmul.f32 %v1417, %v1417
        %v1560 = vmul.f32 %v1422, %v1422
        %v1561 = vmul.f32 %v1427, %v1427
        %v1562 = vmul.f32 %v1432, %v1432
        %v1563 = vmul.f32 %v1437, %v1437
        %v1564 = vmul.f32 %v1442, %v1442
        %v1565 = vmul.f32 %v1447, %v1447
        %v1566 = vmul.f32 %v1452, %v1452
        %v1567 = vmul.f32 %v1457, %v1457
        %v1568 = vmul.f32 %v1462, %v1462
        %v1569 = vmul.f32 %v1467, %v1467
        %v1570 = vmul.f32 %v1472, %v1472
        %v1571 = vmul.f32 %v1477, %v1477
        %v1572 = vmul.f32 %v1482, %v1482
        %v1573 = vmul.f32 %v1487, %v1487
        %v1574 = vmul.f32 %v1492, %v1492
        %v1575 = vmul.f32 %v1497, %v1497
        %v1576 = vmul.f32 %v1502, %v1502
        %v1577 = vmul.f32 %v1507, %v1507
        %v1578 = vmul.f32 %v1512, %v1512
        %v1579 = vld [vmem:[%s732] sm:$0xff]
        %v1580 = vld [vmem:[%s732 + $0x8] sm:$0xff]
        %v1581 = vld [vmem:[%s732 + $0x10] sm:$0xff]
        %v1582 = vld [vmem:[%s732 + $0x18] sm:$0xff]
        %v1583 = vld [vmem:[%s732 + $0x20] sm:$0xff]
        %v1584 = vld [vmem:[%s732 + $0x28] sm:$0xff]
        %v1585 = vld [vmem:[%s732 + $0x30] sm:$0xff]
        %v1586 = vld [vmem:[%s732 + $0x38] sm:$0xff]
        %v1587 = vld [vmem:[%s732 + $0x40] sm:$0xff]
        %v1588 = vld [vmem:[%s732 + $0x48] sm:$0xff]
        %v1589 = vld [vmem:[%s732 + $0x50] sm:$0xff]
        %v1590 = vld [vmem:[%s732 + $0x58] sm:$0xff]
        %v1591 = vld [vmem:[%s732 + $0x60] sm:$0xff]
        %v1592 = vld [vmem:[%s732 + $0x68] sm:$0xff]
        %v1593 = vld [vmem:[%s732 + $0x70] sm:$0xff]
        %v1594 = vld [vmem:[%s732 + $0x78] sm:$0xff]
        %v1595 = vld [vmem:[%s732 + $0x80] sm:$0xff]
        %v1596 = vld [vmem:[%s732 + $0x88] sm:$0xff]
        %v1597 = vld [vmem:[%s732 + $0x90] sm:$0xff]
        %v1598 = vld [vmem:[%s732 + $0x98] sm:$0xff]
        %v1599 = vld [vmem:[%s732 + $0xa0] sm:$0xff]
        %v1600 = vld [vmem:[%s732 + $0xa8] sm:$0xff]
        %v1601 = vld [vmem:[%s732 + $0xb0] sm:$0xff]
        %v1602 = vld [vmem:[%s732 + $0xb8] sm:$0xff]
        %v1603 = vld [vmem:[%s732 + $0xc0] sm:$0xff]
        %v1604 = vld [vmem:[%s732 + $0xc8] sm:$0xff]
        %v1605 = vld [vmem:[%s732 + $0xd0] sm:$0xff]
        %v1606 = vld [vmem:[%s732 + $0xd8] sm:$0xff]
        %v1607 = vld [vmem:[%s732 + $0xe0] sm:$0xff]
        %v1608 = vld [vmem:[%s732 + $0xe8] sm:$0xff]
        %v1609 = vld [vmem:[%s732 + $0xf0] sm:$0xff]
        %v1610 = vld [vmem:[%s732 + $0xf8] sm:$0xff]
        %v1611 = vld [vmem:[#allocation2] sm:$0xff]
        %v1612 = vld [vmem:[#allocation2 + $0x8] sm:$0xff]
        %v1613 = vld [vmem:[#allocation2 + $0x10] sm:$0xff]
        %v1614 = vld [vmem:[#allocation2 + $0x18] sm:$0xff]
        %v1615 = vld [vmem:[#allocation2 + $0x20] sm:$0xff]
        %v1616 = vld [vmem:[#allocation2 + $0x28] sm:$0xff]
        %v1617 = vld [vmem:[#allocation2 + $0x30] sm:$0xff]
        %v1618 = vld [vmem:[#allocation2 + $0x38] sm:$0xff]
        %v1619 = vld [vmem:[#allocation2 + $0x40] sm:$0xff]
        %v1620 = vld [vmem:[#allocation2 + $0x48] sm:$0xff]
        %v1621 = vld [vmem:[#allocation2 + $0x50] sm:$0xff]
        %v1622 = vld [vmem:[#allocation2 + $0x58] sm:$0xff]
        %v1623 = vld [vmem:[#allocation2 + $0x60] sm:$0xff]
        %v1624 = vld [vmem:[#allocation2 + $0x68] sm:$0xff]
        %v1625 = vld [vmem:[#allocation2 + $0x70] sm:$0xff]
        %v1626 = vld [vmem:[#allocation2 + $0x78] sm:$0xff]
        %v1627 = vld [vmem:[#allocation2 + $0x80] sm:$0xff]
        %v1628 = vld [vmem:[#allocation2 + $0x88] sm:$0xff]
        %v1629 = vld [vmem:[#allocation2 + $0x90] sm:$0xff]
        %v1630 = vld [vmem:[#allocation2 + $0x98] sm:$0xff]
        %v1631 = vld [vmem:[#allocation2 + $0xa0] sm:$0xff]
        %v1632 = vld [vmem:[#allocation2 + $0xa8] sm:$0xff]
        %v1633 = vld [vmem:[#allocation2 + $0xb0] sm:$0xff]
        %v1634 = vld [vmem:[#allocation2 + $0xb8] sm:$0xff]
        %v1635 = vld [vmem:[#allocation2 + $0xc0] sm:$0xff]
        %v1636 = vld [vmem:[#allocation2 + $0xc8] sm:$0xff]
        %v1637 = vld [vmem:[#allocation2 + $0xd0] sm:$0xff]
        %v1638 = vld [vmem:[#allocation2 + $0xd8] sm:$0xff]
        %v1639 = vld [vmem:[#allocation2 + $0xe0] sm:$0xff]
        %v1640 = vld [vmem:[#allocation2 + $0xe8] sm:$0xff]
        %v1641 = vld [vmem:[#allocation2 + $0xf0] sm:$0xff]
        %v1642 = vld [vmem:[#allocation2 + $0xf8] sm:$0xff]
        %1643 = vmatprep.subr.mxu0 0.0
        %1644 = vmatpush1.xpose.msra.mxu0 %v1562
        %1645 = vmatprep.subr.mxu0 0.0
        %1646 = vmatpush1.xpose.msra.mxu0 %v1561
        %1647 = vmatprep.subr.mxu0 0.0
        %1648 = vmatpush1.xpose.msra.mxu0 %v1560
        %1649 = vmatprep.subr.mxu0 0.0
        %1650 = vmatpush1.xpose.msra.mxu0 %v1559
        %1651 = vmatprep.subr.mxu0 0.0
        %1652 = vmatpush1.xpose.msra.mxu0 %v1558
        %1653 = vmatprep.subr.mxu0 0.0
        %1654 = vmatpush1.xpose.msra.mxu0 %v1557
        %1655 = vmatprep.subr.mxu0 0.0
        %1656 = vmatpush1.xpose.msra.mxu0 %v1556
        %1657 = vmatprep.subr.mxu0 0.0
        %1658 = vmatpush1.xpose.msra.mxu0 %v1555
        %1659 = vmatprep.subr.mxu0 0.0
        %1660 = vmatpush1.xpose.msra.mxu0 %v1554
        %1661 = vmatprep.subr.mxu0 0.0
        %1662 = vmatpush1.xpose.msra.mxu0 %v1553
        %1663 = vmatprep.subr.mxu0 0.0
        %1664 = vmatpush1.xpose.msra.mxu0 %v1552
        %1665 = vmatprep.subr.mxu0 0.0
        %1666 = vmatpush1.xpose.msra.mxu0 %v1551
        %1667 = vmatprep.subr.mxu0 0.0
        %1668 = vmatpush1.xpose.msra.mxu0 %v1550
        %1669 = vmatprep.subr.mxu0 0.0
        %1670 = vmatpush1.xpose.msra.mxu0 %v1549
        %1671 = vmatprep.subr.mxu0 0.0
        %1672 = vmatpush1.xpose.msra.mxu0 %v1548
        %1673 = vmatprep.subr.mxu0 0.0
        %1674 = vmatpush1.xpose.msra.mxu0 %v1547
        %1675 = vmatprep.subr.mxu0 0.0
        %1676 = vmatpush2.xpose.msra.mxu0 0.0
        %1677 = vmatprep.subr.mxu0 0.0
        %1678 = vmatpush2.xpose.msra.mxu0 0.0
        %1679 = vmatprep.subr.mxu0 0.0
        %1680 = vmatpush2.xpose.msra.mxu0 0.0
        %1681 = vmatprep.subr.mxu0 0.0
        %1682 = vmatpush2.xpose.msra.mxu0 0.0
        %1683 = vmatprep.subr.mxu0 0.0
        %1684 = vmatpush2.xpose.msra.mxu0 0.0
        %1685 = vmatprep.subr.mxu0 0.0
        %1686 = vmatpush2.xpose.msra.mxu0 0.0
        %1687 = vmatprep.subr.mxu0 0.0
        %1688 = vmatpush2.xpose.msra.mxu0 0.0
        %1689 = vmatprep.subr.mxu0 0.0
        %1690 = vmatpush2.xpose.msra.mxu0 0.0
        %1691 = vmatprep.subr.mxu0 0.0
        %1692 = vmatpush2.xpose.msra.mxu0 0.0
        %1693 = vmatprep.subr.mxu0 0.0
        %1694 = vmatpush2.xpose.msra.mxu0 0.0
        %1695 = vmatprep.subr.mxu0 0.0
        %1696 = vmatpush2.xpose.msra.mxu0 0.0
        %1697 = vmatprep.subr.mxu0 0.0
        %1698 = vmatpush2.xpose.msra.mxu0 0.0
        %1699 = vmatprep.subr.mxu0 0.0
        %1700 = vmatpush2.xpose.msra.mxu0 0.0
        %1701 = vmatprep.subr.mxu0 0.0
        %1702 = vmatpush2.xpose.msra.mxu0 0.0
        %1703 = vmatprep.subr.mxu0 0.0
        %1704 = vmatpush2.xpose.msra.mxu0 0.0
        %1705 = vmatprep.subr.mxu0 0.0
        %1706 = vmatpush2.xpose.msra.mxu0 0.0
        %1707 = vmatprep.mubr.f32.mxu0 0.0
        %1708 = vmatmul.mubr.f32.gmra.mxu0 %v1515
        %v1709 = vpop.f32.mrf.mxu0
        %v1710 = vadd.f32 0.0, %v1709
        %v1711 = vpop.f32.mrf.mxu0
        %1712 = vmatprep.mubr.f32.mxu0 0.0
        %1713 = vmatmul.mubr.f32.gmra.mxu0 %v1516
        %v1714 = vpop.f32.mrf.mxu0
        %v1715 = vadd.f32 0.0, %v1714
        %v1716 = vpop.f32.mrf.mxu0
        %1717 = vmatprep.mubr.f32.mxu0 0.0
        %1718 = vmatmul.mubr.f32.gmra.mxu0 %v1517
        %v1719 = vpop.f32.mrf.mxu0
        %v1720 = vadd.f32 0.0, %v1719
        %v1721 = vpop.f32.mrf.mxu0
        %1722 = vmatprep.mubr.f32.mxu0 0.0
        %1723 = vmatmul.mubr.f32.gmra.mxu0 %v1518
        %v1724 = vpop.f32.mrf.mxu0
        %v1725 = vadd.f32 0.0, %v1724
        %v1726 = vpop.f32.mrf.mxu0
        %1727 = vmatprep.mubr.f32.mxu0 0.0
        %1728 = vmatmul.mubr.f32.gmra.mxu0 %v1519
        %v1729 = vpop.f32.mrf.mxu0
        %v1730 = vadd.f32 0.0, %v1729
        %v1731 = vpop.f32.mrf.mxu0
        %1732 = vmatprep.mubr.f32.mxu0 0.0
        %1733 = vmatmul.mubr.f32.gmra.mxu0 %v1520
        %v1734 = vpop.f32.mrf.mxu0
        %v1735 = vadd.f32 0.0, %v1734
        %v1736 = vpop.f32.mrf.mxu0
        %1737 = vmatprep.mubr.f32.mxu0 0.0
        %1738 = vmatmul.mubr.f32.gmra.mxu0 %v1521
        %v1739 = vpop.f32.mrf.mxu0
        %v1740 = vadd.f32 0.0, %v1739
        %v1741 = vpop.f32.mrf.mxu0
        %1742 = vmatprep.mubr.f32.mxu0 0.0
        %1743 = vmatmul.mubr.f32.gmra.mxu0 %v1522
        %v1744 = vpop.f32.mrf.mxu0
        %v1745 = vadd.f32 0.0, %v1744
        %v1746 = vpop.f32.mrf.mxu0
        %1747 = vmatprep.mubr.f32.mxu0 0.0
        %1748 = vmatmul.mubr.f32.gmra.mxu0 %v1523
        %v1749 = vpop.f32.mrf.mxu0
        %v1750 = vadd.f32 0.0, %v1749
        %v1751 = vpop.f32.mrf.mxu0
        %1752 = vmatprep.mubr.f32.mxu0 0.0
        %1753 = vmatmul.mubr.f32.gmra.mxu0 %v1524
        %v1754 = vpop.f32.mrf.mxu0
        %v1755 = vadd.f32 0.0, %v1754
        %v1756 = vpop.f32.mrf.mxu0
        %1757 = vmatprep.mubr.f32.mxu0 0.0
        %1758 = vmatmul.mubr.f32.gmra.mxu0 %v1525
        %v1759 = vpop.f32.mrf.mxu0
        %v1760 = vadd.f32 0.0, %v1759
        %v1761 = vpop.f32.mrf.mxu0
        %1762 = vmatprep.mubr.f32.mxu0 0.0
        %1763 = vmatmul.mubr.f32.gmra.mxu0 %v1526
        %v1764 = vpop.f32.mrf.mxu0
        %v1765 = vadd.f32 0.0, %v1764
        %v1766 = vpop.f32.mrf.mxu0
        %1767 = vmatprep.mubr.f32.mxu0 0.0
        %1768 = vmatmul.mubr.f32.gmra.mxu0 %v1527
        %v1769 = vpop.f32.mrf.mxu0
        %v1770 = vadd.f32 0.0, %v1769
        %v1771 = vpop.f32.mrf.mxu0
        %1772 = vmatprep.mubr.f32.mxu0 0.0
        %1773 = vmatmul.mubr.f32.gmra.mxu0 %v1528
        %v1774 = vpop.f32.mrf.mxu0
        %v1775 = vadd.f32 0.0, %v1774
        %v1776 = vpop.f32.mrf.mxu0
        %1777 = vmatprep.mubr.f32.mxu0 0.0
        %1778 = vmatmul.mubr.f32.gmra.mxu0 %v1529
        %v1779 = vpop.f32.mrf.mxu0
        %v1780 = vadd.f32 0.0, %v1779
        %v1781 = vpop.f32.mrf.mxu0
        %1782 = vmatprep.mubr.f32.mxu0 0.0
        %1783 = vmatmul.mubr.f32.gmra.mxu0 %v1530
        %v1784 = vpop.f32.mrf.mxu0
        %v1785 = vadd.f32 0.0, %v1784
        %v1786 = vpop.f32.mrf.mxu0
        %1787 = vdwg.mxu0
        %1788 = vmatprep.subr.mxu0 0.0
        %1789 = vmatpush1.xpose.msra.mxu0 %v1578
        %1790 = vmatprep.subr.mxu0 0.0
        %1791 = vmatpush1.xpose.msra.mxu0 %v1577
        %1792 = vmatprep.subr.mxu0 0.0
        %1793 = vmatpush1.xpose.msra.mxu0 %v1576
        %1794 = vmatprep.subr.mxu0 0.0
        %1795 = vmatpush1.xpose.msra.mxu0 %v1575
        %1796 = vmatprep.subr.mxu0 0.0
        %1797 = vmatpush1.xpose.msra.mxu0 %v1574
        %1798 = vmatprep.subr.mxu0 0.0
        %1799 = vmatpush1.xpose.msra.mxu0 %v1573
        %1800 = vmatprep.subr.mxu0 0.0
        %1801 = vmatpush1.xpose.msra.mxu0 %v1572
        %1802 = vmatprep.subr.mxu0 0.0
        %1803 = vmatpush1.xpose.msra.mxu0 %v1571
        %1804 = vmatprep.subr.mxu0 0.0
        %1805 = vmatpush1.xpose.msra.mxu0 %v1570
        %1806 = vmatprep.subr.mxu0 0.0
        %1807 = vmatpush1.xpose.msra.mxu0 %v1569
        %1808 = vmatprep.subr.mxu0 0.0
        %1809 = vmatpush1.xpose.msra.mxu0 %v1568
        %1810 = vmatprep.subr.mxu0 0.0
        %1811 = vmatpush1.xpose.msra.mxu0 %v1567
        %1812 = vmatprep.subr.mxu0 0.0
        %1813 = vmatpush1.xpose.msra.mxu0 %v1566
        %1814 = vmatprep.subr.mxu0 0.0
        %1815 = vmatpush1.xpose.msra.mxu0 %v1565
        %1816 = vmatprep.subr.mxu0 0.0
        %1817 = vmatpush1.xpose.msra.mxu0 %v1564
        %1818 = vmatprep.subr.mxu0 0.0
        %1819 = vmatpush1.xpose.msra.mxu0 %v1563
        %1820 = vmatprep.subr.mxu0 0.0
        %1821 = vmatpush2.xpose.msra.mxu0 0.0
        %1822 = vmatprep.subr.mxu0 0.0
        %1823 = vmatpush2.xpose.msra.mxu0 0.0
        %1824 = vmatprep.subr.mxu0 0.0
        %1825 = vmatpush2.xpose.msra.mxu0 0.0
        %1826 = vmatprep.subr.mxu0 0.0
        %1827 = vmatpush2.xpose.msra.mxu0 0.0
        %1828 = vmatprep.subr.mxu0 0.0
        %1829 = vmatpush2.xpose.msra.mxu0 0.0
        %1830 = vmatprep.subr.mxu0 0.0
        %1831 = vmatpush2.xpose.msra.mxu0 0.0
        %1832 = vmatprep.subr.mxu0 0.0
        %1833 = vmatpush2.xpose.msra.mxu0 0.0
        %1834 = vmatprep.subr.mxu0 0.0
        %1835 = vmatpush2.xpose.msra.mxu0 0.0
        %1836 = vmatprep.subr.mxu0 0.0
        %1837 = vmatpush2.xpose.msra.mxu0 0.0
        %1838 = vmatprep.subr.mxu0 0.0
        %1839 = vmatpush2.xpose.msra.mxu0 0.0
        %1840 = vmatprep.subr.mxu0 0.0
        %1841 = vmatpush2.xpose.msra.mxu0 0.0
        %1842 = vmatprep.subr.mxu0 0.0
        %1843 = vmatpush2.xpose.msra.mxu0 0.0
        %1844 = vmatprep.subr.mxu0 0.0
        %1845 = vmatpush2.xpose.msra.mxu0 0.0
        %1846 = vmatprep.subr.mxu0 0.0
        %1847 = vmatpush2.xpose.msra.mxu0 0.0
        %1848 = vmatprep.subr.mxu0 0.0
        %1849 = vmatpush2.xpose.msra.mxu0 0.0
        %1850 = vmatprep.subr.mxu0 0.0
        %1851 = vmatpush2.xpose.msra.mxu0 0.0
        %1852 = vmatprep.mubr.f32.mxu0 0.0
        %1853 = vmatmul.mubr.f32.gmra.mxu0 %v1531
        %v1854 = vpop.f32.mrf.mxu0
        %v1855 = vadd.f32 0.0, %v1854
        %v1856 = vpop.f32.mrf.mxu0
        %1857 = vmatprep.mubr.f32.mxu0 0.0
        %1858 = vmatmul.mubr.f32.gmra.mxu0 %v1532
        %v1859 = vpop.f32.mrf.mxu0
        %v1860 = vadd.f32 0.0, %v1859
        %v1861 = vpop.f32.mrf.mxu0
        %1862 = vmatprep.mubr.f32.mxu0 0.0
        %1863 = vmatmul.mubr.f32.gmra.mxu0 %v1533
        %v1864 = vpop.f32.mrf.mxu0
        %v1865 = vadd.f32 0.0, %v1864
        %v1866 = vpop.f32.mrf.mxu0
        %1867 = vmatprep.mubr.f32.mxu0 0.0
        %1868 = vmatmul.mubr.f32.gmra.mxu0 %v1534
        %v1869 = vpop.f32.mrf.mxu0
        %v1870 = vadd.f32 0.0, %v1869
        %v1871 = vpop.f32.mrf.mxu0
        %1872 = vmatprep.mubr.f32.mxu0 0.0
        %1873 = vmatmul.mubr.f32.gmra.mxu0 %v1535
        %v1874 = vpop.f32.mrf.mxu0
        %v1875 = vadd.f32 0.0, %v1874
        %v1876 = vpop.f32.mrf.mxu0
        %1877 = vmatprep.mubr.f32.mxu0 0.0
        %1878 = vmatmul.mubr.f32.gmra.mxu0 %v1536
        %v1879 = vpop.f32.mrf.mxu0
        %v1880 = vadd.f32 0.0, %v1879
        %v1881 = vpop.f32.mrf.mxu0
        %1882 = vmatprep.mubr.f32.mxu0 0.0
        %1883 = vmatmul.mubr.f32.gmra.mxu0 %v1537
        %v1884 = vpop.f32.mrf.mxu0
        %v1885 = vadd.f32 0.0, %v1884
        %v1886 = vpop.f32.mrf.mxu0
        %1887 = vmatprep.mubr.f32.mxu0 0.0
        %1888 = vmatmul.mubr.f32.gmra.mxu0 %v1538
        %v1889 = vpop.f32.mrf.mxu0
        %v1890 = vadd.f32 0.0, %v1889
        %v1891 = vpop.f32.mrf.mxu0
        %1892 = vmatprep.mubr.f32.mxu0 0.0
        %1893 = vmatmul.mubr.f32.gmra.mxu0 %v1539
        %v1894 = vpop.f32.mrf.mxu0
        %v1895 = vadd.f32 0.0, %v1894
        %v1896 = vpop.f32.mrf.mxu0
        %1897 = vmatprep.mubr.f32.mxu0 0.0
        %1898 = vmatmul.mubr.f32.gmra.mxu0 %v1540
        %v1899 = vpop.f32.mrf.mxu0
        %v1900 = vadd.f32 0.0, %v1899
        %v1901 = vpop.f32.mrf.mxu0
        %1902 = vmatprep.mubr.f32.mxu0 0.0
        %1903 = vmatmul.mubr.f32.gmra.mxu0 %v1541
        %v1904 = vpop.f32.mrf.mxu0
        %v1905 = vadd.f32 0.0, %v1904
        %v1906 = vpop.f32.mrf.mxu0
        %1907 = vmatprep.mubr.f32.mxu0 0.0
        %1908 = vmatmul.mubr.f32.gmra.mxu0 %v1542
        %v1909 = vpop.f32.mrf.mxu0
        %v1910 = vadd.f32 0.0, %v1909
        %v1911 = vpop.f32.mrf.mxu0
        %1912 = vmatprep.mubr.f32.mxu0 0.0
        %1913 = vmatmul.mubr.f32.gmra.mxu0 %v1543
        %v1914 = vpop.f32.mrf.mxu0
        %v1915 = vadd.f32 0.0, %v1914
        %v1916 = vpop.f32.mrf.mxu0
        %1917 = vmatprep.mubr.f32.mxu0 0.0
        %1918 = vmatmul.mubr.f32.gmra.mxu0 %v1544
        %v1919 = vpop.f32.mrf.mxu0
        %v1920 = vadd.f32 0.0, %v1919
        %v1921 = vpop.f32.mrf.mxu0
        %1922 = vmatprep.mubr.f32.mxu0 0.0
        %1923 = vmatmul.mubr.f32.gmra.mxu0 %v1545
        %v1924 = vpop.f32.mrf.mxu0
        %v1925 = vadd.f32 0.0, %v1924
        %v1926 = vpop.f32.mrf.mxu0
        %1927 = vmatprep.mubr.f32.mxu0 0.0
        %1928 = vmatmul.mubr.f32.gmra.mxu0 %v1546
        %v1929 = vpop.f32.mrf.mxu0
        %v1930 = vadd.f32 0.0, %v1929
        %v1931 = vpop.f32.mrf.mxu0
        %1932 = vdwg.mxu0
        %v1933 = vlaneseq
        %v1934 = vshrl.u32 %v1933, 7
        %v1935 = vadd.s32 %v1934, 8
        %v1936 = vadd.s32 %v1934, 16
        %v1937 = vadd.s32 %v1934, 24
        %v1938 = vadd.s32 %v1934, 32
        %v1939 = vadd.s32 %v1934, 40
        %v1940 = vadd.s32 %v1934, 48
        %v1941 = vadd.s32 %v1934, 56
        %v1942 = vadd.s32 %v1934, 64
        %v1943 = vadd.s32 %v1934, 72
        %v1944 = vadd.s32 %v1934, 80
        %v1945 = vadd.s32 %v1934, 88
        %v1946 = vadd.s32 %v1934, 96
        %v1947 = vadd.s32 %v1934, 104
        %v1948 = vadd.s32 %v1934, 112
        %v1949 = vadd.s32 %v1934, 120
        %v1950 = vlaneseq
        %v1951 = vand.u32 %v1950, 127
        %vm1952 = vcmp.ge.s32.totalorder %v1934, %v1951
        %vm1953 = vcmp.ge.s32.totalorder %v1935, %v1951
        %vm1954 = vcmp.ge.s32.totalorder %v1936, %v1951
        %vm1955 = vcmp.ge.s32.totalorder %v1937, %v1951
        %vm1956 = vcmp.ge.s32.totalorder %v1938, %v1951
        %vm1957 = vcmp.ge.s32.totalorder %v1939, %v1951
        %vm1958 = vcmp.ge.s32.totalorder %v1940, %v1951
        %vm1959 = vcmp.ge.s32.totalorder %v1941, %v1951
        %vm1960 = vcmp.ge.s32.totalorder %v1942, %v1951
        %vm1961 = vcmp.ge.s32.totalorder %v1943, %v1951
        %vm1962 = vcmp.ge.s32.totalorder %v1944, %v1951
        %vm1963 = vcmp.ge.s32.totalorder %v1945, %v1951
        %vm1964 = vcmp.ge.s32.totalorder %v1946, %v1951
        %vm1965 = vcmp.ge.s32.totalorder %v1947, %v1951
        %vm1966 = vcmp.ge.s32.totalorder %v1948, %v1951
        %vm1967 = vcmp.ge.s32.totalorder %v1949, %v1951
        %v1968 = vsel %vm1952, 1, 0
        %v1969 = vsel %vm1953, 1, 0
        %v1970 = vsel %vm1954, 1, 0
        %v1971 = vsel %vm1955, 1, 0
        %v1972 = vsel %vm1956, 1, 0
        %v1973 = vsel %vm1957, 1, 0
        %v1974 = vsel %vm1958, 1, 0
        %v1975 = vsel %vm1959, 1, 0
        %v1976 = vsel %vm1960, 1, 0
        %v1977 = vsel %vm1961, 1, 0
        %v1978 = vsel %vm1962, 1, 0
        %v1979 = vsel %vm1963, 1, 0
        %v1980 = vsel %vm1964, 1, 0
        %v1981 = vsel %vm1965, 1, 0
        %v1982 = vsel %vm1966, 1, 0
        %v1983 = vsel %vm1967, 1, 0
        %vm1984 = vcmp.eq.s32.totalorder %v1968, 1
        %vm1985 = vcmp.eq.s32.totalorder %v1969, 1
        %vm1986 = vcmp.eq.s32.totalorder %v1970, 1
        %vm1987 = vcmp.eq.s32.totalorder %v1971, 1
        %vm1988 = vcmp.eq.s32.totalorder %v1972, 1
        %vm1989 = vcmp.eq.s32.totalorder %v1973, 1
        %vm1990 = vcmp.eq.s32.totalorder %v1974, 1
        %vm1991 = vcmp.eq.s32.totalorder %v1975, 1
        %vm1992 = vcmp.eq.s32.totalorder %v1976, 1
        %vm1993 = vcmp.eq.s32.totalorder %v1977, 1
        %vm1994 = vcmp.eq.s32.totalorder %v1978, 1
        %vm1995 = vcmp.eq.s32.totalorder %v1979, 1
        %vm1996 = vcmp.eq.s32.totalorder %v1980, 1
        %vm1997 = vcmp.eq.s32.totalorder %v1981, 1
        %vm1998 = vcmp.eq.s32.totalorder %v1982, 1
        %vm1999 = vcmp.eq.s32.totalorder %v1983, 1
        %v2000 = vsel %vm1984, %v1710, 0.0
        %v2001 = vsel %vm1985, %v1715, 0.0
        %v2002 = vsel %vm1986, %v1720, 0.0
        %v2003 = vsel %vm1987, %v1725, 0.0
        %v2004 = vsel %vm1988, %v1730, 0.0
        %v2005 = vsel %vm1989, %v1735, 0.0
        %v2006 = vsel %vm1990, %v1740, 0.0
        %v2007 = vsel %vm1991, %v1745, 0.0
        %v2008 = vsel %vm1992, %v1750, 0.0
        %v2009 = vsel %vm1993, %v1755, 0.0
        %v2010 = vsel %vm1994, %v1760, 0.0
        %v2011 = vsel %vm1995, %v1765, 0.0
        %v2012 = vsel %vm1996, %v1770, 0.0
        %v2013 = vsel %vm1997, %v1775, 0.0
        %v2014 = vsel %vm1998, %v1780, 0.0
        %v2015 = vsel %vm1999, %v1785, 0.0
        %v2016 = vsel %vm1984, %v1855, 0.0
        %v2017 = vsel %vm1985, %v1860, 0.0
        %v2018 = vsel %vm1986, %v1865, 0.0
        %v2019 = vsel %vm1987, %v1870, 0.0
        %v2020 = vsel %vm1988, %v1875, 0.0
        %v2021 = vsel %vm1989, %v1880, 0.0
        %v2022 = vsel %vm1990, %v1885, 0.0
        %v2023 = vsel %vm1991, %v1890, 0.0
        %v2024 = vsel %vm1992, %v1895, 0.0
        %v2025 = vsel %vm1993, %v1900, 0.0
        %v2026 = vsel %vm1994, %v1905, 0.0
        %v2027 = vsel %vm1995, %v1910, 0.0
        %v2028 = vsel %vm1996, %v1915, 0.0
        %v2029 = vsel %vm1997, %v1920, 0.0
        %v2030 = vsel %vm1998, %v1925, 0.0
        %v2031 = vsel %vm1999, %v1930, 0.0
        %2032 = vmatprep.subr.mxu0 0.0
        %2033 = vmatpush1.msra.mxu0 %v1594
        %2034 = vmatprep.subr.mxu0 0.0
        %2035 = vmatpush1.msra.mxu0 %v1593
        %2036 = vmatprep.subr.mxu0 0.0
        %2037 = vmatpush1.msra.mxu0 %v1592
        %2038 = vmatprep.subr.mxu0 0.0
        %2039 = vmatpush1.msra.mxu0 %v1591
        %2040 = vmatprep.subr.mxu0 0.0
        %2041 = vmatpush1.msra.mxu0 %v1590
        %2042 = vmatprep.subr.mxu0 0.0
        %2043 = vmatpush1.msra.mxu0 %v1589
        %2044 = vmatprep.subr.mxu0 0.0
        %2045 = vmatpush1.msra.mxu0 %v1588
        %2046 = vmatprep.subr.mxu0 0.0
        %2047 = vmatpush1.msra.mxu0 %v1587
        %2048 = vmatprep.subr.mxu0 0.0
        %2049 = vmatpush1.msra.mxu0 %v1586
        %2050 = vmatprep.subr.mxu0 0.0
        %2051 = vmatpush1.msra.mxu0 %v1585
        %2052 = vmatprep.subr.mxu0 0.0
        %2053 = vmatpush1.msra.mxu0 %v1584
        %2054 = vmatprep.subr.mxu0 0.0
        %2055 = vmatpush1.msra.mxu0 %v1583
        %2056 = vmatprep.subr.mxu0 0.0
        %2057 = vmatpush1.msra.mxu0 %v1582
        %2058 = vmatprep.subr.mxu0 0.0
        %2059 = vmatpush1.msra.mxu0 %v1581
        %2060 = vmatprep.subr.mxu0 0.0
        %2061 = vmatpush1.msra.mxu0 %v1580
        %2062 = vmatprep.subr.mxu0 0.0
        %2063 = vmatpush1.msra.mxu0 %v1579
        %2064 = vmatprep.subr.mxu0 0.0
        %2065 = vmatpush2.msra.mxu0 %v1626
        %2066 = vmatprep.subr.mxu0 0.0
        %2067 = vmatpush2.msra.mxu0 %v1625
        %2068 = vmatprep.subr.mxu0 0.0
        %2069 = vmatpush2.msra.mxu0 %v1624
        %2070 = vmatprep.subr.mxu0 0.0
        %2071 = vmatpush2.msra.mxu0 %v1623
        %2072 = vmatprep.subr.mxu0 0.0
        %2073 = vmatpush2.msra.mxu0 %v1622
        %2074 = vmatprep.subr.mxu0 0.0
        %2075 = vmatpush2.msra.mxu0 %v1621
        %2076 = vmatprep.subr.mxu0 0.0
        %2077 = vmatpush2.msra.mxu0 %v1620
        %2078 = vmatprep.subr.mxu0 0.0
        %2079 = vmatpush2.msra.mxu0 %v1619
        %2080 = vmatprep.subr.mxu0 0.0
        %2081 = vmatpush2.msra.mxu0 %v1618
        %2082 = vmatprep.subr.mxu0 0.0
        %2083 = vmatpush2.msra.mxu0 %v1617
        %2084 = vmatprep.subr.mxu0 0.0
        %2085 = vmatpush2.msra.mxu0 %v1616
        %2086 = vmatprep.subr.mxu0 0.0
        %2087 = vmatpush2.msra.mxu0 %v1615
        %2088 = vmatprep.subr.mxu0 0.0
        %2089 = vmatpush2.msra.mxu0 %v1614
        %2090 = vmatprep.subr.mxu0 0.0
        %2091 = vmatpush2.msra.mxu0 %v1613
        %2092 = vmatprep.subr.mxu0 0.0
        %2093 = vmatpush2.msra.mxu0 %v1612
        %2094 = vmatprep.subr.mxu0 0.0
        %2095 = vmatpush2.msra.mxu0 %v1611
        %2096 = vmatprep.mubr.f32.mxu0 %v1515
        %2097 = vmatmul.mubr.f32.gmra.mxu0 %v2000
        %v2098 = vpop.f32.mrf.mxu0
        %v2099 = vadd.f32 0.0, %v2098
        %v2100 = vpop.f32.mrf.mxu0
        %2101 = vmatprep.mubr.f32.mxu0 %v1516
        %2102 = vmatmul.mubr.f32.gmra.mxu0 %v2001
        %v2103 = vpop.f32.mrf.mxu0
        %v2104 = vadd.f32 0.0, %v2103
        %v2105 = vpop.f32.mrf.mxu0
        %2106 = vmatprep.mubr.f32.mxu0 %v1517
        %2107 = vmatmul.mubr.f32.gmra.mxu0 %v2002
        %v2108 = vpop.f32.mrf.mxu0
        %v2109 = vadd.f32 0.0, %v2108
        %v2110 = vpop.f32.mrf.mxu0
        %2111 = vmatprep.mubr.f32.mxu0 %v1518
        %2112 = vmatmul.mubr.f32.gmra.mxu0 %v2003
        %v2113 = vpop.f32.mrf.mxu0
        %v2114 = vadd.f32 0.0, %v2113
        %v2115 = vpop.f32.mrf.mxu0
        %2116 = vmatprep.mubr.f32.mxu0 %v1519
        %2117 = vmatmul.mubr.f32.gmra.mxu0 %v2004
        %v2118 = vpop.f32.mrf.mxu0
        %v2119 = vadd.f32 0.0, %v2118
        %v2120 = vpop.f32.mrf.mxu0
        %2121 = vmatprep.mubr.f32.mxu0 %v1520
        %2122 = vmatmul.mubr.f32.gmra.mxu0 %v2005
        %v2123 = vpop.f32.mrf.mxu0
        %v2124 = vadd.f32 0.0, %v2123
        %v2125 = vpop.f32.mrf.mxu0
        %2126 = vmatprep.mubr.f32.mxu0 %v1521
        %2127 = vmatmul.mubr.f32.gmra.mxu0 %v2006
        %v2128 = vpop.f32.mrf.mxu0
        %v2129 = vadd.f32 0.0, %v2128
        %v2130 = vpop.f32.mrf.mxu0
        %2131 = vmatprep.mubr.f32.mxu0 %v1522
        %2132 = vmatmul.mubr.f32.gmra.mxu0 %v2007
        %v2133 = vpop.f32.mrf.mxu0
        %v2134 = vadd.f32 0.0, %v2133
        %v2135 = vpop.f32.mrf.mxu0
        %2136 = vmatprep.mubr.f32.mxu0 %v1523
        %2137 = vmatmul.mubr.f32.gmra.mxu0 %v2008
        %v2138 = vpop.f32.mrf.mxu0
        %v2139 = vadd.f32 0.0, %v2138
        %v2140 = vpop.f32.mrf.mxu0
        %2141 = vmatprep.mubr.f32.mxu0 %v1524
        %2142 = vmatmul.mubr.f32.gmra.mxu0 %v2009
        %v2143 = vpop.f32.mrf.mxu0
        %v2144 = vadd.f32 0.0, %v2143
        %v2145 = vpop.f32.mrf.mxu0
        %2146 = vmatprep.mubr.f32.mxu0 %v1525
        %2147 = vmatmul.mubr.f32.gmra.mxu0 %v2010
        %v2148 = vpop.f32.mrf.mxu0
        %v2149 = vadd.f32 0.0, %v2148
        %v2150 = vpop.f32.mrf.mxu0
        %2151 = vmatprep.mubr.f32.mxu0 %v1526
        %2152 = vmatmul.mubr.f32.gmra.mxu0 %v2011
        %v2153 = vpop.f32.mrf.mxu0
        %v2154 = vadd.f32 0.0, %v2153
        %v2155 = vpop.f32.mrf.mxu0
        %2156 = vmatprep.mubr.f32.mxu0 %v1527
        %2157 = vmatmul.mubr.f32.gmra.mxu0 %v2012
        %v2158 = vpop.f32.mrf.mxu0
        %v2159 = vadd.f32 0.0, %v2158
        %v2160 = vpop.f32.mrf.mxu0
        %2161 = vmatprep.mubr.f32.mxu0 %v1528
        %2162 = vmatmul.mubr.f32.gmra.mxu0 %v2013
        %v2163 = vpop.f32.mrf.mxu0
        %v2164 = vadd.f32 0.0, %v2163
        %v2165 = vpop.f32.mrf.mxu0
        %2166 = vmatprep.mubr.f32.mxu0 %v1529
        %2167 = vmatmul.mubr.f32.gmra.mxu0 %v2014
        %v2168 = vpop.f32.mrf.mxu0
        %v2169 = vadd.f32 0.0, %v2168
        %v2170 = vpop.f32.mrf.mxu0
        %2171 = vmatprep.mubr.f32.mxu0 %v1530
        %2172 = vmatmul.mubr.f32.gmra.mxu0 %v2015
        %v2173 = vpop.f32.mrf.mxu0
        %v2174 = vadd.f32 0.0, %v2173
        %v2175 = vpop.f32.mrf.mxu0
        %2176 = vdwg.mxu0
        %2177 = vmatprep.subr.mxu0 0.0
        %2178 = vmatpush1.msra.mxu0 %v1610
        %2179 = vmatprep.subr.mxu0 0.0
        %2180 = vmatpush1.msra.mxu0 %v1609
        %2181 = vmatprep.subr.mxu0 0.0
        %2182 = vmatpush1.msra.mxu0 %v1608
        %2183 = vmatprep.subr.mxu0 0.0
        %2184 = vmatpush1.msra.mxu0 %v1607
        %2185 = vmatprep.subr.mxu0 0.0
        %2186 = vmatpush1.msra.mxu0 %v1606
        %2187 = vmatprep.subr.mxu0 0.0
        %2188 = vmatpush1.msra.mxu0 %v1605
        %2189 = vmatprep.subr.mxu0 0.0
        %2190 = vmatpush1.msra.mxu0 %v1604
        %2191 = vmatprep.subr.mxu0 0.0
        %2192 = vmatpush1.msra.mxu0 %v1603
        %2193 = vmatprep.subr.mxu0 0.0
        %2194 = vmatpush1.msra.mxu0 %v1602
        %2195 = vmatprep.subr.mxu0 0.0
        %2196 = vmatpush1.msra.mxu0 %v1601
        %2197 = vmatprep.subr.mxu0 0.0
        %2198 = vmatpush1.msra.mxu0 %v1600
        %2199 = vmatprep.subr.mxu0 0.0
        %2200 = vmatpush1.msra.mxu0 %v1599
        %2201 = vmatprep.subr.mxu0 0.0
        %2202 = vmatpush1.msra.mxu0 %v1598
        %2203 = vmatprep.subr.mxu0 0.0
        %2204 = vmatpush1.msra.mxu0 %v1597
        %2205 = vmatprep.subr.mxu0 0.0
        %2206 = vmatpush1.msra.mxu0 %v1596
        %2207 = vmatprep.subr.mxu0 0.0
        %2208 = vmatpush1.msra.mxu0 %v1595
        %2209 = vmatprep.subr.mxu0 0.0
        %2210 = vmatpush2.msra.mxu0 %v1642
        %2211 = vmatprep.subr.mxu0 0.0
        %2212 = vmatpush2.msra.mxu0 %v1641
        %2213 = vmatprep.subr.mxu0 0.0
        %2214 = vmatpush2.msra.mxu0 %v1640
        %2215 = vmatprep.subr.mxu0 0.0
        %2216 = vmatpush2.msra.mxu0 %v1639
        %2217 = vmatprep.subr.mxu0 0.0
        %2218 = vmatpush2.msra.mxu0 %v1638
        %2219 = vmatprep.subr.mxu0 0.0
        %2220 = vmatpush2.msra.mxu0 %v1637
        %2221 = vmatprep.subr.mxu0 0.0
        %2222 = vmatpush2.msra.mxu0 %v1636
        %2223 = vmatprep.subr.mxu0 0.0
        %2224 = vmatpush2.msra.mxu0 %v1635
        %2225 = vmatprep.subr.mxu0 0.0
        %2226 = vmatpush2.msra.mxu0 %v1634
        %2227 = vmatprep.subr.mxu0 0.0
        %2228 = vmatpush2.msra.mxu0 %v1633
        %2229 = vmatprep.subr.mxu0 0.0
        %2230 = vmatpush2.msra.mxu0 %v1632
        %2231 = vmatprep.subr.mxu0 0.0
        %2232 = vmatpush2.msra.mxu0 %v1631
        %2233 = vmatprep.subr.mxu0 0.0
        %2234 = vmatpush2.msra.mxu0 %v1630
        %2235 = vmatprep.subr.mxu0 0.0
        %2236 = vmatpush2.msra.mxu0 %v1629
        %2237 = vmatprep.subr.mxu0 0.0
        %2238 = vmatpush2.msra.mxu0 %v1628
        %2239 = vmatprep.subr.mxu0 0.0
        %2240 = vmatpush2.msra.mxu0 %v1627
        %2241 = vmatprep.mubr.f32.mxu0 %v1531
        %2242 = vmatmul.mubr.f32.gmra.mxu0 %v2016
        %v2243 = vpop.f32.mrf.mxu0
        %v2244 = vadd.f32 0.0, %v2243
        %v2245 = vpop.f32.mrf.mxu0
        %2246 = vmatprep.mubr.f32.mxu0 %v1532
        %2247 = vmatmul.mubr.f32.gmra.mxu0 %v2017
        %v2248 = vpop.f32.mrf.mxu0
        %v2249 = vadd.f32 0.0, %v2248
        %v2250 = vpop.f32.mrf.mxu0
        %2251 = vmatprep.mubr.f32.mxu0 %v1533
        %2252 = vmatmul.mubr.f32.gmra.mxu0 %v2018
        %v2253 = vpop.f32.mrf.mxu0
        %v2254 = vadd.f32 0.0, %v2253
        %v2255 = vpop.f32.mrf.mxu0
        %2256 = vmatprep.mubr.f32.mxu0 %v1534
        %2257 = vmatmul.mubr.f32.gmra.mxu0 %v2019
        %v2258 = vpop.f32.mrf.mxu0
        %v2259 = vadd.f32 0.0, %v2258
        %v2260 = vpop.f32.mrf.mxu0
        %2261 = vmatprep.mubr.f32.mxu0 %v1535
        %2262 = vmatmul.mubr.f32.gmra.mxu0 %v2020
        %v2263 = vpop.f32.mrf.mxu0
        %v2264 = vadd.f32 0.0, %v2263
        %v2265 = vpop.f32.mrf.mxu0
        %2266 = vmatprep.mubr.f32.mxu0 %v1536
        %2267 = vmatmul.mubr.f32.gmra.mxu0 %v2021
        %v2268 = vpop.f32.mrf.mxu0
        %v2269 = vadd.f32 0.0, %v2268
        %v2270 = vpop.f32.mrf.mxu0
        %2271 = vmatprep.mubr.f32.mxu0 %v1537
        %2272 = vmatmul.mubr.f32.gmra.mxu0 %v2022
        %v2273 = vpop.f32.mrf.mxu0
        %v2274 = vadd.f32 0.0, %v2273
        %v2275 = vpop.f32.mrf.mxu0
        %2276 = vmatprep.mubr.f32.mxu0 %v1538
        %2277 = vmatmul.mubr.f32.gmra.mxu0 %v2023
        %v2278 = vpop.f32.mrf.mxu0
        %v2279 = vadd.f32 0.0, %v2278
        %v2280 = vpop.f32.mrf.mxu0
        %2281 = vmatprep.mubr.f32.mxu0 %v1539
        %2282 = vmatmul.mubr.f32.gmra.mxu0 %v2024
        %v2283 = vpop.f32.mrf.mxu0
        %v2284 = vadd.f32 0.0, %v2283
        %v2285 = vpop.f32.mrf.mxu0
        %2286 = vmatprep.mubr.f32.mxu0 %v1540
        %2287 = vmatmul.mubr.f32.gmra.mxu0 %v2025
        %v2288 = vpop.f32.mrf.mxu0
        %v2289 = vadd.f32 0.0, %v2288
        %v2290 = vpop.f32.mrf.mxu0
        %2291 = vmatprep.mubr.f32.mxu0 %v1541
        %2292 = vmatmul.mubr.f32.gmra.mxu0 %v2026
        %v2293 = vpop.f32.mrf.mxu0
        %v2294 = vadd.f32 0.0, %v2293
        %v2295 = vpop.f32.mrf.mxu0
        %2296 = vmatprep.mubr.f32.mxu0 %v1542
        %2297 = vmatmul.mubr.f32.gmra.mxu0 %v2027
        %v2298 = vpop.f32.mrf.mxu0
        %v2299 = vadd.f32 0.0, %v2298
        %v2300 = vpop.f32.mrf.mxu0
        %2301 = vmatprep.mubr.f32.mxu0 %v1543
        %2302 = vmatmul.mubr.f32.gmra.mxu0 %v2028
        %v2303 = vpop.f32.mrf.mxu0
        %v2304 = vadd.f32 0.0, %v2303
        %v2305 = vpop.f32.mrf.mxu0
        %2306 = vmatprep.mubr.f32.mxu0 %v1544
        %2307 = vmatmul.mubr.f32.gmra.mxu0 %v2029
        %v2308 = vpop.f32.mrf.mxu0
        %v2309 = vadd.f32 0.0, %v2308
        %v2310 = vpop.f32.mrf.mxu0
        %2311 = vmatprep.mubr.f32.mxu0 %v1545
        %2312 = vmatmul.mubr.f32.gmra.mxu0 %v2030
        %v2313 = vpop.f32.mrf.mxu0
        %v2314 = vadd.f32 0.0, %v2313
        %v2315 = vpop.f32.mrf.mxu0
        %2316 = vmatprep.mubr.f32.mxu0 %v1546
        %2317 = vmatmul.mubr.f32.gmra.mxu0 %v2031
        %v2318 = vpop.f32.mrf.mxu0
        %v2319 = vadd.f32 0.0, %v2318
        %v2320 = vpop.f32.mrf.mxu0
        %2321 = vdwg.mxu0
        %v2322 = vmax.f32 %v2099, 1.0
        %v2323 = vmax.f32 %v2104, 1.0
        %v2324 = vmax.f32 %v2109, 1.0
        %v2325 = vmax.f32 %v2114, 1.0
        %v2326 = vmax.f32 %v2119, 1.0
        %v2327 = vmax.f32 %v2124, 1.0
        %v2328 = vmax.f32 %v2129, 1.0
        %v2329 = vmax.f32 %v2134, 1.0
        %v2330 = vmax.f32 %v2139, 1.0
        %v2331 = vmax.f32 %v2144, 1.0
        %v2332 = vmax.f32 %v2149, 1.0
        %v2333 = vmax.f32 %v2154, 1.0
        %v2334 = vmax.f32 %v2159, 1.0
        %v2335 = vmax.f32 %v2164, 1.0
        %v2336 = vmax.f32 %v2169, 1.0
        %v2337 = vmax.f32 %v2174, 1.0
        %v2338 = vmax.f32 %v2244, 1.0
        %v2339 = vmax.f32 %v2249, 1.0
        %v2340 = vmax.f32 %v2254, 1.0
        %v2341 = vmax.f32 %v2259, 1.0
        %v2342 = vmax.f32 %v2264, 1.0
        %v2343 = vmax.f32 %v2269, 1.0
        %v2344 = vmax.f32 %v2274, 1.0
        %v2345 = vmax.f32 %v2279, 1.0
        %v2346 = vmax.f32 %v2284, 1.0
        %v2347 = vmax.f32 %v2289, 1.0
        %v2348 = vmax.f32 %v2294, 1.0
        %v2349 = vmax.f32 %v2299, 1.0
        %v2350 = vmax.f32 %v2304, 1.0
        %v2351 = vmax.f32 %v2309, 1.0
        %v2352 = vmax.f32 %v2314, 1.0
        %v2353 = vmax.f32 %v2319, 1.0
        %v2354 = vrcp.pop %v2322
        %v2355 = vrcp.pop %v2323
        %v2356 = vrcp.pop %v2324
        %v2357 = vrcp.pop %v2325
        %v2358 = vrcp.pop %v2326
        %v2359 = vrcp.pop %v2327
        %v2360 = vrcp.pop %v2328
        %v2361 = vrcp.pop %v2329
        %v2362 = vrcp.pop %v2330
        %v2363 = vrcp.pop %v2331
        %v2364 = vrcp.pop %v2332
        %v2365 = vrcp.pop %v2333
        %v2366 = vrcp.pop %v2334
        %v2367 = vrcp.pop %v2335
        %v2368 = vrcp.pop %v2336
        %v2369 = vrcp.pop %v2337
        %v2370 = vrcp.pop %v2338
        %v2371 = vrcp.pop %v2339
        %v2372 = vrcp.pop %v2340
        %v2373 = vrcp.pop %v2341
        %v2374 = vrcp.pop %v2342
        %v2375 = vrcp.pop %v2343
        %v2376 = vrcp.pop %v2344
        %v2377 = vrcp.pop %v2345
        %v2378 = vrcp.pop %v2346
        %v2379 = vrcp.pop %v2347
        %v2380 = vrcp.pop %v2348
        %v2381 = vrcp.pop %v2349
        %v2382 = vrcp.pop %v2350
        %v2383 = vrcp.pop %v2351
        %v2384 = vrcp.pop %v2352
        %v2385 = vrcp.pop %v2353
        %2387 = vset.pattern.permute.xlu0 16
        %2388 = vperm.xlu0 %2387, %v2354
        %v2389 = vpop.permute.xlu0 %2388
        %2392 = vset.pattern.permute.xlu0 16
        %2393 = vperm.xlu0 %2392, %v2355
        %v2394 = vpop.permute.xlu0 %2393
        %2397 = vset.pattern.permute.xlu0 16
        %2398 = vperm.xlu0 %2397, %v2356
        %v2399 = vpop.permute.xlu0 %2398
        %2402 = vset.pattern.permute.xlu0 16
        %2403 = vperm.xlu0 %2402, %v2357
        %v2404 = vpop.permute.xlu0 %2403
        %2407 = vset.pattern.permute.xlu0 16
        %2408 = vperm.xlu0 %2407, %v2358
        %v2409 = vpop.permute.xlu0 %2408
        %2412 = vset.pattern.permute.xlu0 16
        %2413 = vperm.xlu0 %2412, %v2359
        %v2414 = vpop.permute.xlu0 %2413
        %2417 = vset.pattern.permute.xlu0 16
        %2418 = vperm.xlu0 %2417, %v2360
        %v2419 = vpop.permute.xlu0 %2418
        %2422 = vset.pattern.permute.xlu0 16
        %2423 = vperm.xlu0 %2422, %v2361
        %v2424 = vpop.permute.xlu0 %2423
        %2427 = vset.pattern.permute.xlu0 16
        %2428 = vperm.xlu0 %2427, %v2362
        %v2429 = vpop.permute.xlu0 %2428
        %2432 = vset.pattern.permute.xlu0 16
        %2433 = vperm.xlu0 %2432, %v2363
        %v2434 = vpop.permute.xlu0 %2433
        %2437 = vset.pattern.permute.xlu0 16
        %2438 = vperm.xlu0 %2437, %v2364
        %v2439 = vpop.permute.xlu0 %2438
        %2442 = vset.pattern.permute.xlu0 16
        %2443 = vperm.xlu0 %2442, %v2365
        %v2444 = vpop.permute.xlu0 %2443
        %2447 = vset.pattern.permute.xlu0 16
        %2448 = vperm.xlu0 %2447, %v2366
        %v2449 = vpop.permute.xlu0 %2448
        %2452 = vset.pattern.permute.xlu0 16
        %2453 = vperm.xlu0 %2452, %v2367
        %v2454 = vpop.permute.xlu0 %2453
        %2457 = vset.pattern.permute.xlu0 16
        %2458 = vperm.xlu0 %2457, %v2368
        %v2459 = vpop.permute.xlu0 %2458
        %2462 = vset.pattern.permute.xlu0 16
        %2463 = vperm.xlu0 %2462, %v2369
        %v2464 = vpop.permute.xlu0 %2463
        %2467 = vset.pattern.permute.xlu0 16
        %2468 = vperm.xlu0 %2467, %v2370
        %v2469 = vpop.permute.xlu0 %2468
        %2472 = vset.pattern.permute.xlu0 16
        %2473 = vperm.xlu0 %2472, %v2371
        %v2474 = vpop.permute.xlu0 %2473
        %2477 = vset.pattern.permute.xlu0 16
        %2478 = vperm.xlu0 %2477, %v2372
        %v2479 = vpop.permute.xlu0 %2478
        %2482 = vset.pattern.permute.xlu0 16
        %2483 = vperm.xlu0 %2482, %v2373
        %v2484 = vpop.permute.xlu0 %2483
        %2487 = vset.pattern.permute.xlu0 16
        %2488 = vperm.xlu0 %2487, %v2374
        %v2489 = vpop.permute.xlu0 %2488
        %2492 = vset.pattern.permute.xlu0 16
        %2493 = vperm.xlu0 %2492, %v2375
        %v2494 = vpop.permute.xlu0 %2493
        %2497 = vset.pattern.permute.xlu0 16
        %2498 = vperm.xlu0 %2497, %v2376
        %v2499 = vpop.permute.xlu0 %2498
        %2502 = vset.pattern.permute.xlu0 16
        %2503 = vperm.xlu0 %2502, %v2377
        %v2504 = vpop.permute.xlu0 %2503
        %2507 = vset.pattern.permute.xlu0 16
        %2508 = vperm.xlu0 %2507, %v2378
        %v2509 = vpop.permute.xlu0 %2508
        %2512 = vset.pattern.permute.xlu0 16
        %2513 = vperm.xlu0 %2512, %v2379
        %v2514 = vpop.permute.xlu0 %2513
        %2517 = vset.pattern.permute.xlu0 16
        %2518 = vperm.xlu0 %2517, %v2380
        %v2519 = vpop.permute.xlu0 %2518
        %2522 = vset.pattern.permute.xlu0 16
        %2523 = vperm.xlu0 %2522, %v2381
        %v2524 = vpop.permute.xlu0 %2523
        %2527 = vset.pattern.permute.xlu0 16
        %2528 = vperm.xlu0 %2527, %v2382
        %v2529 = vpop.permute.xlu0 %2528
        %2532 = vset.pattern.permute.xlu0 16
        %2533 = vperm.xlu0 %2532, %v2383
        %v2534 = vpop.permute.xlu0 %2533
        %2537 = vset.pattern.permute.xlu0 16
        %2538 = vperm.xlu0 %2537, %v2384
        %v2539 = vpop.permute.xlu0 %2538
        %2542 = vset.pattern.permute.xlu0 16
        %2543 = vperm.xlu0 %2542, %v2385
        %v2544 = vpop.permute.xlu0 %2543
        %v2546 = vmul.f32 %v2099, %v2389
        %v2547 = vmul.f32 %v2104, %v2394
        %v2548 = vmul.f32 %v2109, %v2399
        %v2549 = vmul.f32 %v2114, %v2404
        %v2550 = vmul.f32 %v2119, %v2409
        %v2551 = vmul.f32 %v2124, %v2414
        %v2552 = vmul.f32 %v2129, %v2419
        %v2553 = vmul.f32 %v2134, %v2424
        %v2554 = vmul.f32 %v2139, %v2429
        %v2555 = vmul.f32 %v2144, %v2434
        %v2556 = vmul.f32 %v2149, %v2439
        %v2557 = vmul.f32 %v2154, %v2444
        %v2558 = vmul.f32 %v2159, %v2449
        %v2559 = vmul.f32 %v2164, %v2454
        %v2560 = vmul.f32 %v2169, %v2459
        %v2561 = vmul.f32 %v2174, %v2464
        %v2562 = vmul.f32 %v2244, %v2469
        %v2563 = vmul.f32 %v2249, %v2474
        %v2564 = vmul.f32 %v2254, %v2479
        %v2565 = vmul.f32 %v2259, %v2484
        %v2566 = vmul.f32 %v2264, %v2489
        %v2567 = vmul.f32 %v2269, %v2494
        %v2568 = vmul.f32 %v2274, %v2499
        %v2569 = vmul.f32 %v2279, %v2504
        %v2570 = vmul.f32 %v2284, %v2509
        %v2571 = vmul.f32 %v2289, %v2514
        %v2572 = vmul.f32 %v2294, %v2519
        %v2573 = vmul.f32 %v2299, %v2524
        %v2574 = vmul.f32 %v2304, %v2529
        %v2575 = vmul.f32 %v2309, %v2534
        %v2576 = vmul.f32 %v2314, %v2539
        %v2577 = vmul.f32 %v2319, %v2544
        %2578 = vst.msk [vmem:[%s761] sm:$0xff] %vm840, %v2546
        %2579 = vst.msk [vmem:[%s761 + $0x8] sm:$0xff] %vm840, %v2547
        %2580 = vst.msk [vmem:[%s761 + $0x10] sm:$0xff] %vm840, %v2548
        %2581 = vst.msk [vmem:[%s761 + $0x18] sm:$0xff] %vm840, %v2549
        %2582 = vst.msk [vmem:[%s761 + $0x20] sm:$0xff] %vm840, %v2550
        %2583 = vst.msk [vmem:[%s761 + $0x28] sm:$0xff] %vm840, %v2551
        %2584 = vst.msk [vmem:[%s761 + $0x30] sm:$0xff] %vm840, %v2552
        %2585 = vst.msk [vmem:[%s761 + $0x38] sm:$0xff] %vm840, %v2553
        %2586 = vst.msk [vmem:[%s761 + $0x40] sm:$0xff] %vm840, %v2554
        %2587 = vst.msk [vmem:[%s761 + $0x48] sm:$0xff] %vm840, %v2555
        %2588 = vst.msk [vmem:[%s761 + $0x50] sm:$0xff] %vm840, %v2556
        %2589 = vst.msk [vmem:[%s761 + $0x58] sm:$0xff] %vm840, %v2557
        %2590 = vst.msk [vmem:[%s761 + $0x60] sm:$0xff] %vm840, %v2558
        %2591 = vst.msk [vmem:[%s761 + $0x68] sm:$0xff] %vm840, %v2559
        %2592 = vst.msk [vmem:[%s761 + $0x70] sm:$0xff] %vm840, %v2560
        %2593 = vst.msk [vmem:[%s761 + $0x78] sm:$0xff] %vm840, %v2561
        %2594 = vst.msk [vmem:[%s761 + $0x80] sm:$0xff] %vm840, %v2562
        %2595 = vst.msk [vmem:[%s761 + $0x88] sm:$0xff] %vm840, %v2563
        %2596 = vst.msk [vmem:[%s761 + $0x90] sm:$0xff] %vm840, %v2564
        %2597 = vst.msk [vmem:[%s761 + $0x98] sm:$0xff] %vm840, %v2565
        %2598 = vst.msk [vmem:[%s761 + $0xa0] sm:$0xff] %vm840, %v2566
        %2599 = vst.msk [vmem:[%s761 + $0xa8] sm:$0xff] %vm840, %v2567
        %2600 = vst.msk [vmem:[%s761 + $0xb0] sm:$0xff] %vm840, %v2568
        %2601 = vst.msk [vmem:[%s761 + $0xb8] sm:$0xff] %vm840, %v2569
        %2602 = vst.msk [vmem:[%s761 + $0xc0] sm:$0xff] %vm840, %v2570
        %2603 = vst.msk [vmem:[%s761 + $0xc8] sm:$0xff] %vm840, %v2571
        %2604 = vst.msk [vmem:[%s761 + $0xd0] sm:$0xff] %vm840, %v2572
        %2605 = vst.msk [vmem:[%s761 + $0xd8] sm:$0xff] %vm840, %v2573
        %2606 = vst.msk [vmem:[%s761 + $0xe0] sm:$0xff] %vm840, %v2574
        %2607 = vst.msk [vmem:[%s761 + $0xe8] sm:$0xff] %vm840, %v2575
        %2608 = vst.msk [vmem:[%s761 + $0xf0] sm:$0xff] %vm840, %v2576
        %2609 = vst.msk [vmem:[%s761 + $0xf8] sm:$0xff] %vm840, %v2577
        %2610 = vxpose.xlu0.b32.start [1/16] %v1547, 128
        %2611 = vxpose.xlu0.b32.cont [2/16] %v1548, 128
        %2612 = vxpose.xlu0.b32.cont [3/16] %v1549, 128
        %2613 = vxpose.xlu0.b32.cont [4/16] %v1550, 128
        %2614 = vxpose.xlu0.b32.cont [5/16] %v1551, 128
        %2615 = vxpose.xlu0.b32.cont [6/16] %v1552, 128
        %2616 = vxpose.xlu0.b32.cont [7/16] %v1553, 128
        %2617 = vxpose.xlu0.b32.cont [8/16] %v1554, 128
        %2618 = vxpose.xlu0.b32.cont [9/16] %v1555, 128
        %2619 = vxpose.xlu0.b32.cont [10/16] %v1556, 128
        %2620 = vxpose.xlu0.b32.cont [11/16] %v1557, 128
        %2621 = vxpose.xlu0.b32.cont [12/16] %v1558, 128
        %2622 = vxpose.xlu0.b32.cont [13/16] %v1559, 128
        %2623 = vxpose.xlu0.b32.cont [14/16] %v1560, 128
        %2624 = vxpose.xlu0.b32.cont [15/16] %v1561, 128
        %2625 = vxpose.xlu0.b32.end [16/16] %v1562, 128
        %v2626 = vpop.trf.xlu0
        %v2627 = vpop.trf.xlu0
        %v2628 = vpop.trf.xlu0
        %v2629 = vpop.trf.xlu0
        %v2630 = vpop.trf.xlu0
        %v2631 = vpop.trf.xlu0
        %v2632 = vpop.trf.xlu0
        %v2633 = vpop.trf.xlu0
        %v2634 = vpop.trf.xlu0
        %v2635 = vpop.trf.xlu0
        %v2636 = vpop.trf.xlu0
        %v2637 = vpop.trf.xlu0
        %v2638 = vpop.trf.xlu0
        %v2639 = vpop.trf.xlu0
        %v2640 = vpop.trf.xlu0
        %v2641 = vpop.trf.xlu0
        %2642 = vmatprep.subr.mxu0 0.0
        %2643 = vmatpush1.msra.mxu0 %v1594
        %2644 = vmatprep.subr.mxu0 0.0
        %2645 = vmatpush1.msra.mxu0 %v1593
        %2646 = vmatprep.subr.mxu0 0.0
        %2647 = vmatpush1.msra.mxu0 %v1592
        %2648 = vmatprep.subr.mxu0 0.0
        %2649 = vmatpush1.msra.mxu0 %v1591
        %2650 = vmatprep.subr.mxu0 0.0
        %2651 = vmatpush1.msra.mxu0 %v1590
        %2652 = vmatprep.subr.mxu0 0.0
        %2653 = vmatpush1.msra.mxu0 %v1589
        %2654 = vmatprep.subr.mxu0 0.0
        %2655 = vmatpush1.msra.mxu0 %v1588
        %2656 = vmatprep.subr.mxu0 0.0
        %2657 = vmatpush1.msra.mxu0 %v1587
        %2658 = vmatprep.subr.mxu0 0.0
        %2659 = vmatpush1.msra.mxu0 %v1586
        %2660 = vmatprep.subr.mxu0 0.0
        %2661 = vmatpush1.msra.mxu0 %v1585
        %2662 = vmatprep.subr.mxu0 0.0
        %2663 = vmatpush1.msra.mxu0 %v1584
        %2664 = vmatprep.subr.mxu0 0.0
        %2665 = vmatpush1.msra.mxu0 %v1583
        %2666 = vmatprep.subr.mxu0 0.0
        %2667 = vmatpush1.msra.mxu0 %v1582
        %2668 = vmatprep.subr.mxu0 0.0
        %2669 = vmatpush1.msra.mxu0 %v1581
        %2670 = vmatprep.subr.mxu0 0.0
        %2671 = vmatpush1.msra.mxu0 %v1580
        %2672 = vmatprep.subr.mxu0 0.0
        %2673 = vmatpush1.msra.mxu0 %v1579
        %2674 = vmatprep.subr.mxu0 0.0
        %2675 = vmatpush2.msra.mxu0 0.0
        %2676 = vmatprep.subr.mxu0 0.0
        %2677 = vmatpush2.msra.mxu0 0.0
        %2678 = vmatprep.subr.mxu0 0.0
        %2679 = vmatpush2.msra.mxu0 0.0
        %2680 = vmatprep.subr.mxu0 0.0
        %2681 = vmatpush2.msra.mxu0 0.0
        %2682 = vmatprep.subr.mxu0 0.0
        %2683 = vmatpush2.msra.mxu0 0.0
        %2684 = vmatprep.subr.mxu0 0.0
        %2685 = vmatpush2.msra.mxu0 0.0
        %2686 = vmatprep.subr.mxu0 0.0
        %2687 = vmatpush2.msra.mxu0 0.0
        %2688 = vmatprep.subr.mxu0 0.0
        %2689 = vmatpush2.msra.mxu0 0.0
        %2690 = vmatprep.subr.mxu0 0.0
        %2691 = vmatpush2.msra.mxu0 0.0
        %2692 = vmatprep.subr.mxu0 0.0
        %2693 = vmatpush2.msra.mxu0 0.0
        %2694 = vmatprep.subr.mxu0 0.0
        %2695 = vmatpush2.msra.mxu0 0.0
        %2696 = vmatprep.subr.mxu0 0.0
        %2697 = vmatpush2.msra.mxu0 0.0
        %2698 = vmatprep.subr.mxu0 0.0
        %2699 = vmatpush2.msra.mxu0 0.0
        %2700 = vmatprep.subr.mxu0 0.0
        %2701 = vmatpush2.msra.mxu0 0.0
        %2702 = vmatprep.subr.mxu0 0.0
        %2703 = vmatpush2.msra.mxu0 0.0
        %2704 = vmatprep.subr.mxu0 0.0
        %2705 = vmatpush2.msra.mxu0 0.0
        %2706 = vmatprep.mubr.f32.mxu0 0.0
        %2707 = vmatmul.mubr.f32.gmra.mxu0 %v2626
        %v2708 = vpop.f32.mrf.mxu0
        %v2709 = vadd.f32 0.0, %v2708
        %v2710 = vpop.f32.mrf.mxu0
        %2711 = vmatprep.mubr.f32.mxu0 0.0
        %2712 = vmatmul.mubr.f32.gmra.mxu0 %v2627
        %v2713 = vpop.f32.mrf.mxu0
        %v2714 = vadd.f32 0.0, %v2713
        %v2715 = vpop.f32.mrf.mxu0
        %2716 = vmatprep.mubr.f32.mxu0 0.0
        %2717 = vmatmul.mubr.f32.gmra.mxu0 %v2628
        %v2718 = vpop.f32.mrf.mxu0
        %v2719 = vadd.f32 0.0, %v2718
        %v2720 = vpop.f32.mrf.mxu0
        %2721 = vmatprep.mubr.f32.mxu0 0.0
        %2722 = vmatmul.mubr.f32.gmra.mxu0 %v2629
        %v2723 = vpop.f32.mrf.mxu0
        %v2724 = vadd.f32 0.0, %v2723
        %v2725 = vpop.f32.mrf.mxu0
        %2726 = vmatprep.mubr.f32.mxu0 0.0
        %2727 = vmatmul.mubr.f32.gmra.mxu0 %v2630
        %v2728 = vpop.f32.mrf.mxu0
        %v2729 = vadd.f32 0.0, %v2728
        %v2730 = vpop.f32.mrf.mxu0
        %2731 = vmatprep.mubr.f32.mxu0 0.0
        %2732 = vmatmul.mubr.f32.gmra.mxu0 %v2631
        %v2733 = vpop.f32.mrf.mxu0
        %v2734 = vadd.f32 0.0, %v2733
        %v2735 = vpop.f32.mrf.mxu0
        %2736 = vmatprep.mubr.f32.mxu0 0.0
        %2737 = vmatmul.mubr.f32.gmra.mxu0 %v2632
        %v2738 = vpop.f32.mrf.mxu0
        %v2739 = vadd.f32 0.0, %v2738
        %v2740 = vpop.f32.mrf.mxu0
        %2741 = vmatprep.mubr.f32.mxu0 0.0
        %2742 = vmatmul.mubr.f32.gmra.mxu0 %v2633
        %v2743 = vpop.f32.mrf.mxu0
        %v2744 = vadd.f32 0.0, %v2743
        %v2745 = vpop.f32.mrf.mxu0
        %2746 = vmatprep.mubr.f32.mxu0 0.0
        %2747 = vmatmul.mubr.f32.gmra.mxu0 %v2634
        %v2748 = vpop.f32.mrf.mxu0
        %v2749 = vadd.f32 0.0, %v2748
        %v2750 = vpop.f32.mrf.mxu0
        %2751 = vmatprep.mubr.f32.mxu0 0.0
        %2752 = vmatmul.mubr.f32.gmra.mxu0 %v2635
        %v2753 = vpop.f32.mrf.mxu0
        %v2754 = vadd.f32 0.0, %v2753
        %v2755 = vpop.f32.mrf.mxu0
        %2756 = vmatprep.mubr.f32.mxu0 0.0
        %2757 = vmatmul.mubr.f32.gmra.mxu0 %v2636
        %v2758 = vpop.f32.mrf.mxu0
        %v2759 = vadd.f32 0.0, %v2758
        %v2760 = vpop.f32.mrf.mxu0
        %2761 = vmatprep.mubr.f32.mxu0 0.0
        %2762 = vmatmul.mubr.f32.gmra.mxu0 %v2637
        %v2763 = vpop.f32.mrf.mxu0
        %v2764 = vadd.f32 0.0, %v2763
        %v2765 = vpop.f32.mrf.mxu0
        %2766 = vmatprep.mubr.f32.mxu0 0.0
        %2767 = vmatmul.mubr.f32.gmra.mxu0 %v2638
        %v2768 = vpop.f32.mrf.mxu0
        %v2769 = vadd.f32 0.0, %v2768
        %v2770 = vpop.f32.mrf.mxu0
        %2771 = vmatprep.mubr.f32.mxu0 0.0
        %2772 = vmatmul.mubr.f32.gmra.mxu0 %v2639
        %v2773 = vpop.f32.mrf.mxu0
        %v2774 = vadd.f32 0.0, %v2773
        %v2775 = vpop.f32.mrf.mxu0
        %2776 = vmatprep.mubr.f32.mxu0 0.0
        %2777 = vmatmul.mubr.f32.gmra.mxu0 %v2640
        %v2778 = vpop.f32.mrf.mxu0
        %v2779 = vadd.f32 0.0, %v2778
        %v2780 = vpop.f32.mrf.mxu0
        %2781 = vmatprep.mubr.f32.mxu0 0.0
        %2782 = vmatmul.mubr.f32.gmra.mxu0 %v2641
        %v2783 = vpop.f32.mrf.mxu0
        %v2784 = vadd.f32 0.0, %v2783
        %v2785 = vpop.f32.mrf.mxu0
        %2786 = vdwg.mxu0
        %2787 = vxpose.xlu0.b32.start [1/16] %v1563, 128
        %2788 = vxpose.xlu0.b32.cont [2/16] %v1564, 128
        %2789 = vxpose.xlu0.b32.cont [3/16] %v1565, 128
        %2790 = vxpose.xlu0.b32.cont [4/16] %v1566, 128
        %2791 = vxpose.xlu0.b32.cont [5/16] %v1567, 128
        %2792 = vxpose.xlu0.b32.cont [6/16] %v1568, 128
        %2793 = vxpose.xlu0.b32.cont [7/16] %v1569, 128
        %2794 = vxpose.xlu0.b32.cont [8/16] %v1570, 128
        %2795 = vxpose.xlu0.b32.cont [9/16] %v1571, 128
        %2796 = vxpose.xlu0.b32.cont [10/16] %v1572, 128
        %2797 = vxpose.xlu0.b32.cont [11/16] %v1573, 128
        %2798 = vxpose.xlu0.b32.cont [12/16] %v1574, 128
        %2799 = vxpose.xlu0.b32.cont [13/16] %v1575, 128
        %2800 = vxpose.xlu0.b32.cont [14/16] %v1576, 128
        %2801 = vxpose.xlu0.b32.cont [15/16] %v1577, 128
        %2802 = vxpose.xlu0.b32.end [16/16] %v1578, 128
        %v2803 = vpop.trf.xlu0
        %v2804 = vpop.trf.xlu0
        %v2805 = vpop.trf.xlu0
        %v2806 = vpop.trf.xlu0
        %v2807 = vpop.trf.xlu0
        %v2808 = vpop.trf.xlu0
        %v2809 = vpop.trf.xlu0
        %v2810 = vpop.trf.xlu0
        %v2811 = vpop.trf.xlu0
        %v2812 = vpop.trf.xlu0
        %v2813 = vpop.trf.xlu0
        %v2814 = vpop.trf.xlu0
        %v2815 = vpop.trf.xlu0
        %v2816 = vpop.trf.xlu0
        %v2817 = vpop.trf.xlu0
        %v2818 = vpop.trf.xlu0
        %2819 = vmatprep.subr.mxu0 0.0
        %2820 = vmatpush1.msra.mxu0 %v1610
        %2821 = vmatprep.subr.mxu0 0.0
        %2822 = vmatpush1.msra.mxu0 %v1609
        %2823 = vmatprep.subr.mxu0 0.0
        %2824 = vmatpush1.msra.mxu0 %v1608
        %2825 = vmatprep.subr.mxu0 0.0
        %2826 = vmatpush1.msra.mxu0 %v1607
        %2827 = vmatprep.subr.mxu0 0.0
        %2828 = vmatpush1.msra.mxu0 %v1606
        %2829 = vmatprep.subr.mxu0 0.0
        %2830 = vmatpush1.msra.mxu0 %v1605
        %2831 = vmatprep.subr.mxu0 0.0
        %2832 = vmatpush1.msra.mxu0 %v1604
        %2833 = vmatprep.subr.mxu0 0.0
        %2834 = vmatpush1.msra.mxu0 %v1603
        %2835 = vmatprep.subr.mxu0 0.0
        %2836 = vmatpush1.msra.mxu0 %v1602
        %2837 = vmatprep.subr.mxu0 0.0
        %2838 = vmatpush1.msra.mxu0 %v1601
        %2839 = vmatprep.subr.mxu0 0.0
        %2840 = vmatpush1.msra.mxu0 %v1600
        %2841 = vmatprep.subr.mxu0 0.0
        %2842 = vmatpush1.msra.mxu0 %v1599
        %2843 = vmatprep.subr.mxu0 0.0
        %2844 = vmatpush1.msra.mxu0 %v1598
        %2845 = vmatprep.subr.mxu0 0.0
        %2846 = vmatpush1.msra.mxu0 %v1597
        %2847 = vmatprep.subr.mxu0 0.0
        %2848 = vmatpush1.msra.mxu0 %v1596
        %2849 = vmatprep.subr.mxu0 0.0
        %2850 = vmatpush1.msra.mxu0 %v1595
        %2851 = vmatprep.subr.mxu0 0.0
        %2852 = vmatpush2.msra.mxu0 0.0
        %2853 = vmatprep.subr.mxu0 0.0
        %2854 = vmatpush2.msra.mxu0 0.0
        %2855 = vmatprep.subr.mxu0 0.0
        %2856 = vmatpush2.msra.mxu0 0.0
        %2857 = vmatprep.subr.mxu0 0.0
        %2858 = vmatpush2.msra.mxu0 0.0
        %2859 = vmatprep.subr.mxu0 0.0
        %2860 = vmatpush2.msra.mxu0 0.0
        %2861 = vmatprep.subr.mxu0 0.0
        %2862 = vmatpush2.msra.mxu0 0.0
        %2863 = vmatprep.subr.mxu0 0.0
        %2864 = vmatpush2.msra.mxu0 0.0
        %2865 = vmatprep.subr.mxu0 0.0
        %2866 = vmatpush2.msra.mxu0 0.0
        %2867 = vmatprep.subr.mxu0 0.0
        %2868 = vmatpush2.msra.mxu0 0.0
        %2869 = vmatprep.subr.mxu0 0.0
        %2870 = vmatpush2.msra.mxu0 0.0
        %2871 = vmatprep.subr.mxu0 0.0
        %2872 = vmatpush2.msra.mxu0 0.0
        %2873 = vmatprep.subr.mxu0 0.0
        %2874 = vmatpush2.msra.mxu0 0.0
        %2875 = vmatprep.subr.mxu0 0.0
        %2876 = vmatpush2.msra.mxu0 0.0
        %2877 = vmatprep.subr.mxu0 0.0
        %2878 = vmatpush2.msra.mxu0 0.0
        %2879 = vmatprep.subr.mxu0 0.0
        %2880 = vmatpush2.msra.mxu0 0.0
        %2881 = vmatprep.subr.mxu0 0.0
        %2882 = vmatpush2.msra.mxu0 0.0
        %2883 = vmatprep.mubr.f32.mxu0 0.0
        %2884 = vmatmul.mubr.f32.gmra.mxu0 %v2803
        %v2885 = vpop.f32.mrf.mxu0
        %v2886 = vadd.f32 0.0, %v2885
        %v2887 = vpop.f32.mrf.mxu0
        %2888 = vmatprep.mubr.f32.mxu0 0.0
        %2889 = vmatmul.mubr.f32.gmra.mxu0 %v2804
        %v2890 = vpop.f32.mrf.mxu0
        %v2891 = vadd.f32 0.0, %v2890
        %v2892 = vpop.f32.mrf.mxu0
        %2893 = vmatprep.mubr.f32.mxu0 0.0
        %2894 = vmatmul.mubr.f32.gmra.mxu0 %v2805
        %v2895 = vpop.f32.mrf.mxu0
        %v2896 = vadd.f32 0.0, %v2895
        %v2897 = vpop.f32.mrf.mxu0
        %2898 = vmatprep.mubr.f32.mxu0 0.0
        %2899 = vmatmul.mubr.f32.gmra.mxu0 %v2806
        %v2900 = vpop.f32.mrf.mxu0
        %v2901 = vadd.f32 0.0, %v2900
        %v2902 = vpop.f32.mrf.mxu0
        %2903 = vmatprep.mubr.f32.mxu0 0.0
        %2904 = vmatmul.mubr.f32.gmra.mxu0 %v2807
        %v2905 = vpop.f32.mrf.mxu0
        %v2906 = vadd.f32 0.0, %v2905
        %v2907 = vpop.f32.mrf.mxu0
        %2908 = vmatprep.mubr.f32.mxu0 0.0
        %2909 = vmatmul.mubr.f32.gmra.mxu0 %v2808
        %v2910 = vpop.f32.mrf.mxu0
        %v2911 = vadd.f32 0.0, %v2910
        %v2912 = vpop.f32.mrf.mxu0
        %2913 = vmatprep.mubr.f32.mxu0 0.0
        %2914 = vmatmul.mubr.f32.gmra.mxu0 %v2809
        %v2915 = vpop.f32.mrf.mxu0
        %v2916 = vadd.f32 0.0, %v2915
        %v2917 = vpop.f32.mrf.mxu0
        %2918 = vmatprep.mubr.f32.mxu0 0.0
        %2919 = vmatmul.mubr.f32.gmra.mxu0 %v2810
        %v2920 = vpop.f32.mrf.mxu0
        %v2921 = vadd.f32 0.0, %v2920
        %v2922 = vpop.f32.mrf.mxu0
        %2923 = vmatprep.mubr.f32.mxu0 0.0
        %2924 = vmatmul.mubr.f32.gmra.mxu0 %v2811
        %v2925 = vpop.f32.mrf.mxu0
        %v2926 = vadd.f32 0.0, %v2925
        %v2927 = vpop.f32.mrf.mxu0
        %2928 = vmatprep.mubr.f32.mxu0 0.0
        %2929 = vmatmul.mubr.f32.gmra.mxu0 %v2812
        %v2930 = vpop.f32.mrf.mxu0
        %v2931 = vadd.f32 0.0, %v2930
        %v2932 = vpop.f32.mrf.mxu0
        %2933 = vmatprep.mubr.f32.mxu0 0.0
        %2934 = vmatmul.mubr.f32.gmra.mxu0 %v2813
        %v2935 = vpop.f32.mrf.mxu0
        %v2936 = vadd.f32 0.0, %v2935
        %v2937 = vpop.f32.mrf.mxu0
        %2938 = vmatprep.mubr.f32.mxu0 0.0
        %2939 = vmatmul.mubr.f32.gmra.mxu0 %v2814
        %v2940 = vpop.f32.mrf.mxu0
        %v2941 = vadd.f32 0.0, %v2940
        %v2942 = vpop.f32.mrf.mxu0
        %2943 = vmatprep.mubr.f32.mxu0 0.0
        %2944 = vmatmul.mubr.f32.gmra.mxu0 %v2815
        %v2945 = vpop.f32.mrf.mxu0
        %v2946 = vadd.f32 0.0, %v2945
        %v2947 = vpop.f32.mrf.mxu0
        %2948 = vmatprep.mubr.f32.mxu0 0.0
        %2949 = vmatmul.mubr.f32.gmra.mxu0 %v2816
        %v2950 = vpop.f32.mrf.mxu0
        %v2951 = vadd.f32 0.0, %v2950
        %v2952 = vpop.f32.mrf.mxu0
        %2953 = vmatprep.mubr.f32.mxu0 0.0
        %2954 = vmatmul.mubr.f32.gmra.mxu0 %v2817
        %v2955 = vpop.f32.mrf.mxu0
        %v2956 = vadd.f32 0.0, %v2955
        %v2957 = vpop.f32.mrf.mxu0
        %2958 = vmatprep.mubr.f32.mxu0 0.0
        %2959 = vmatmul.mubr.f32.gmra.mxu0 %v2818
        %v2960 = vpop.f32.mrf.mxu0
        %v2961 = vadd.f32 0.0, %v2960
        %v2962 = vpop.f32.mrf.mxu0
        %2963 = vdwg.mxu0
        %v2964 = vadd.f32 %v1611, %v2709
        %v2965 = vadd.f32 %v1612, %v2714
        %v2966 = vadd.f32 %v1613, %v2719
        %v2967 = vadd.f32 %v1614, %v2724
        %v2968 = vadd.f32 %v1615, %v2729
        %v2969 = vadd.f32 %v1616, %v2734
        %v2970 = vadd.f32 %v1617, %v2739
        %v2971 = vadd.f32 %v1618, %v2744
        %v2972 = vadd.f32 %v1619, %v2749
        %v2973 = vadd.f32 %v1620, %v2754
        %v2974 = vadd.f32 %v1621, %v2759
        %v2975 = vadd.f32 %v1622, %v2764
        %v2976 = vadd.f32 %v1623, %v2769
        %v2977 = vadd.f32 %v1624, %v2774
        %v2978 = vadd.f32 %v1625, %v2779
        %v2979 = vadd.f32 %v1626, %v2784
        %v2980 = vadd.f32 %v1627, %v2886
        %v2981 = vadd.f32 %v1628, %v2891
        %v2982 = vadd.f32 %v1629, %v2896
        %v2983 = vadd.f32 %v1630, %v2901
        %v2984 = vadd.f32 %v1631, %v2906
        %v2985 = vadd.f32 %v1632, %v2911
        %v2986 = vadd.f32 %v1633, %v2916
        %v2987 = vadd.f32 %v1634, %v2921
        %v2988 = vadd.f32 %v1635, %v2926
        %v2989 = vadd.f32 %v1636, %v2931
        %v2990 = vadd.f32 %v1637, %v2936
        %v2991 = vadd.f32 %v1638, %v2941
        %v2992 = vadd.f32 %v1639, %v2946
        %v2993 = vadd.f32 %v1640, %v2951
        %v2994 = vadd.f32 %v1641, %v2956
        %v2995 = vadd.f32 %v1642, %v2961
        %2996 = vst [vmem:[#allocation2] sm:$0xff] %v2964
        %2997 = vst [vmem:[#allocation2 + $0x8] sm:$0xff] %v2965
        %2998 = vst [vmem:[#allocation2 + $0x10] sm:$0xff] %v2966
        %2999 = vst [vmem:[#allocation2 + $0x18] sm:$0xff] %v2967
        %3000 = vst [vmem:[#allocation2 + $0x20] sm:$0xff] %v2968
        %3001 = vst [vmem:[#allocation2 + $0x28] sm:$0xff] %v2969
        %3002 = vst [vmem:[#allocation2 + $0x30] sm:$0xff] %v2970
        %3003 = vst [vmem:[#allocation2 + $0x38] sm:$0xff] %v2971
        %3004 = vst [vmem:[#allocation2 + $0x40] sm:$0xff] %v2972
        %3005 = vst [vmem:[#allocation2 + $0x48] sm:$0xff] %v2973
        %3006 = vst [vmem:[#allocation2 + $0x50] sm:$0xff] %v2974
        %3007 = vst [vmem:[#allocation2 + $0x58] sm:$0xff] %v2975
        %3008 = vst [vmem:[#allocation2 + $0x60] sm:$0xff] %v2976
        %3009 = vst [vmem:[#allocation2 + $0x68] sm:$0xff] %v2977
        %3010 = vst [vmem:[#allocation2 + $0x70] sm:$0xff] %v2978
        %3011 = vst [vmem:[#allocation2 + $0x78] sm:$0xff] %v2979
        %3012 = vst [vmem:[#allocation2 + $0x80] sm:$0xff] %v2980
        %3013 = vst [vmem:[#allocation2 + $0x88] sm:$0xff] %v2981
        %3014 = vst [vmem:[#allocation2 + $0x90] sm:$0xff] %v2982
        %3015 = vst [vmem:[#allocation2 + $0x98] sm:$0xff] %v2983
        %3016 = vst [vmem:[#allocation2 + $0xa0] sm:$0xff] %v2984
        %3017 = vst [vmem:[#allocation2 + $0xa8] sm:$0xff] %v2985
        %3018 = vst [vmem:[#allocation2 + $0xb0] sm:$0xff] %v2986
        %3019 = vst [vmem:[#allocation2 + $0xb8] sm:$0xff] %v2987
        %3020 = vst [vmem:[#allocation2 + $0xc0] sm:$0xff] %v2988
        %3021 = vst [vmem:[#allocation2 + $0xc8] sm:$0xff] %v2989
        %3022 = vst [vmem:[#allocation2 + $0xd0] sm:$0xff] %v2990
        %3023 = vst [vmem:[#allocation2 + $0xd8] sm:$0xff] %v2991
        %3024 = vst [vmem:[#allocation2 + $0xe0] sm:$0xff] %v2992
        %3025 = vst [vmem:[#allocation2 + $0xe8] sm:$0xff] %v2993
        %3026 = vst [vmem:[#allocation2 + $0xf0] sm:$0xff] %v2994
        %3027 = vst [vmem:[#allocation2 + $0xf8] sm:$0xff] %v2995
        %s3028 = sand.u32 %s157, 1
        %s3029 = sand.u32 %s157, 1
        %s3030 = smul.addr %s3029, 256
        %s3031 = scalar_lea.vmem [#allocation6], %s3030
        // Predicated region
        $region155: #{tpu_custom_call.1} parent=137 // pred_check
          %p3032 = pneg %p167
        $region156: #{tpu_custom_call.1} parent=137 // pred_check_branch
          %3034 = sbr.rel (%p3032) target = $region158
        $region157: #{tpu_custom_call.1} parent=137 // pred_region
          %s3035 = smul.u32 2, %s21
          %s3036 = smul.u32 16, %s22
          %s3037 = smul.addr %s3035, 32
          %s3038 = sadd.s32 %s3036, %s3037
          %s3039 = smul.addr %s20, 64
          %s3040 = sadd.s32 %s3038, %s3039
          %s3041 = smul.addr %s3040, 8
          %s3042 = scalar_lea.vmem %s4, %s3041
          // Predicated region
          $region159: #{tpu_custom_call.1} parent=157 // pred_check
            _
          $region160: #{tpu_custom_call.1} parent=157 // pred_check_branch
            %3044 = sbr.rel (0) target = $region162
          $region161: #{tpu_custom_call.1} parent=157 // pred_region
            // Predicated region
            $region163: #{tpu_custom_call.1} parent=161 // pred_check
              _
            $region164: #{tpu_custom_call.1} parent=161 // pred_check_branch
              %3046 = sbr.rel (0) target = $region166
            $region165: #{tpu_custom_call.1} parent=161 // pred_region
              // Predicated region
              $region178: #{tpu_custom_call.1} parent=165 // pred_check
                _
              $region179: #{tpu_custom_call.1} parent=165 // pred_check_branch
                %3124 = sbr.rel (0) target = $region181
              $region180: #{tpu_custom_call.1} parent=165 // pred_region
                loop: start=0, step=1, limit=1
                $region182: #{tpu_custom_call.1} parent=180 // loop_pre_header
                  _
                $region183: #{tpu_custom_call.1} parent=180 // loop_header
                  %s3126 = sphi 0, %s3130
                  %p3127 = scmp.ge.s32.totalorder %s3126, 1
                  %s3131 = sphi %s3031, %s3031
                  %s3132 = sphi %s3042, %s3042
                $region184: #{tpu_custom_call.1} parent=180 // loop_header_branch
                  %3129 = sbr.rel (%p3127) target = $region188
                $region185: #{tpu_custom_call.1} parent=180 // loop_body
                  %v3133 = vld [vmem:[%s3131] sm:$0xff]
                  %3134 = vst [vmem:[%s3132] sm:$0xff] %v3133
                  %v3135 = vld [vmem:[%s3131 + $0x8] sm:$0xff]
                  %3136 = vst [vmem:[%s3132 + $0x8] sm:$0xff] %v3135
                  %v3137 = vld [vmem:[%s3131 + $0x10] sm:$0xff]
                  %3138 = vst [vmem:[%s3132 + $0x10] sm:$0xff] %v3137
                  %v3139 = vld [vmem:[%s3131 + $0x18] sm:$0xff]
                  %3140 = vst [vmem:[%s3132 + $0x18] sm:$0xff] %v3139
                  %v3141 = vld [vmem:[%s3131 + $0x20] sm:$0xff]
                  %3142 = vst [vmem:[%s3132 + $0x20] sm:$0xff] %v3141
                  %v3143 = vld [vmem:[%s3131 + $0x28] sm:$0xff]
                  %3144 = vst [vmem:[%s3132 + $0x28] sm:$0xff] %v3143
                  %v3145 = vld [vmem:[%s3131 + $0x30] sm:$0xff]
                  %3146 = vst [vmem:[%s3132 + $0x30] sm:$0xff] %v3145
                  %v3147 = vld [vmem:[%s3131 + $0x38] sm:$0xff]
                  %3148 = vst [vmem:[%s3132 + $0x38] sm:$0xff] %v3147
                  %v3149 = vld [vmem:[%s3131 + $0x40] sm:$0xff]
                  %3150 = vst [vmem:[%s3132 + $0x40] sm:$0xff] %v3149
                  %v3151 = vld [vmem:[%s3131 + $0x48] sm:$0xff]
                  %3152 = vst [vmem:[%s3132 + $0x48] sm:$0xff] %v3151
                  %v3153 = vld [vmem:[%s3131 + $0x50] sm:$0xff]
                  %3154 = vst [vmem:[%s3132 + $0x50] sm:$0xff] %v3153
                  %v3155 = vld [vmem:[%s3131 + $0x58] sm:$0xff]
                  %3156 = vst [vmem:[%s3132 + $0x58] sm:$0xff] %v3155
                  %v3157 = vld [vmem:[%s3131 + $0x60] sm:$0xff]
                  %3158 = vst [vmem:[%s3132 + $0x60] sm:$0xff] %v3157
                  %v3159 = vld [vmem:[%s3131 + $0x68] sm:$0xff]
                  %3160 = vst [vmem:[%s3132 + $0x68] sm:$0xff] %v3159
                  %v3161 = vld [vmem:[%s3131 + $0x70] sm:$0xff]
                  %3162 = vst [vmem:[%s3132 + $0x70] sm:$0xff] %v3161
                  %v3163 = vld [vmem:[%s3131 + $0x78] sm:$0xff]
                  %3164 = vst [vmem:[%s3132 + $0x78] sm:$0xff] %v3163
                  %v3165 = vld [vmem:[%s3131 + $0x80] sm:$0xff]
                  %3166 = vst [vmem:[%s3132 + $0x100] sm:$0xff] %v3165
                  %v3167 = vld [vmem:[%s3131 + $0x88] sm:$0xff]
                  %3168 = vst [vmem:[%s3132 + $0x108] sm:$0xff] %v3167
                  %v3169 = vld [vmem:[%s3131 + $0x90] sm:$0xff]
                  %3170 = vst [vmem:[%s3132 + $0x110] sm:$0xff] %v3169
                  %v3171 = vld [vmem:[%s3131 + $0x98] sm:$0xff]
                  %3172 = vst [vmem:[%s3132 + $0x118] sm:$0xff] %v3171
                  %v3173 = vld [vmem:[%s3131 + $0xa0] sm:$0xff]
                  %3174 = vst [vmem:[%s3132 + $0x120] sm:$0xff] %v3173
                  %v3175 = vld [vmem:[%s3131 + $0xa8] sm:$0xff]
                  %3176 = vst [vmem:[%s3132 + $0x128] sm:$0xff] %v3175
                  %v3177 = vld [vmem:[%s3131 + $0xb0] sm:$0xff]
                  %3178 = vst [vmem:[%s3132 + $0x130] sm:$0xff] %v3177
                  %v3179 = vld [vmem:[%s3131 + $0xb8] sm:$0xff]
                  %3180 = vst [vmem:[%s3132 + $0x138] sm:$0xff] %v3179
                  %v3181 = vld [vmem:[%s3131 + $0xc0] sm:$0xff]
                  %3182 = vst [vmem:[%s3132 + $0x140] sm:$0xff] %v3181
                  %v3183 = vld [vmem:[%s3131 + $0xc8] sm:$0xff]
                  %3184 = vst [vmem:[%s3132 + $0x148] sm:$0xff] %v3183
                  %v3185 = vld [vmem:[%s3131 + $0xd0] sm:$0xff]
                  %3186 = vst [vmem:[%s3132 + $0x150] sm:$0xff] %v3185
                  %v3187 = vld [vmem:[%s3131 + $0xd8] sm:$0xff]
                  %3188 = vst [vmem:[%s3132 + $0x158] sm:$0xff] %v3187
                  %v3189 = vld [vmem:[%s3131 + $0xe0] sm:$0xff]
                  %3190 = vst [vmem:[%s3132 + $0x160] sm:$0xff] %v3189
                  %v3191 = vld [vmem:[%s3131 + $0xe8] sm:$0xff]
                  %3192 = vst [vmem:[%s3132 + $0x168] sm:$0xff] %v3191
                  %v3193 = vld [vmem:[%s3131 + $0xf0] sm:$0xff]
                  %3194 = vst [vmem:[%s3132 + $0x170] sm:$0xff] %v3193
                  %v3195 = vld [vmem:[%s3131 + $0xf8] sm:$0xff]
                  %3196 = vst [vmem:[%s3132 + $0x178] sm:$0xff] %v3195
                $region186: #{tpu_custom_call.1} parent=180 // loop_footer
                  %s3130 = sadd.s32 1, %s3126
                $region187: #{tpu_custom_call.1} parent=180 // loop_footer_branch
                  %3125 = sbr.rel target = $region183
                $region188: #{tpu_custom_call.1} parent=180 // loop_exit
                  _
              $region181: #{tpu_custom_call.1} parent=165 // pred_fallthru
                _
              // Predicated region
              $region189: #{tpu_custom_call.1} parent=165 // pred_check
                _
              $region190: #{tpu_custom_call.1} parent=165 // pred_check_branch
                %3198 = sbr.rel target = $region192
              $region191: #{tpu_custom_call.1} parent=165 // pred_region
                _
              $region192: #{tpu_custom_call.1} parent=165 // pred_fallthru
                _
            $region166: #{tpu_custom_call.1} parent=161 // pred_fallthru
              _
            // Predicated region
            $region167: #{tpu_custom_call.1} parent=161 // pred_check
              _
            $region168: #{tpu_custom_call.1} parent=161 // pred_check_branch
              %3048 = sbr.rel target = $region170
            $region169: #{tpu_custom_call.1} parent=161 // pred_region
              %s3050 = ssub.s32 256, 1
              loop: start=0, step=1, limit=1
              $region171: #{tpu_custom_call.1} parent=169 // loop_pre_header
                _
              $region172: #{tpu_custom_call.1} parent=169 // loop_header
                %s3052 = sphi 0, %s3056
                %p3053 = scmp.ge.s32.totalorder %s3052, 1
                %s3057 = sphi %s3031, %s3031
                %s3058 = sphi %s3042, %s3042
              $region173: #{tpu_custom_call.1} parent=169 // loop_header_branch
                %3055 = sbr.rel (%p3053) target = $region177
              $region174: #{tpu_custom_call.1} parent=169 // loop_body
                %v3059 = vld [vmem:[%s3057] sm:%s3050]
                %3060 = vst [vmem:[%s3058] sm:%s3050] %v3059
                %v3061 = vld [vmem:[%s3057 + $0x8] sm:%s3050]
                %3062 = vst [vmem:[%s3058 + $0x8] sm:%s3050] %v3061
                %v3063 = vld [vmem:[%s3057 + $0x10] sm:%s3050]
                %3064 = vst [vmem:[%s3058 + $0x10] sm:%s3050] %v3063
                %v3065 = vld [vmem:[%s3057 + $0x18] sm:%s3050]
                %3066 = vst [vmem:[%s3058 + $0x18] sm:%s3050] %v3065
                %v3067 = vld [vmem:[%s3057 + $0x20] sm:%s3050]
                %3068 = vst [vmem:[%s3058 + $0x20] sm:%s3050] %v3067
                %v3069 = vld [vmem:[%s3057 + $0x28] sm:%s3050]
                %3070 = vst [vmem:[%s3058 + $0x28] sm:%s3050] %v3069
                %v3071 = vld [vmem:[%s3057 + $0x30] sm:%s3050]
                %3072 = vst [vmem:[%s3058 + $0x30] sm:%s3050] %v3071
                %v3073 = vld [vmem:[%s3057 + $0x38] sm:%s3050]
                %3074 = vst [vmem:[%s3058 + $0x38] sm:%s3050] %v3073
                %v3075 = vld [vmem:[%s3057 + $0x40] sm:%s3050]
                %3076 = vst [vmem:[%s3058 + $0x40] sm:%s3050] %v3075
                %v3077 = vld [vmem:[%s3057 + $0x48] sm:%s3050]
                %3078 = vst [vmem:[%s3058 + $0x48] sm:%s3050] %v3077
                %v3079 = vld [vmem:[%s3057 + $0x50] sm:%s3050]
                %3080 = vst [vmem:[%s3058 + $0x50] sm:%s3050] %v3079
                %v3081 = vld [vmem:[%s3057 + $0x58] sm:%s3050]
                %3082 = vst [vmem:[%s3058 + $0x58] sm:%s3050] %v3081
                %v3083 = vld [vmem:[%s3057 + $0x60] sm:%s3050]
                %3084 = vst [vmem:[%s3058 + $0x60] sm:%s3050] %v3083
                %v3085 = vld [vmem:[%s3057 + $0x68] sm:%s3050]
                %3086 = vst [vmem:[%s3058 + $0x68] sm:%s3050] %v3085
                %v3087 = vld [vmem:[%s3057 + $0x70] sm:%s3050]
                %3088 = vst [vmem:[%s3058 + $0x70] sm:%s3050] %v3087
                %v3089 = vld [vmem:[%s3057 + $0x78] sm:%s3050]
                %3090 = vst [vmem:[%s3058 + $0x78] sm:%s3050] %v3089
                %v3091 = vld [vmem:[%s3057 + $0x80] sm:%s3050]
                %3092 = vst [vmem:[%s3058 + $0x100] sm:%s3050] %v3091
                %v3093 = vld [vmem:[%s3057 + $0x88] sm:%s3050]
                %3094 = vst [vmem:[%s3058 + $0x108] sm:%s3050] %v3093
                %v3095 = vld [vmem:[%s3057 + $0x90] sm:%s3050]
                %3096 = vst [vmem:[%s3058 + $0x110] sm:%s3050] %v3095
                %v3097 = vld [vmem:[%s3057 + $0x98] sm:%s3050]
                %3098 = vst [vmem:[%s3058 + $0x118] sm:%s3050] %v3097
                %v3099 = vld [vmem:[%s3057 + $0xa0] sm:%s3050]
                %3100 = vst [vmem:[%s3058 + $0x120] sm:%s3050] %v3099
                %v3101 = vld [vmem:[%s3057 + $0xa8] sm:%s3050]
                %3102 = vst [vmem:[%s3058 + $0x128] sm:%s3050] %v3101
                %v3103 = vld [vmem:[%s3057 + $0xb0] sm:%s3050]
                %3104 = vst [vmem:[%s3058 + $0x130] sm:%s3050] %v3103
                %v3105 = vld [vmem:[%s3057 + $0xb8] sm:%s3050]
                %3106 = vst [vmem:[%s3058 + $0x138] sm:%s3050] %v3105
                %v3107 = vld [vmem:[%s3057 + $0xc0] sm:%s3050]
                %3108 = vst [vmem:[%s3058 + $0x140] sm:%s3050] %v3107
                %v3109 = vld [vmem:[%s3057 + $0xc8] sm:%s3050]
                %3110 = vst [vmem:[%s3058 + $0x148] sm:%s3050] %v3109
                %v3111 = vld [vmem:[%s3057 + $0xd0] sm:%s3050]
                %3112 = vst [vmem:[%s3058 + $0x150] sm:%s3050] %v3111
                %v3113 = vld [vmem:[%s3057 + $0xd8] sm:%s3050]
                %3114 = vst [vmem:[%s3058 + $0x158] sm:%s3050] %v3113
                %v3115 = vld [vmem:[%s3057 + $0xe0] sm:%s3050]
                %3116 = vst [vmem:[%s3058 + $0x160] sm:%s3050] %v3115
                %v3117 = vld [vmem:[%s3057 + $0xe8] sm:%s3050]
                %3118 = vst [vmem:[%s3058 + $0x168] sm:%s3050] %v3117
                %v3119 = vld [vmem:[%s3057 + $0xf0] sm:%s3050]
                %3120 = vst [vmem:[%s3058 + $0x170] sm:%s3050] %v3119
                %v3121 = vld [vmem:[%s3057 + $0xf8] sm:%s3050]
                %3122 = vst [vmem:[%s3058 + $0x178] sm:%s3050] %v3121
              $region175: #{tpu_custom_call.1} parent=169 // loop_footer
                %s3056 = sadd.s32 1, %s3052
              $region176: #{tpu_custom_call.1} parent=169 // loop_footer_branch
                %3051 = sbr.rel target = $region172
              $region177: #{tpu_custom_call.1} parent=169 // loop_exit
                _
            $region170: #{tpu_custom_call.1} parent=161 // pred_fallthru
              _
          $region162: #{tpu_custom_call.1} parent=157 // pred_fallthru
            _
          %3199 = vnop
        $region158: #{tpu_custom_call.1} parent=137 // pred_fallthru
          _
      $region138: #{tpu_custom_call.1} parent=5 // pred_fallthru
        _
      %p3200 = scmp.le.s32.totalorder 2, %s10
      // Predicated region
      $region193: #{tpu_custom_call.1} parent=5 // pred_check
        %p3201 = pneg %p3200
      $region194: #{tpu_custom_call.1} parent=5 // pred_check_branch
        %3203 = sbr.rel (%p3201) target = $region196
      $region195: #{tpu_custom_call.1} parent=5 // pred_region
        %s3204 = ssub.s32 %s10, 2
        // Predicated region
        $region197: #{tpu_custom_call.1} parent=195 // pred_check
          %p3205 = pneg %p173
        $region198: #{tpu_custom_call.1} parent=195 // pred_check_branch
          %3207 = sbr.rel (%p3205) target = $region200
        $region199: #{tpu_custom_call.1} parent=195 // pred_region
          %s3208 = sand.u32 %s158, 1
          %s3209 = sand.u32 %s158, 1
          %s3210 = smul.addr %s3209, 256
          %s3211 = scalar_lea.vmem [#allocation6], %s3210
        $region200: #{tpu_custom_call.1} parent=195 // pred_fallthru
          _
      $region196: #{tpu_custom_call.1} parent=5 // pred_fallthru
        _
    $region6: #{tpu_custom_call.1} parent=1 // loop_footer
      %s14 = sadd.s32 1, %s10
    $region7: #{tpu_custom_call.1} parent=1 // loop_footer_branch
      %9 = sbr.rel target = $region3
    $region8: #{tpu_custom_call.1} parent=1 // loop_exit
      _

</llo_original>
